<compile_context>
chip_gen: v7x
topology: tpu7x:2x2x1
jax: 0.10.0
libtpu: 0.0.40
codegen_flags: <defaults>
</compile_context>

<pallas_src>
import functools

import jax
import jax.numpy as jnp
from jax.experimental import pallas as pl
from jax.experimental.pallas import tpu as pltpu


def _round_up(x, m):
    return (x + m - 1) // m * m


# ----------------------------- Pallas kernel ---------------------------------
def fused_conv_block_kernel(x_ref, w1_ref, b1_ref, w2_ref, b2_ref,
                            o_ref, xpad_ref, y1pad_ref, patches_ref, *, TH, W):
    # x_ref:       (1, H, W, Cin)        full raw image tile (grid-invariant along rows)
    # w*_ref:      (9*C, C) bf16         tap-major (kh, kw, cin) flattened weights
    # b*_ref:      (1, C)   f32          channel-padded bias
    # o_ref:       (1, TH*W, C) f32      lane-dense output rows for this row tile
    # xpad_ref:    (TH+4, Wp, C) f32     zero-halo input staging (rows R0-2 .. R0+TH+2)
    # y1pad_ref:   (TH+2, Wp, C) f32     zero-halo conv1 activation (rows R0-1 .. R0+TH+1)
    # patches_ref: ((TH+2)*W, 9*C) bf16  fused-K GEMM operand, reused by conv1 and conv2
    cin = x_ref.shape[-1]
    C = xpad_ref.shape[-1]
    f32 = jnp.float32

    r = pl.program_id(1)
    nr = pl.num_programs(1)
    R0 = pl.multiple_of(r * TH, TH)          # first output row of this tile

    taps = [(kh, kw) for kh in range(3) for kw in range(3)]

    def conv3x3_relu(src_ref, rows, w_ref, b_ref):
        m = rows * W
        # 9 shifted halo views -> 128-lane column blocks of the bf16 patches scratch
        # (no concatenate transient; MXU operands are bf16, accumulation is f32).
        for t, (kh, kw) in enumerate(taps):
            patches_ref[0:m, t * C:(t + 1) * C] = (
                src_ref[kh:kh + rows, kw:kw + W, :]
                .reshape(m, C).astype(jnp.bfloat16))
        y = jnp.dot(patches_ref[0:m, :], w_ref[...],
                    preferred_element_type=f32)           # ONE MXU matmul, K = 9*C
        return jnp.maximum(y + b_ref[...], 0.0)           # f32 bias + ReLU epilogue

    # ---------------- stage input rows [R0-2, R0+TH+2) into xpad -----------------
    # Frame-only zeroing: left/right halo columns + channel-pad lanes (never written
    # with data), re-done every step (zero-once is unsafe with per-TC scratch on v7x).
    xpad_ref[:, 0:1, :] = jnp.zeros((TH + 4, 1, C), f32)
    xpad_ref[:, W + 1:W + 2, :] = jnp.zeros((TH + 4, 1, C), f32)
    if cin < C:
        xpad_ref[:, 1:W + 1, cin:] = jnp.zeros((TH + 4, W, C - cin), f32)

    # Interior TH rows are always valid image rows.
    xpad_ref[2:2 + TH, 1:W + 1, :cin] = x_ref[0, pl.ds(R0, TH), :, :]

    # Top 2-row halo: neighbor-tile rows, or zero padding at the image top.
    @pl.when(r > 0)
    def _():
        xpad_ref[0:2, 1:W + 1, :cin] = x_ref[0, pl.ds(R0 - 2, 2), :, :]

    @pl.when(r == 0)
    def _():
        xpad_ref[0:2, 1:W + 1, :cin] = jnp.zeros((2, W, cin), f32)

    # Bottom 2-row halo: neighbor-tile rows, or zero padding at the image bottom.
    @pl.when(r < nr - 1)
    def _():
        xpad_ref[TH + 2:TH + 4, 1:W + 1, :cin] = x_ref[0, pl.ds(R0 + TH, 2), :, :]

    @pl.when(r == nr - 1)
    def _():
        xpad_ref[TH + 2:TH + 4, 1:W + 1, :cin] = jnp.zeros((2, W, cin), f32)

    # ---------------- conv1 + ReLU (TH+2 rows, stays in VMEM) --------------------
    y1 = conv3x3_relu(xpad_ref, TH + 2, w1_ref, b1_ref)    # ((TH+2)*W, C) f32
    y1pad_ref[:, 0:1, :] = jnp.zeros((TH + 2, 1, C), f32)
    y1pad_ref[:, W + 1:W + 2, :] = jnp.zeros((TH + 2, 1, C), f32)
    # Padded lanes (Cout..C) of y1 are exactly 0 because weights/bias are zero-padded
    # and ReLU(0)=0 — conv2 correctness relies on this invariant.
    y1pad_ref[:, 1:W + 1, :] = y1.reshape(TH + 2, W, C)

    # At the image top/bottom the extra conv1 row is padding, not a real row: zero it.
    @pl.when(r == 0)
    def _():
        y1pad_ref[0:1, 1:W + 1, :] = jnp.zeros((1, W, C), f32)

    @pl.when(r == nr - 1)
    def _():
        y1pad_ref[TH + 1:TH + 2, 1:W + 1, :] = jnp.zeros((1, W, C), f32)

    # ---------------- conv2 + ReLU -> lane-dense output --------------------------
    y2 = conv3x3_relu(y1pad_ref, TH, w2_ref, b2_ref)        # (TH*W, C) f32
    o_ref[0, :, :] = y2.astype(o_ref.dtype)


# ------------------------------- wrapper --------------------------------------
def _prep_weight(w_oihw, c_pad):
    # PyTorch conv weight (Cout, Cin, 3, 3) -> (9*c_pad, c_pad) bf16, tap-major
    # (kh, kw, cin) rows, zero-padded in both channel dims (padded rows/cols give 0).
    cout, cin, _, _ = w_oihw.shape
    w = jnp.transpose(w_oihw, (2, 3, 1, 0))                               # (3, 3, Cin, Cout)
    w = jnp.pad(w, ((0, 0), (0, 0), (0, c_pad - cin), (0, c_pad - cout)))
    return w.reshape(9 * c_pad, c_pad).astype(jnp.bfloat16)


def conv_block_forward(x_nchw, params, *, row_tile=8):
    # Matches: relu(conv2(relu(conv1(x)))) with 3x3 convs, padding=1, stride=1, bias=True.
    N, Cin, H, W = x_nchw.shape
    Cout = params["w1"].shape[0]
    C = 128  # lane width: channel pad so every in-kernel slice/store is lane-dense
    assert Cin <= C and Cout <= C, "TODO(synk): add channel tiling for >128 channels"
    assert W % 8 == 0, "W must be a sublane multiple for the (rows,W)->(rows*W) flatten"

    TH = row_tile if (H % row_tile == 0 and row_tile >= 2) else H
    assert H % TH == 0 and TH >= 2
    Wp = _round_up(W + 2, 8)  # sublane-aligned halo width

    x = jnp.transpose(x_nchw, (0, 2, 3, 1)).astype(jnp.float32)           # NCHW -> NHWC

    w1f = _prep_weight(params["w1"], C)
    w2f = _prep_weight(params["w2"], C)
    b1p = jnp.pad(params["b1"], (0, C - Cout)).reshape(1, C).astype(jnp.float32)
    b2p = jnp.pad(params["b2"], (0, C - Cout)).reshape(1, C).astype(jnp.float32)

    kernel = functools.partial(fused_conv_block_kernel, TH=TH, W=W)

    out = pl.pallas_call(
        kernel,
        out_shape=jax.ShapeDtypeStruct((N, H * W, C), jnp.float32),
        grid_spec=pltpu.PrefetchScalarGridSpec(
            num_scalar_prefetch=0,
            grid=(N, H // TH),                    # >= 4 steps: pipelining + both v7x TCs
            in_specs=[
                # Full image per batch; invariant along the row axis -> DMA'd once per n.
                pl.BlockSpec((1, H, W, Cin), lambda n, r: (n, 0, 0, 0)),
                pl.BlockSpec((9 * C, C), lambda n, r: (0, 0)),   # grid-invariant weights
                pl.BlockSpec((1, C), lambda n, r: (0, 0)),
                pl.BlockSpec((9 * C, C), lambda n, r: (0, 0)),
                pl.BlockSpec((1, C), lambda n, r: (0, 0)),
            ],
            out_specs=pl.BlockSpec((1, TH * W, C), lambda n, r: (n, r, 0)),
            scratch_shapes=[
                pltpu.VMEM((TH + 4, Wp, C), jnp.float32),        # zero-halo input rows
                pltpu.VMEM((TH + 2, Wp, C), jnp.float32),        # zero-halo conv1 activation
                pltpu.VMEM(((TH + 2) * W, 9 * C), jnp.bfloat16), # shared bf16 patches buffer
            ],
        ),
        compiler_params=pltpu.CompilerParams(
            dimension_semantics=("parallel", "parallel")),
    )(x, w1f, b1p, w2f, b2p)

    out = out[:, :, :Cout].reshape(N, H, W, Cout)          # drop lane padding outside
    return jnp.transpose(out, (0, 3, 1, 2))                 # NHWC -> NCHW


# --------------------------- pure-JAX reference -------------------------------
def _reference(x_nchw, params):
    dn = jax.lax.conv_dimension_numbers(x_nchw.shape, params["w1"].shape,
                                        ("NCHW", "OIHW", "NCHW"))
    y = jax.lax.conv_general_dilated(x_nchw, params["w1"], (1, 1), ((1, 1), (1, 1)),
                                     dimension_numbers=dn)
    y = jnp.maximum(y + params["b1"].reshape(1, -1, 1, 1), 0.0)
    y = jax.lax.conv_general_dilated(y, params["w2"], (1, 1), ((1, 1), (1, 1)),
                                     dimension_numbers=dn)
    y = jnp.maximum(y + params["b2"].reshape(1, -1, 1, 1), 0.0)
    return y


if __name__ == "__main__":
    N, in_c, out_c, H, W = 2, 4, 8, 16, 16

    key = jax.random.PRNGKey(0)
    k1, k2, k3, k4, k5 = jax.random.split(key, 5)

    # Deterministic synthetic parameters (PyTorch Conv2d shapes: OIHW weights, per-channel bias)
    params = {
        "w1": jax.random.normal(k1, (out_c, in_c, 3, 3), jnp.float32) * 0.1,
        "b1": jax.random.normal(k2, (out_c,), jnp.float32) * 0.1,
        "w2": jax.random.normal(k3, (out_c, out_c, 3, 3), jnp.float32) * 0.1,
        "b2": jax.random.normal(k4, (out_c,), jnp.float32) * 0.1,
    }
    x = jax.random.normal(k5, (N, in_c, H, W), jnp.float32)

    out = jax.block_until_ready(conv_block_forward(x, params))
    ref = jax.block_until_ready(_reference(x, params))

    assert out.shape == (N, out_c, H, W), out.shape
    err = float(jnp.max(jnp.abs(out - ref)))
    # bf16 MXU operands with f32 accumulation: looser tolerance than the pure-f32 version.
    assert err < 5e-2, err
    print("KERNEL_OK")
</pallas_src>

<mosaic_0001>
module attributes {stable_mosaic.version = 11 : i64} {
  func.func @fused_conv_block_kernel(%arg0: i32, %arg1: i32, %arg2: memref<1x16x16x4xf32, #tpu.memory_space<vmem>>, %arg3: memref<1152x128xbf16, #tpu.memory_space<vmem>>, %arg4: memref<1x128xf32, #tpu.memory_space<vmem>>, %arg5: memref<1152x128xbf16, #tpu.memory_space<vmem>>, %arg6: memref<1x128xf32, #tpu.memory_space<vmem>>, %arg7: memref<1x128x128xf32, #tpu.memory_space<vmem>>, %arg8: memref<12x24x128xf32, #tpu.memory_space<vmem>>, %arg9: memref<10x24x128xf32, #tpu.memory_space<vmem>>, %arg10: memref<160x1152xbf16, #tpu.memory_space<vmem>>) attributes {dimension_semantics = [#tpu.dimension_semantics<parallel>, #tpu.dimension_semantics<parallel>], iteration_bounds = array<i64: 2, 2>, scalar_prefetch = 0 : i64, scratch_operands = 3 : i64, tpu.core_type = #tpu.core_type<tc>, window_params = [{transform_indices = @transform_0, window_bounds = array<i64: 1, 16, 16, 4>}, {pipeline_mode = #tpu.pipeline_mode<synchronous>, transform_indices = @transform_1, window_bounds = array<i64: 1152, 128>}, {pipeline_mode = #tpu.pipeline_mode<synchronous>, transform_indices = @transform_2, window_bounds = array<i64: 1, 128>}, {pipeline_mode = #tpu.pipeline_mode<synchronous>, transform_indices = @transform_3, window_bounds = array<i64: 1152, 128>}, {pipeline_mode = #tpu.pipeline_mode<synchronous>, transform_indices = @transform_4, window_bounds = array<i64: 1, 128>}, {transform_indices = @transform_5, window_bounds = array<i64: 1, 128, 128>}]} {
    %c8_i32 = arith.constant 8 : i32
    %0 = arith.muli %arg1, %c8_i32 : i32
    %1 = tpu.assume_multiple %0, 8 : i32
    %cst = arith.constant 0.000000e+00 : f32
    %2 = vector.broadcast %cst : f32 to vector<12x1x128xf32>
    %c0 = arith.constant 0 : index
    %c0_0 = arith.constant 0 : index
    %c0_1 = arith.constant 0 : index
    %3 = vector.load %arg8[%c0, %c0_0, %c0_1] : memref<12x24x128xf32, #tpu.memory_space<vmem>>, vector<12x1x128xf32>
    tpu.vector_store %arg8[%c0, %c0_0, %c0_1], %2 {strides = array<i32>} : memref<12x24x128xf32, #tpu.memory_space<vmem>>, vector<12x1x128xf32>,
    %cst_2 = arith.constant 0.000000e+00 : f32
    %4 = vector.broadcast %cst_2 : f32 to vector<12x1x128xf32>
    %c0_3 = arith.constant 0 : index
    %c17 = arith.constant 17 : index
    %c0_4 = arith.constant 0 : index
    %5 = vector.load %arg8[%c0_3, %c17, %c0_4] : memref<12x24x128xf32, #tpu.memory_space<vmem>>, vector<12x1x128xf32>
    tpu.vector_store %arg8[%c0_3, %c17, %c0_4], %4 {strides = array<i32>} : memref<12x24x128xf32, #tpu.memory_space<vmem>>, vector<12x1x128xf32>,
    %cst_5 = arith.constant 0.000000e+00 : f32
    %6 = vector.broadcast %cst_5 : f32 to vector<12x16x124xf32>
    %c0_6 = arith.constant 0 : index
    %c1 = arith.constant 1 : index
    %c4 = arith.constant 4 : index
    %7 = vector.load %arg8[%c0_6, %c1, %c4] : memref<12x24x128xf32, #tpu.memory_space<vmem>>, vector<12x16x124xf32>
    tpu.vector_store %arg8[%c0_6, %c1, %c4], %6 {strides = array<i32>} : memref<12x24x128xf32, #tpu.memory_space<vmem>>, vector<12x16x124xf32>,
    %c0_7 = arith.constant 0 : index
    %8 = arith.index_cast %1 : i32 to index
    %c0_8 = arith.constant 0 : index
    %c0_9 = arith.constant 0 : index
    %9 = vector.load %arg2[%c0_7, %8, %c0_8, %c0_9] : memref<1x16x16x4xf32, #tpu.memory_space<vmem>>, vector<1x8x16x4xf32>
    %10 = vector.shape_cast %9 : vector<1x8x16x4xf32> to vector<8x16x4xf32>
    %c2 = arith.constant 2 : index
    %c1_10 = arith.constant 1 : index
    %c0_11 = arith.constant 0 : index
    %11 = vector.load %arg8[%c2, %c1_10, %c0_11] : memref<12x24x128xf32, #tpu.memory_space<vmem>>, vector<8x16x4xf32>
    tpu.vector_store %arg8[%c2, %c1_10, %c0_11], %10 {strides = array<i32>} : memref<12x24x128xf32, #tpu.memory_space<vmem>>, vector<8x16x4xf32>,
    %c0_i32 = arith.constant 0 : i32
    %12 = arith.cmpi sgt, %arg1, %c0_i32 : i32
    %13 = arith.extui %12 : i1 to i32
    %c0_i32_12 = arith.constant 0 : i32
    %14 = arith.cmpi ne, %13, %c0_i32_12 : i32
    scf.if %14 {
      %c2_i32 = arith.constant 2 : i32
      %127 = arith.subi %1, %c2_i32 : i32
      %c0_134 = arith.constant 0 : index
      %128 = arith.index_cast %127 : i32 to index
      %c0_135 = arith.constant 0 : index
      %c0_136 = arith.constant 0 : index
      %129 = vector.load %arg2[%c0_134, %128, %c0_135, %c0_136] : memref<1x16x16x4xf32, #tpu.memory_space<vmem>>, vector<1x2x16x4xf32>
      %130 = vector.shape_cast %129 : vector<1x2x16x4xf32> to vector<2x16x4xf32>
      %c0_137 = arith.constant 0 : index
      %c1_138 = arith.constant 1 : index
      %c0_139 = arith.constant 0 : index
      %131 = vector.load %arg8[%c0_137, %c1_138, %c0_139] : memref<12x24x128xf32, #tpu.memory_space<vmem>>, vector<2x16x4xf32>
      tpu.vector_store %arg8[%c0_137, %c1_138, %c0_139], %130 {strides = array<i32>} : memref<12x24x128xf32, #tpu.memory_space<vmem>>, vector<2x16x4xf32>,
    } else {
    }
    %c0_i32_13 = arith.constant 0 : i32
    %15 = arith.cmpi eq, %arg1, %c0_i32_13 : i32
    %16 = arith.extui %15 : i1 to i32
    %c0_i32_14 = arith.constant 0 : i32
    %17 = arith.cmpi ne, %16, %c0_i32_14 : i32
    scf.if %17 {
      %cst_134 = arith.constant 0.000000e+00 : f32
      %127 = vector.broadcast %cst_134 : f32 to vector<2x16x4xf32>
      %c0_135 = arith.constant 0 : index
      %c1_136 = arith.constant 1 : index
      %c0_137 = arith.constant 0 : index
      %128 = vector.load %arg8[%c0_135, %c1_136, %c0_137] : memref<12x24x128xf32, #tpu.memory_space<vmem>>, vector<2x16x4xf32>
      tpu.vector_store %arg8[%c0_135, %c1_136, %c0_137], %127 {strides = array<i32>} : memref<12x24x128xf32, #tpu.memory_space<vmem>>, vector<2x16x4xf32>,
    } else {
    }
    %c1_i32 = arith.constant 1 : i32
    %18 = arith.cmpi slt, %arg1, %c1_i32 : i32
    %19 = arith.extui %18 : i1 to i32
    %c0_i32_15 = arith.constant 0 : i32
    %20 = arith.cmpi ne, %19, %c0_i32_15 : i32
    scf.if %20 {
      %c8_i32_134 = arith.constant 8 : i32
      %127 = arith.addi %1, %c8_i32_134 : i32
      %c0_135 = arith.constant 0 : index
      %128 = arith.index_cast %127 : i32 to index
      %c0_136 = arith.constant 0 : index
      %c0_137 = arith.constant 0 : index
      %129 = vector.load %arg2[%c0_135, %128, %c0_136, %c0_137] : memref<1x16x16x4xf32, #tpu.memory_space<vmem>>, vector<1x2x16x4xf32>
      %130 = vector.shape_cast %129 : vector<1x2x16x4xf32> to vector<2x16x4xf32>
      %c10 = arith.constant 10 : index
      %c1_138 = arith.constant 1 : index
      %c0_139 = arith.constant 0 : index
      %131 = vector.load %arg8[%c10, %c1_138, %c0_139] : memref<12x24x128xf32, #tpu.memory_space<vmem>>, vector<2x16x4xf32>
      tpu.vector_store %arg8[%c10, %c1_138, %c0_139], %130 {strides = array<i32>} : memref<12x24x128xf32, #tpu.memory_space<vmem>>, vector<2x16x4xf32>,
    } else {
    }
    %c1_i32_16 = arith.constant 1 : i32
    %21 = arith.cmpi eq, %arg1, %c1_i32_16 : i32
    %22 = arith.extui %21 : i1 to i32
    %c0_i32_17 = arith.constant 0 : i32
    %23 = arith.cmpi ne, %22, %c0_i32_17 : i32
    scf.if %23 {
      %cst_134 = arith.constant 0.000000e+00 : f32
      %127 = vector.broadcast %cst_134 : f32 to vector<2x16x4xf32>
      %c10 = arith.constant 10 : index
      %c1_135 = arith.constant 1 : index
      %c0_136 = arith.constant 0 : index
      %128 = vector.load %arg8[%c10, %c1_135, %c0_136] : memref<12x24x128xf32, #tpu.memory_space<vmem>>, vector<2x16x4xf32>
      tpu.vector_store %arg8[%c10, %c1_135, %c0_136], %127 {strides = array<i32>} : memref<12x24x128xf32, #tpu.memory_space<vmem>>, vector<2x16x4xf32>,
    } else {
    }
    %c0_18 = arith.constant 0 : index
    %c0_19 = arith.constant 0 : index
    %c0_20 = arith.constant 0 : index
    %24 = vector.load %arg8[%c0_18, %c0_19, %c0_20] : memref<12x24x128xf32, #tpu.memory_space<vmem>>, vector<10x16x128xf32>
    %25 = vector.shape_cast %24 : vector<10x16x128xf32> to vector<160x128xf32>
    %26 = arith.truncf %25 : vector<160x128xf32> to vector<160x128xbf16>
    %c0_21 = arith.constant 0 : index
    %c0_22 = arith.constant 0 : index
    %27 = vector.load %arg10[%c0_21, %c0_22] : memref<160x1152xbf16, #tpu.memory_space<vmem>>, vector<160x128xbf16>
    tpu.vector_store %arg10[%c0_21, %c0_22], %26 {strides = array<i32>} : memref<160x1152xbf16, #tpu.memory_space<vmem>>, vector<160x128xbf16>,
    %c0_23 = arith.constant 0 : index
    %c1_24 = arith.constant 1 : index
    %c0_25 = arith.constant 0 : index
    %28 = vector.load %arg8[%c0_23, %c1_24, %c0_25] : memref<12x24x128xf32, #tpu.memory_space<vmem>>, vector<10x16x128xf32>
    %29 = vector.shape_cast %28 : vector<10x16x128xf32> to vector<160x128xf32>
    %30 = arith.truncf %29 : vector<160x128xf32> to vector<160x128xbf16>
    %c0_26 = arith.constant 0 : index
    %c128 = arith.constant 128 : index
    %31 = vector.load %arg10[%c0_26, %c128] : memref<160x1152xbf16, #tpu.memory_space<vmem>>, vector<160x128xbf16>
    tpu.vector_store %arg10[%c0_26, %c128], %30 {strides = array<i32>} : memref<160x1152xbf16, #tpu.memory_space<vmem>>, vector<160x128xbf16>,
    %c0_27 = arith.constant 0 : index
    %c2_28 = arith.constant 2 : index
    %c0_29 = arith.constant 0 : index
    %32 = vector.load %arg8[%c0_27, %c2_28, %c0_29] : memref<12x24x128xf32, #tpu.memory_space<vmem>>, vector<10x16x128xf32>
    %33 = vector.shape_cast %32 : vector<10x16x128xf32> to vector<160x128xf32>
    %34 = arith.truncf %33 : vector<160x128xf32> to vector<160x128xbf16>
    %c0_30 = arith.constant 0 : index
    %c256 = arith.constant 256 : index
    %35 = vector.load %arg10[%c0_30, %c256] : memref<160x1152xbf16, #tpu.memory_space<vmem>>, vector<160x128xbf16>
    tpu.vector_store %arg10[%c0_30, %c256], %34 {strides = array<i32>} : memref<160x1152xbf16, #tpu.memory_space<vmem>>, vector<160x128xbf16>,
    %c1_31 = arith.constant 1 : index
    %c0_32 = arith.constant 0 : index
    %c0_33 = arith.constant 0 : index
    %36 = vector.load %arg8[%c1_31, %c0_32, %c0_33] : memref<12x24x128xf32, #tpu.memory_space<vmem>>, vector<10x16x128xf32>
    %37 = vector.shape_cast %36 : vector<10x16x128xf32> to vector<160x128xf32>
    %38 = arith.truncf %37 : vector<160x128xf32> to vector<160x128xbf16>
    %c0_34 = arith.constant 0 : index
    %c384 = arith.constant 384 : index
    %39 = vector.load %arg10[%c0_34, %c384] : memref<160x1152xbf16, #tpu.memory_space<vmem>>, vector<160x128xbf16>
    tpu.vector_store %arg10[%c0_34, %c384], %38 {strides = array<i32>} : memref<160x1152xbf16, #tpu.memory_space<vmem>>, vector<160x128xbf16>,
    %c1_35 = arith.constant 1 : index
    %c1_36 = arith.constant 1 : index
    %c0_37 = arith.constant 0 : index
    %40 = vector.load %arg8[%c1_35, %c1_36, %c0_37] : memref<12x24x128xf32, #tpu.memory_space<vmem>>, vector<10x16x128xf32>
    %41 = vector.shape_cast %40 : vector<10x16x128xf32> to vector<160x128xf32>
    %42 = arith.truncf %41 : vector<160x128xf32> to vector<160x128xbf16>
    %c0_38 = arith.constant 0 : index
    %c512 = arith.constant 512 : index
    %43 = vector.load %arg10[%c0_38, %c512] : memref<160x1152xbf16, #tpu.memory_space<vmem>>, vector<160x128xbf16>
    tpu.vector_store %arg10[%c0_38, %c512], %42 {strides = array<i32>} : memref<160x1152xbf16, #tpu.memory_space<vmem>>, vector<160x128xbf16>,
    %c1_39 = arith.constant 1 : index
    %c2_40 = arith.constant 2 : index
    %c0_41 = arith.constant 0 : index
    %44 = vector.load %arg8[%c1_39, %c2_40, %c0_41] : memref<12x24x128xf32, #tpu.memory_space<vmem>>, vector<10x16x128xf32>
    %45 = vector.shape_cast %44 : vector<10x16x128xf32> to vector<160x128xf32>
    %46 = arith.truncf %45 : vector<160x128xf32> to vector<160x128xbf16>
    %c0_42 = arith.constant 0 : index
    %c640 = arith.constant 640 : index
    %47 = vector.load %arg10[%c0_42, %c640] : memref<160x1152xbf16, #tpu.memory_space<vmem>>, vector<160x128xbf16>
    tpu.vector_store %arg10[%c0_42, %c640], %46 {strides = array<i32>} : memref<160x1152xbf16, #tpu.memory_space<vmem>>, vector<160x128xbf16>,
    %c2_43 = arith.constant 2 : index
    %c0_44 = arith.constant 0 : index
    %c0_45 = arith.constant 0 : index
    %48 = vector.load %arg8[%c2_43, %c0_44, %c0_45] : memref<12x24x128xf32, #tpu.memory_space<vmem>>, vector<10x16x128xf32>
    %49 = vector.shape_cast %48 : vector<10x16x128xf32> to vector<160x128xf32>
    %50 = arith.truncf %49 : vector<160x128xf32> to vector<160x128xbf16>
    %c0_46 = arith.constant 0 : index
    %c768 = arith.constant 768 : index
    %51 = vector.load %arg10[%c0_46, %c768] : memref<160x1152xbf16, #tpu.memory_space<vmem>>, vector<160x128xbf16>
    tpu.vector_store %arg10[%c0_46, %c768], %50 {strides = array<i32>} : memref<160x1152xbf16, #tpu.memory_space<vmem>>, vector<160x128xbf16>,
    %c2_47 = arith.constant 2 : index
    %c1_48 = arith.constant 1 : index
    %c0_49 = arith.constant 0 : index
    %52 = vector.load %arg8[%c2_47, %c1_48, %c0_49] : memref<12x24x128xf32, #tpu.memory_space<vmem>>, vector<10x16x128xf32>
    %53 = vector.shape_cast %52 : vector<10x16x128xf32> to vector<160x128xf32>
    %54 = arith.truncf %53 : vector<160x128xf32> to vector<160x128xbf16>
    %c0_50 = arith.constant 0 : index
    %c896 = arith.constant 896 : index
    %55 = vector.load %arg10[%c0_50, %c896] : memref<160x1152xbf16, #tpu.memory_space<vmem>>, vector<160x128xbf16>
    tpu.vector_store %arg10[%c0_50, %c896], %54 {strides = array<i32>} : memref<160x1152xbf16, #tpu.memory_space<vmem>>, vector<160x128xbf16>,
    %c2_51 = arith.constant 2 : index
    %c2_52 = arith.constant 2 : index
    %c0_53 = arith.constant 0 : index
    %56 = vector.load %arg8[%c2_51, %c2_52, %c0_53] : memref<12x24x128xf32, #tpu.memory_space<vmem>>, vector<10x16x128xf32>
    %57 = vector.shape_cast %56 : vector<10x16x128xf32> to vector<160x128xf32>
    %58 = arith.truncf %57 : vector<160x128xf32> to vector<160x128xbf16>
    %c0_54 = arith.constant 0 : index
    %c1024 = arith.constant 1024 : index
    %59 = vector.load %arg10[%c0_54, %c1024] : memref<160x1152xbf16, #tpu.memory_space<vmem>>, vector<160x128xbf16>
    tpu.vector_store %arg10[%c0_54, %c1024], %58 {strides = array<i32>} : memref<160x1152xbf16, #tpu.memory_space<vmem>>, vector<160x128xbf16>,
    %c0_55 = arith.constant 0 : index
    %c0_56 = arith.constant 0 : index
    %60 = vector.load %arg10[%c0_55, %c0_56] : memref<160x1152xbf16, #tpu.memory_space<vmem>>, vector<160x1152xbf16>
    %c0_57 = arith.constant 0 : index
    %c0_58 = arith.constant 0 : index
    %61 = vector.load %arg3[%c0_57, %c0_58] : memref<1152x128xbf16, #tpu.memory_space<vmem>>, vector<1152x128xbf16>
    %cst_59 = arith.constant dense<0.000000e+00> : vector<160x128xf32>
    %62 = tpu.matmul %60, %61, %cst_59 {dimension_numbers = #tpu.dot_dimension_numbers<[1], [0], [0], [1], [0, 0, 1, 1], [], []>} : vector<160x1152xbf16>, vector<1152x128xbf16>, vector<160x128xf32> -> vector<160x128xf32>
    %c0_60 = arith.constant 0 : index
    %c0_61 = arith.constant 0 : index
    %63 = vector.load %arg4[%c0_60, %c0_61] : memref<1x128xf32, #tpu.memory_space<vmem>>, vector<1x128xf32>
    %64 = vector.broadcast %63 : vector<1x128xf32> to vector<160x128xf32>
    %65 = arith.addf %62, %64 : vector<160x128xf32>
    %cst_62 = arith.constant 0.000000e+00 : f32
    %66 = vector.broadcast %cst_62 : f32 to vector<160x128xf32>
    %67 = arith.maximumf %65, %66 : vector<160x128xf32>
    %cst_63 = arith.constant 0.000000e+00 : f32
    %68 = vector.broadcast %cst_63 : f32 to vector<10x1x128xf32>
    %c0_64 = arith.constant 0 : index
    %c0_65 = arith.constant 0 : index
    %c0_66 = arith.constant 0 : index
    %69 = vector.load %arg9[%c0_64, %c0_65, %c0_66] : memref<10x24x128xf32, #tpu.memory_space<vmem>>, vector<10x1x128xf32>
    tpu.vector_store %arg9[%c0_64, %c0_65, %c0_66], %68 {strides = array<i32>} : memref<10x24x128xf32, #tpu.memory_space<vmem>>, vector<10x1x128xf32>,
    %cst_67 = arith.constant 0.000000e+00 : f32
    %70 = vector.broadcast %cst_67 : f32 to vector<10x1x128xf32>
    %c0_68 = arith.constant 0 : index
    %c17_69 = arith.constant 17 : index
    %c0_70 = arith.constant 0 : index
    %71 = vector.load %arg9[%c0_68, %c17_69, %c0_70] : memref<10x24x128xf32, #tpu.memory_space<vmem>>, vector<10x1x128xf32>
    tpu.vector_store %arg9[%c0_68, %c17_69, %c0_70], %70 {strides = array<i32>} : memref<10x24x128xf32, #tpu.memory_space<vmem>>, vector<10x1x128xf32>,
    %72 = vector.shape_cast %67 : vector<160x128xf32> to vector<10x16x128xf32>
    %c0_71 = arith.constant 0 : index
    %c1_72 = arith.constant 1 : index
    %c0_73 = arith.constant 0 : index
    %73 = vector.load %arg9[%c0_71, %c1_72, %c0_73] : memref<10x24x128xf32, #tpu.memory_space<vmem>>, vector<10x16x128xf32>
    tpu.vector_store %arg9[%c0_71, %c1_72, %c0_73], %72 {strides = array<i32>} : memref<10x24x128xf32, #tpu.memory_space<vmem>>, vector<10x16x128xf32>,
    %c0_i32_74 = arith.constant 0 : i32
    %74 = arith.cmpi eq, %arg1, %c0_i32_74 : i32
    %75 = arith.extui %74 : i1 to i32
    %c0_i32_75 = arith.constant 0 : i32
    %76 = arith.cmpi ne, %75, %c0_i32_75 : i32
    scf.if %76 {
      %cst_134 = arith.constant 0.000000e+00 : f32
      %127 = vector.broadcast %cst_134 : f32 to vector<1x16x128xf32>
      %c0_135 = arith.constant 0 : index
      %c1_136 = arith.constant 1 : index
      %c0_137 = arith.constant 0 : index
      %128 = vector.load %arg9[%c0_135, %c1_136, %c0_137] : memref<10x24x128xf32, #tpu.memory_space<vmem>>, vector<1x16x128xf32>
      tpu.vector_store %arg9[%c0_135, %c1_136, %c0_137], %127 {strides = array<i32>} : memref<10x24x128xf32, #tpu.memory_space<vmem>>, vector<1x16x128xf32>,
    } else {
    }
    %c1_i32_76 = arith.constant 1 : i32
    %77 = arith.cmpi eq, %arg1, %c1_i32_76 : i32
    %78 = arith.extui %77 : i1 to i32
    %c0_i32_77 = arith.constant 0 : i32
    %79 = arith.cmpi ne, %78, %c0_i32_77 : i32
    scf.if %79 {
      %cst_134 = arith.constant 0.000000e+00 : f32
      %127 = vector.broadcast %cst_134 : f32 to vector<1x16x128xf32>
      %c9 = arith.constant 9 : index
      %c1_135 = arith.constant 1 : index
      %c0_136 = arith.constant 0 : index
      %128 = vector.load %arg9[%c9, %c1_135, %c0_136] : memref<10x24x128xf32, #tpu.memory_space<vmem>>, vector<1x16x128xf32>
      tpu.vector_store %arg9[%c9, %c1_135, %c0_136], %127 {strides = array<i32>} : memref<10x24x128xf32, #tpu.memory_space<vmem>>, vector<1x16x128xf32>,
    } else {
    }
    %c0_78 = arith.constant 0 : index
    %c0_79 = arith.constant 0 : index
    %c0_80 = arith.constant 0 : index
    %80 = vector.load %arg9[%c0_78, %c0_79, %c0_80] : memref<10x24x128xf32, #tpu.memory_space<vmem>>, vector<8x16x128xf32>
    %81 = vector.shape_cast %80 : vector<8x16x128xf32> to vector<128x128xf32>
    %82 = arith.truncf %81 : vector<128x128xf32> to vector<128x128xbf16>
    %c0_81 = arith.constant 0 : index
    %c0_82 = arith.constant 0 : index
    %83 = vector.load %arg10[%c0_81, %c0_82] : memref<160x1152xbf16, #tpu.memory_space<vmem>>, vector<128x128xbf16>
    tpu.vector_store %arg10[%c0_81, %c0_82], %82 {strides = array<i32>} : memref<160x1152xbf16, #tpu.memory_space<vmem>>, vector<128x128xbf16>,
    %c0_83 = arith.constant 0 : index
    %c1_84 = arith.constant 1 : index
    %c0_85 = arith.constant 0 : index
    %84 = vector.load %arg9[%c0_83, %c1_84, %c0_85] : memref<10x24x128xf32, #tpu.memory_space<vmem>>, vector<8x16x128xf32>
    %85 = vector.shape_cast %84 : vector<8x16x128xf32> to vector<128x128xf32>
    %86 = arith.truncf %85 : vector<128x128xf32> to vector<128x128xbf16>
    %c0_86 = arith.constant 0 : index
    %c128_87 = arith.constant 128 : index
    %87 = vector.load %arg10[%c0_86, %c128_87] : memref<160x1152xbf16, #tpu.memory_space<vmem>>, vector<128x128xbf16>
    tpu.vector_store %arg10[%c0_86, %c128_87], %86 {strides = array<i32>} : memref<160x1152xbf16, #tpu.memory_space<vmem>>, vector<128x128xbf16>,
    %c0_88 = arith.constant 0 : index
    %c2_89 = arith.constant 2 : index
    %c0_90 = arith.constant 0 : index
    %88 = vector.load %arg9[%c0_88, %c2_89, %c0_90] : memref<10x24x128xf32, #tpu.memory_space<vmem>>, vector<8x16x128xf32>
    %89 = vector.shape_cast %88 : vector<8x16x128xf32> to vector<128x128xf32>
    %90 = arith.truncf %89 : vector<128x128xf32> to vector<128x128xbf16>
    %c0_91 = arith.constant 0 : index
    %c256_92 = arith.constant 256 : index
    %91 = vector.load %arg10[%c0_91, %c256_92] : memref<160x1152xbf16, #tpu.memory_space<vmem>>, vector<128x128xbf16>
    tpu.vector_store %arg10[%c0_91, %c256_92], %90 {strides = array<i32>} : memref<160x1152xbf16, #tpu.memory_space<vmem>>, vector<128x128xbf16>,
    %c1_93 = arith.constant 1 : index
    %c0_94 = arith.constant 0 : index
    %c0_95 = arith.constant 0 : index
    %92 = vector.load %arg9[%c1_93, %c0_94, %c0_95] : memref<10x24x128xf32, #tpu.memory_space<vmem>>, vector<8x16x128xf32>
    %93 = vector.shape_cast %92 : vector<8x16x128xf32> to vector<128x128xf32>
    %94 = arith.truncf %93 : vector<128x128xf32> to vector<128x128xbf16>
    %c0_96 = arith.constant 0 : index
    %c384_97 = arith.constant 384 : index
    %95 = vector.load %arg10[%c0_96, %c384_97] : memref<160x1152xbf16, #tpu.memory_space<vmem>>, vector<128x128xbf16>
    tpu.vector_store %arg10[%c0_96, %c384_97], %94 {strides = array<i32>} : memref<160x1152xbf16, #tpu.memory_space<vmem>>, vector<128x128xbf16>,
    %c1_98 = arith.constant 1 : index
    %c1_99 = arith.constant 1 : index
    %c0_100 = arith.constant 0 : index
    %96 = vector.load %arg9[%c1_98, %c1_99, %c0_100] : memref<10x24x128xf32, #tpu.memory_space<vmem>>, vector<8x16x128xf32>
    %97 = vector.shape_cast %96 : vector<8x16x128xf32> to vector<128x128xf32>
    %98 = arith.truncf %97 : vector<128x128xf32> to vector<128x128xbf16>
    %c0_101 = arith.constant 0 : index
    %c512_102 = arith.constant 512 : index
    %99 = vector.load %arg10[%c0_101, %c512_102] : memref<160x1152xbf16, #tpu.memory_space<vmem>>, vector<128x128xbf16>
    tpu.vector_store %arg10[%c0_101, %c512_102], %98 {strides = array<i32>} : memref<160x1152xbf16, #tpu.memory_space<vmem>>, vector<128x128xbf16>,
    %c1_103 = arith.constant 1 : index
    %c2_104 = arith.constant 2 : index
    %c0_105 = arith.constant 0 : index
    %100 = vector.load %arg9[%c1_103, %c2_104, %c0_105] : memref<10x24x128xf32, #tpu.memory_space<vmem>>, vector<8x16x128xf32>
    %101 = vector.shape_cast %100 : vector<8x16x128xf32> to vector<128x128xf32>
    %102 = arith.truncf %101 : vector<128x128xf32> to vector<128x128xbf16>
    %c0_106 = arith.constant 0 : index
    %c640_107 = arith.constant 640 : index
    %103 = vector.load %arg10[%c0_106, %c640_107] : memref<160x1152xbf16, #tpu.memory_space<vmem>>, vector<128x128xbf16>
    tpu.vector_store %arg10[%c0_106, %c640_107], %102 {strides = array<i32>} : memref<160x1152xbf16, #tpu.memory_space<vmem>>, vector<128x128xbf16>,
    %c2_108 = arith.constant 2 : index
    %c0_109 = arith.constant 0 : index
    %c0_110 = arith.constant 0 : index
    %104 = vector.load %arg9[%c2_108, %c0_109, %c0_110] : memref<10x24x128xf32, #tpu.memory_space<vmem>>, vector<8x16x128xf32>
    %105 = vector.shape_cast %104 : vector<8x16x128xf32> to vector<128x128xf32>
    %106 = arith.truncf %105 : vector<128x128xf32> to vector<128x128xbf16>
    %c0_111 = arith.constant 0 : index
    %c768_112 = arith.constant 768 : index
    %107 = vector.load %arg10[%c0_111, %c768_112] : memref<160x1152xbf16, #tpu.memory_space<vmem>>, vector<128x128xbf16>
    tpu.vector_store %arg10[%c0_111, %c768_112], %106 {strides = array<i32>} : memref<160x1152xbf16, #tpu.memory_space<vmem>>, vector<128x128xbf16>,
    %c2_113 = arith.constant 2 : index
    %c1_114 = arith.constant 1 : index
    %c0_115 = arith.constant 0 : index
    %108 = vector.load %arg9[%c2_113, %c1_114, %c0_115] : memref<10x24x128xf32, #tpu.memory_space<vmem>>, vector<8x16x128xf32>
    %109 = vector.shape_cast %108 : vector<8x16x128xf32> to vector<128x128xf32>
    %110 = arith.truncf %109 : vector<128x128xf32> to vector<128x128xbf16>
    %c0_116 = arith.constant 0 : index
    %c896_117 = arith.constant 896 : index
    %111 = vector.load %arg10[%c0_116, %c896_117] : memref<160x1152xbf16, #tpu.memory_space<vmem>>, vector<128x128xbf16>
    tpu.vector_store %arg10[%c0_116, %c896_117], %110 {strides = array<i32>} : memref<160x1152xbf16, #tpu.memory_space<vmem>>, vector<128x128xbf16>,
    %c2_118 = arith.constant 2 : index
    %c2_119 = arith.constant 2 : index
    %c0_120 = arith.constant 0 : index
    %112 = vector.load %arg9[%c2_118, %c2_119, %c0_120] : memref<10x24x128xf32, #tpu.memory_space<vmem>>, vector<8x16x128xf32>
    %113 = vector.shape_cast %112 : vector<8x16x128xf32> to vector<128x128xf32>
    %114 = arith.truncf %113 : vector<128x128xf32> to vector<128x128xbf16>
    %c0_121 = arith.constant 0 : index
    %c1024_122 = arith.constant 1024 : index
    %115 = vector.load %arg10[%c0_121, %c1024_122] : memref<160x1152xbf16, #tpu.memory_space<vmem>>, vector<128x128xbf16>
    tpu.vector_store %arg10[%c0_121, %c1024_122], %114 {strides = array<i32>} : memref<160x1152xbf16, #tpu.memory_space<vmem>>, vector<128x128xbf16>,
    %c0_123 = arith.constant 0 : index
    %c0_124 = arith.constant 0 : index
    %116 = vector.load %arg10[%c0_123, %c0_124] : memref<160x1152xbf16, #tpu.memory_space<vmem>>, vector<128x1152xbf16>
    %c0_125 = arith.constant 0 : index
    %c0_126 = arith.constant 0 : index
    %117 = vector.load %arg5[%c0_125, %c0_126] : memref<1152x128xbf16, #tpu.memory_space<vmem>>, vector<1152x128xbf16>
    %cst_127 = arith.constant dense<0.000000e+00> : vector<128x128xf32>
    %118 = tpu.matmul %116, %117, %cst_127 {dimension_numbers = #tpu.dot_dimension_numbers<[1], [0], [0], [1], [0, 0, 1, 1], [], []>} : vector<128x1152xbf16>, vector<1152x128xbf16>, vector<128x128xf32> -> vector<128x128xf32>
    %c0_128 = arith.constant 0 : index
    %c0_129 = arith.constant 0 : index
    %119 = vector.load %arg6[%c0_128, %c0_129] : memref<1x128xf32, #tpu.memory_space<vmem>>, vector<1x128xf32>
    %120 = vector.broadcast %119 : vector<1x128xf32> to vector<128x128xf32>
    %121 = arith.addf %118, %120 : vector<128x128xf32>
    %cst_130 = arith.constant 0.000000e+00 : f32
    %122 = vector.broadcast %cst_130 : f32 to vector<128x128xf32>
    %123 = arith.maximumf %121, %122 : vector<128x128xf32>
    %c0_131 = arith.constant 0 : index
    %c0_132 = arith.constant 0 : index
    %c0_133 = arith.constant 0 : index
    %124 = vector.load %arg7[%c0_131, %c0_132, %c0_133] : memref<1x128x128xf32, #tpu.memory_space<vmem>>, vector<1x128x128xf32>
    %125 = vector.shape_cast %124 : vector<1x128x128xf32> to vector<128x128xf32>
    %126 = vector.shape_cast %123 : vector<128x128xf32> to vector<1x128x128xf32>
    tpu.vector_store %arg7[%c0_131, %c0_132, %c0_133], %126 {strides = array<i32>} : memref<1x128x128xf32, #tpu.memory_space<vmem>>, vector<1x128x128xf32>,
    return
  }
  func.func @transform_0(%arg0: i32, %arg1: i32) -> (i32, i32, i32, i32) {
    %c0_i32 = arith.constant 0 : i32
    %c0_i32_0 = arith.constant 0 : i32
    %c0_i32_1 = arith.constant 0 : i32
    %c0_i32_2 = arith.constant 0 : i32
    return %arg0, %c0_i32, %c0_i32_0, %c0_i32_1 : i32, i32, i32, i32
  }
  func.func @transform_1(%arg0: i32, %arg1: i32) -> (i32, i32) {
    %c0_i32 = arith.constant 0 : i32
    %c0_i32_0 = arith.constant 0 : i32
    %c0_i32_1 = arith.constant 0 : i32
    return %c0_i32, %c0_i32_0 : i32, i32
  }
  func.func @transform_2(%arg0: i32, %arg1: i32) -> (i32, i32) {
    %c0_i32 = arith.constant 0 : i32
    %c0_i32_0 = arith.constant 0 : i32
    %c0_i32_1 = arith.constant 0 : i32
    return %c0_i32, %c0_i32_0 : i32, i32
  }
  func.func @transform_3(%arg0: i32, %arg1: i32) -> (i32, i32) {
    %c0_i32 = arith.constant 0 : i32
    %c0_i32_0 = arith.constant 0 : i32
    %c0_i32_1 = arith.constant 0 : i32
    return %c0_i32, %c0_i32_0 : i32, i32
  }
  func.func @transform_4(%arg0: i32, %arg1: i32) -> (i32, i32) {
    %c0_i32 = arith.constant 0 : i32
    %c0_i32_0 = arith.constant 0 : i32
    %c0_i32_1 = arith.constant 0 : i32
    return %c0_i32, %c0_i32_0 : i32, i32
  }
  func.func @transform_5(%arg0: i32, %arg1: i32) -> (i32, i32, i32) {
    %c0_i32 = arith.constant 0 : i32
    %c0_i32_0 = arith.constant 0 : i32
    return %arg0, %arg1, %c0_i32 : i32, i32, i32
  }
}

</mosaic_0001>

<llo_original>
// kernel: tpu_custom_call.1
$region0: #{tpu_custom_call.1}
  #allocation0 [shape = 'u32[]', space=smem, size = 0x4, offset = 0x4, fixed_abs, tag = 'smem constant byte address 0x4 - core index']
  #allocation1 [shape = 'u32[144,128]{1,0:T(1,128)}', space=vmem, size = 0x12000, scoped, tag = 'internal scratch']
  #allocation2 [shape = 'f32[12,24,128]{2,1,0:T(8,128)}', space=vmem, size = 0x24000, scoped, tag = 'scratch operand']
  #allocation3 [shape = 'f32[10,24,128]{2,1,0:T(8,128)}', space=vmem, size = 0x1e000, scoped, tag = 'scratch operand']
  #allocation4 [shape = 'bf16[160,1152]{1,0:T(16,128)(2,1)}', space=vmem, size = 0x5a000, scoped, tag = 'scratch operand']
  %s0 = inlined_call_operand.vmem [shape: f32[2,16,16,4], index: 0, kind: input, shape index: {}]
  %s1 = inlined_call_operand.vmem [shape: bf16[1152,128], index: 1, kind: input, shape index: {}]
  %s2 = inlined_call_operand.vmem [shape: f32[1,128], index: 2, kind: input, shape index: {}]
  %s3 = inlined_call_operand.hbm [shape: bf16[1152,128], index: 3, kind: input, shape index: {}]
  %s4 = inlined_call_operand.vmem [shape: f32[1,128], index: 4, kind: input, shape index: {}]
  %s5 = inlined_call_operand.hbm [shape: f32[2,256,128], index: 5, kind: output, shape index: {}]
  %s6 = sld [smem:[#allocation0]]
  $region81: #{tpu_custom_call.1} parent=0
    _
  %s8 = ssub.s32 1, %s6
  %s9 = scalar_select 0, %s8, %s6
  $region1: #{tpu_custom_call.1} parent=0
    #allocation5 [shape = 'u8[294912]{0}', space=vmem, size = 0x48000, scoped, tag = 'input window, operand 3, single buffered']
    #allocation6 [shape = 's32[2]{0}', space=sflag, size = 0x8, scoped, tag = 'scoped memory for tpu_custom_call.1']
    #allocation7 [shape = 's32[2]{0}', space=sflag, size = 0x8, scoped, tag = 'scoped memory for tpu_custom_call.1']
    #allocation8 [shape = 'u8[131072]{0}', space=vmem, size = 0x20000, scoped, tag = 'output window, operand 0']
    %10 = vsyncpa [#allocation6], 0
    %11 = vsyncpa [#allocation7], 0
    %s12 = scalar_lea.sflag [#allocation7], 1
    %13 = vsyncpa %s12, 0
    loop: start=0, step=1, limit=6
    $region2: #{tpu_custom_call.1} parent=1 // loop_pre_header
      _
    $region3: #{tpu_custom_call.1} parent=1 // loop_header
      %s15 = sphi 0, %s19
      %p16 = scmp.ge.s32.totalorder %s15, 6
      %s22 = sphi 0, %s34
      %s23 = sphi 0, %s30
      %s24 = sphi 0, %s22
      %s25 = sphi 0, %s23
      %s26 = sphi 0, %s24
      %s27 = sphi 0, %s25
      %s37 = sphi 0, %s39
      %s40 = sphi 0, %s37
      %s41 = sphi 0, %s40
      %s57 = sphi 0, %s41
      %s61 = sphi 0, %s61
      %s63 = sphi 0, %s61
      %s64 = sphi 0, %s63
      %s78 = sphi 0, %s64
      %s82 = sphi 0, %s82
      %s84 = sphi 0, %s82
      %s85 = sphi 0, %s84
      %s99 = sphi 0, %s85
      %s103 = sphi 0, %s103
      %s105 = sphi 0, %s103
      %s106 = sphi 0, %s105
      %s120 = sphi 0, %s106
      %s124 = sphi 0, %s124
      %s126 = sphi 0, %s124
      %s127 = sphi 0, %s126
      %s141 = sphi 0, %s127
      %s149 = sphi 0, %s151
      %s152 = sphi 0, %s149
      %s153 = sphi 0, %s152
      %s169 = sphi 0, %s153
    $region4: #{tpu_custom_call.1} parent=1 // loop_header_branch
      %18 = sbr.rel (%p16) target = $region8
    $region5: #{tpu_custom_call.1} parent=1 // loop_body
      %s20 = ssub.s32 %s15, 1
      %s21 = ssub.s32 %s15, 2
      %s28 = sadd.s32 1, %s23
      %p29 = scmp.ge.s32.totalorder %s28, 2
      %s30 = scalar_select %p29, 0, %s28
      %s31 = sadd.s32 1, %s22
      %s32 = scalar_select %p29, %s31, %s22
      %p33 = scmp.ge.s32.totalorder %s32, 2
      %s34 = scalar_select %p33, 0, %s32
      %s35 = ssub.s32 %s22, %s34
      %p36 = scmp.eq.s32.totalorder %s35, 0
      %s38 = sadd.s32 %s37, 1
      %s39 = scalar_select %p36, %s37, %s38
      %p42 = pneg %p36
      %p43 = scmp.eq.s32.totalorder %s15, 3
      %p44 = por %p42, %p43
      %p45 = scmp.ne.s32.totalorder %s37, %s40
      %p46 = scmp.eq.s32.totalorder %s15, 0
      %p47 = por %p45, %p46
      %p48 = scmp.ne.s32.totalorder %s37, %s40
      %p49 = scmp.eq.s32.totalorder %s20, 3
      %p50 = por %p48, %p49
      %p51 = scmp.ne.s32.totalorder %s40, %s41
      %p52 = scmp.eq.s32.totalorder %s20, 0
      %p53 = por %p51, %p52
      %p54 = scmp.ne.s32.totalorder %s40, %s41
      %p55 = scmp.eq.s32.totalorder %s21, 3
      %p56 = por %p54, %p55
      %p58 = scmp.ne.s32.totalorder %s41, %s57
      %p59 = scmp.eq.s32.totalorder %s21, 0
      %p60 = por %p58, %p59
      %s62 = sadd.s32 %s61, 1
      %p65 = scmp.eq.s32.totalorder %s15, 3
      %p66 = scmp.ne.s32.totalorder %s61, %s63
      %p67 = scmp.eq.s32.totalorder %s15, 0
      %p68 = por %p66, %p67
      %p69 = scmp.ne.s32.totalorder %s61, %s63
      %p70 = scmp.eq.s32.totalorder %s20, 3
      %p71 = por %p69, %p70
      %p72 = scmp.ne.s32.totalorder %s63, %s64
      %p73 = scmp.eq.s32.totalorder %s20, 0
      %p74 = por %p72, %p73
      %p75 = scmp.ne.s32.totalorder %s63, %s64
      %p76 = scmp.eq.s32.totalorder %s21, 3
      %p77 = por %p75, %p76
      %p79 = scmp.ne.s32.totalorder %s64, %s78
      %p80 = scmp.eq.s32.totalorder %s21, 0
      %p81 = por %p79, %p80
      %s83 = sadd.s32 %s82, 1
      %p86 = scmp.eq.s32.totalorder %s15, 3
      %p87 = scmp.ne.s32.totalorder %s82, %s84
      %p88 = scmp.eq.s32.totalorder %s15, 0
      %p89 = por %p87, %p88
      %p90 = scmp.ne.s32.totalorder %s82, %s84
      %p91 = scmp.eq.s32.totalorder %s20, 3
      %p92 = por %p90, %p91
      %p93 = scmp.ne.s32.totalorder %s84, %s85
      %p94 = scmp.eq.s32.totalorder %s20, 0
      %p95 = por %p93, %p94
      %p96 = scmp.ne.s32.totalorder %s84, %s85
      %p97 = scmp.eq.s32.totalorder %s21, 3
      %p98 = por %p96, %p97
      %p100 = scmp.ne.s32.totalorder %s85, %s99
      %p101 = scmp.eq.s32.totalorder %s21, 0
      %p102 = por %p100, %p101
      %s104 = sadd.s32 %s103, 1
      %p107 = scmp.eq.s32.totalorder %s15, 3
      %p108 = scmp.ne.s32.totalorder %s103, %s105
      %p109 = scmp.eq.s32.totalorder %s15, 0
      %p110 = por %p108, %p109
      %p111 = scmp.ne.s32.totalorder %s103, %s105
      %p112 = scmp.eq.s32.totalorder %s20, 3
      %p113 = por %p111, %p112
      %p114 = scmp.ne.s32.totalorder %s105, %s106
      %p115 = scmp.eq.s32.totalorder %s20, 0
      %p116 = por %p114, %p115
      %p117 = scmp.ne.s32.totalorder %s105, %s106
      %p118 = scmp.eq.s32.totalorder %s21, 3
      %p119 = por %p117, %p118
      %p121 = scmp.ne.s32.totalorder %s106, %s120
      %p122 = scmp.eq.s32.totalorder %s21, 0
      %p123 = por %p121, %p122
      %s125 = sadd.s32 %s124, 1
      %p128 = scmp.eq.s32.totalorder %s15, 3
      %p129 = scmp.ne.s32.totalorder %s124, %s126
      %p130 = scmp.eq.s32.totalorder %s15, 0
      %p131 = por %p129, %p130
      %p132 = scmp.ne.s32.totalorder %s124, %s126
      %p133 = scmp.eq.s32.totalorder %s20, 3
      %p134 = por %p132, %p133
      %p135 = scmp.ne.s32.totalorder %s126, %s127
      %p136 = scmp.eq.s32.totalorder %s20, 0
      %p137 = por %p135, %p136
      %p138 = scmp.ne.s32.totalorder %s126, %s127
      %p139 = scmp.eq.s32.totalorder %s21, 3
      %p140 = por %p138, %p139
      %p142 = scmp.ne.s32.totalorder %s127, %s141
      %p143 = scmp.eq.s32.totalorder %s21, 0
      %p144 = por %p142, %p143
      %s145 = ssub.s32 %s22, %s34
      %s146 = ssub.s32 %s23, %s30
      %s147 = sor.u32 %s145, %s146
      %p148 = scmp.eq.s32.totalorder %s147, 0
      %s150 = sadd.s32 %s149, 1
      %s151 = scalar_select %p148, %s149, %s150
      %p154 = pneg %p148
      %p155 = scmp.eq.s32.totalorder %s15, 3
      %p156 = por %p154, %p155
      %p157 = scmp.ne.s32.totalorder %s149, %s152
      %p158 = scmp.eq.s32.totalorder %s15, 0
      %p159 = por %p157, %p158
      %p160 = scmp.ne.s32.totalorder %s149, %s152
      %p161 = scmp.eq.s32.totalorder %s20, 3
      %p162 = por %p160, %p161
      %p163 = scmp.ne.s32.totalorder %s152, %s153
      %p164 = scmp.eq.s32.totalorder %s20, 0
      %p165 = por %p163, %p164
      %p166 = scmp.ne.s32.totalorder %s152, %s153
      %p167 = scmp.eq.s32.totalorder %s21, 3
      %p168 = por %p166, %p167
      %p170 = scmp.ne.s32.totalorder %s153, %s169
      %p171 = scmp.eq.s32.totalorder %s21, 0
      %p172 = por %p170, %p171
      %p173 = scmp.le.s32.totalorder 1, %s15
      %p174 = scmp.lt.s32.totalorder %s15, 5
      %p175 = pnand %p173, %p174
      %p176 = pneg %p175
      // Predicated region
      $region9: #{tpu_custom_call.1} parent=5 // pred_check
        _
      $region10: #{tpu_custom_call.1} parent=5 // pred_check_branch
        %178 = sbr.rel (%p175) target = $region12
      $region11: #{tpu_custom_call.1} parent=5 // pred_region
        %s179 = ssub.s32 %s15, 1
        // Predicated region
        $region13: #{tpu_custom_call.1} parent=11 // pred_check
          %p180 = pneg %p74
        $region14: #{tpu_custom_call.1} parent=11 // pred_check_branch
          %182 = sbr.rel (%p180) target = $region16
        $region15: #{tpu_custom_call.1} parent=11 // pred_region
          _
        $region16: #{tpu_custom_call.1} parent=11 // pred_fallthru
          _
        // Predicated region
        $region17: #{tpu_custom_call.1} parent=11 // pred_check
          %p183 = pneg %p95
        $region18: #{tpu_custom_call.1} parent=11 // pred_check_branch
          %185 = sbr.rel (%p183) target = $region20
        $region19: #{tpu_custom_call.1} parent=11 // pred_region
          _
        $region20: #{tpu_custom_call.1} parent=11 // pred_fallthru
          _
        // Predicated region
        $region21: #{tpu_custom_call.1} parent=11 // pred_check
          %p186 = pneg %p116
        $region22: #{tpu_custom_call.1} parent=11 // pred_check_branch
          %188 = sbr.rel (%p186) target = $region24
        $region23: #{tpu_custom_call.1} parent=11 // pred_region
          %s190 = ssub.s32 9216, 9216
          %191 = vsyncadd [#allocation6], %s190
          %s192 = sshll.u32 [#allocation5], 4
          %s193 = int_to_ptr.vmem [resolvable:$true] %s192
          %198 = dma.hbm_to_vmem [thread:$0]  %s3, 9216, %s193, [#allocation6], 64, 64, 4
        $region24: #{tpu_custom_call.1} parent=11 // pred_fallthru
          _
        // Predicated region
        $region25: #{tpu_custom_call.1} parent=11 // pred_check
          %p199 = pneg %p137
        $region26: #{tpu_custom_call.1} parent=11 // pred_check_branch
          %201 = sbr.rel (%p199) target = $region28
        $region27: #{tpu_custom_call.1} parent=11 // pred_region
          _
        $region28: #{tpu_custom_call.1} parent=11 // pred_fallthru
          _
      $region12: #{tpu_custom_call.1} parent=5 // pred_fallthru
        _
      %p202 = scmp.lt.s32.totalorder %s15, 4
      // Predicated region
      $region29: #{tpu_custom_call.1} parent=5 // pred_check
        %p203 = pneg %p202
      $region30: #{tpu_custom_call.1} parent=5 // pred_check_branch
        %205 = sbr.rel (%p203) target = $region32
      $region31: #{tpu_custom_call.1} parent=5 // pred_region
        // Predicated region
        $region33: #{tpu_custom_call.1} parent=31 // pred_check
          %p206 = pneg %p47
        $region34: #{tpu_custom_call.1} parent=31 // pred_check_branch
          %208 = sbr.rel (%p206) target = $region36
        $region35: #{tpu_custom_call.1} parent=31 // pred_region
          %p209 = scmp.lt.s32.totalorder %s22, 1
          %s210 = scalar_select %p209, %s22, 1
          %s211 = smul.addr %s210, 32
          %s212 = smul.addr %s211, 8
          %s213 = scalar_lea.vmem %s0, %s212
        $region36: #{tpu_custom_call.1} parent=31 // pred_fallthru
          _
      $region32: #{tpu_custom_call.1} parent=5 // pred_fallthru
        _
      %p214 = scmp.le.s32.totalorder 1, %s15
      %p215 = scmp.lt.s32.totalorder %s15, 5
      %p216 = pnand %p214, %p215
      %p217 = pneg %p216
      // Predicated region
      $region37: #{tpu_custom_call.1} parent=5 // pred_check
        _
      $region38: #{tpu_custom_call.1} parent=5 // pred_check_branch
        %219 = sbr.rel (%p216) target = $region40
      $region39: #{tpu_custom_call.1} parent=5 // pred_region
        %s220 = ssub.s32 %s15, 1
        // Predicated region
        $region41: #{tpu_custom_call.1} parent=39 // pred_check
          %p221 = pneg %p116
        $region42: #{tpu_custom_call.1} parent=39 // pred_check_branch
          %223 = sbr.rel (%p221) target = $region44
        $region43: #{tpu_custom_call.1} parent=39 // pred_region
          %224 = dma.done [#allocation6], 9216
        $region44: #{tpu_custom_call.1} parent=39 // pred_fallthru
          _
        %p225 = scmp.lt.s32.totalorder %s24, 1
        %s226 = scalar_select %p225, %s24, 1
        %s227 = smul.addr %s226, 32
        %s228 = smul.addr %s227, 8
        %s229 = scalar_lea.vmem %s0, %s228
        %p230 = pneg %p53
        %p231 = pneg %p50
        %p232 = pneg %p74
        %p233 = pneg %p71
        %p234 = pneg %p95
        %p235 = pneg %p92
        %p236 = pneg %p116
        %p237 = pneg %p113
        %p238 = pneg %p137
        %p239 = pneg %p134
        %p240 = pneg %p165
        %p241 = pneg %p162
        %s242 = sand.u32 %s152, 1
        %s243 = scalar_lea.sflag [#allocation7], %s242
        %s244 = sand.u32 %s152, 1
        %s245 = smul.addr %s244, 128
        %s246 = scalar_lea.vmem [#allocation8], %s245
        %p247 = scmp.lt.s32.totalorder %s24, 1
        %s248 = scalar_select %p247, %s24, 1
        %s249 = smul.addr %s248, 32
        %s250 = smul.addr %s249, 8
        %s251 = scalar_lea.vmem %s0, %s250
        %s252 = smul.u32 16, %s25
        %s254 = smul.u32 %s25, 8
        %255 = vst [vmem:[#allocation2] sm:$0x1] 0.0
        %256 = vst [vmem:[#allocation2 + $0x18] sm:$0x1] 0.0
        %257 = vst [vmem:[#allocation2 + $0x30] sm:$0x1] 0.0
        %258 = vst [vmem:[#allocation2 + $0x48] sm:$0x1] 0.0
        %259 = vst [vmem:[#allocation2 + $0x60] sm:$0x1] 0.0
        %260 = vst [vmem:[#allocation2 + $0x78] sm:$0x1] 0.0
        %261 = vst [vmem:[#allocation2 + $0x90] sm:$0x1] 0.0
        %262 = vst [vmem:[#allocation2 + $0xa8] sm:$0x1] 0.0
        %263 = vst [vmem:[#allocation2 + $0xc0] sm:$0x1] 0.0
        %264 = vst [vmem:[#allocation2 + $0xd8] sm:$0x1] 0.0
        %265 = vst [vmem:[#allocation2 + $0xf0] sm:$0x1] 0.0
        %266 = vst [vmem:[#allocation2 + $0x108] sm:$0x1] 0.0
        %267 = vst [vmem:[#allocation2 + $0x11] sm:$0x1] 0.0
        %268 = vst [vmem:[#allocation2 + $0x29] sm:$0x1] 0.0
        %269 = vst [vmem:[#allocation2 + $0x41] sm:$0x1] 0.0
        %270 = vst [vmem:[#allocation2 + $0x59] sm:$0x1] 0.0
        %271 = vst [vmem:[#allocation2 + $0x71] sm:$0x1] 0.0
        %272 = vst [vmem:[#allocation2 + $0x89] sm:$0x1] 0.0
        %273 = vst [vmem:[#allocation2 + $0xa1] sm:$0x1] 0.0
        %274 = vst [vmem:[#allocation2 + $0xb9] sm:$0x1] 0.0
        %275 = vst [vmem:[#allocation2 + $0xd1] sm:$0x1] 0.0
        %276 = vst [vmem:[#allocation2 + $0xe9] sm:$0x1] 0.0
        %277 = vst [vmem:[#allocation2 + $0x101] sm:$0x1] 0.0
        %278 = vst [vmem:[#allocation2 + $0x119] sm:$0x1] 0.0
        %vm279 = vcmask 1047584
        %280 = vst.msk [vmem:[#allocation2 + $0x1] sm:$0xff] %vm279, 0.0
        %281 = vst.msk [vmem:[#allocation2 + $0x9] sm:$0xff] %vm279, 0.0
        %282 = vst.msk [vmem:[#allocation2 + $0x19] sm:$0xff] %vm279, 0.0
        %283 = vst.msk [vmem:[#allocation2 + $0x21] sm:$0xff] %vm279, 0.0
        %284 = vst.msk [vmem:[#allocation2 + $0x31] sm:$0xff] %vm279, 0.0
        %285 = vst.msk [vmem:[#allocation2 + $0x39] sm:$0xff] %vm279, 0.0
        %286 = vst.msk [vmem:[#allocation2 + $0x49] sm:$0xff] %vm279, 0.0
        %287 = vst.msk [vmem:[#allocation2 + $0x51] sm:$0xff] %vm279, 0.0
        %288 = vst.msk [vmem:[#allocation2 + $0x61] sm:$0xff] %vm279, 0.0
        %289 = vst.msk [vmem:[#allocation2 + $0x69] sm:$0xff] %vm279, 0.0
        %290 = vst.msk [vmem:[#allocation2 + $0x79] sm:$0xff] %vm279, 0.0
        %291 = vst.msk [vmem:[#allocation2 + $0x81] sm:$0xff] %vm279, 0.0
        %292 = vst.msk [vmem:[#allocation2 + $0x91] sm:$0xff] %vm279, 0.0
        %293 = vst.msk [vmem:[#allocation2 + $0x99] sm:$0xff] %vm279, 0.0
        %294 = vst.msk [vmem:[#allocation2 + $0xa9] sm:$0xff] %vm279, 0.0
        %295 = vst.msk [vmem:[#allocation2 + $0xb1] sm:$0xff] %vm279, 0.0
        %296 = vst.msk [vmem:[#allocation2 + $0xc1] sm:$0xff] %vm279, 0.0
        %297 = vst.msk [vmem:[#allocation2 + $0xc9] sm:$0xff] %vm279, 0.0
        %298 = vst.msk [vmem:[#allocation2 + $0xd9] sm:$0xff] %vm279, 0.0
        %299 = vst.msk [vmem:[#allocation2 + $0xe1] sm:$0xff] %vm279, 0.0
        %300 = vst.msk [vmem:[#allocation2 + $0xf1] sm:$0xff] %vm279, 0.0
        %301 = vst.msk [vmem:[#allocation2 + $0xf9] sm:$0xff] %vm279, 0.0
        %302 = vst.msk [vmem:[#allocation2 + $0x109] sm:$0xff] %vm279, 0.0
        %303 = vst.msk [vmem:[#allocation2 + $0x111] sm:$0xff] %vm279, 0.0
        %s304 = smul.u32 %s254, 16
        %s305 = scalar_lea.vmem %s251, %s304
        %v306 = vld [vmem:[%s305] sm:$0xff]
        %v307 = vld [vmem:[%s305 + $0x8] sm:$0xff]
        %v308 = vld [vmem:[%s305 + $0x10] sm:$0xff]
        %v309 = vld [vmem:[%s305 + $0x18] sm:$0xff]
        %v310 = vld [vmem:[%s305 + $0x20] sm:$0xff]
        %v311 = vld [vmem:[%s305 + $0x28] sm:$0xff]
        %v312 = vld [vmem:[%s305 + $0x30] sm:$0xff]
        %v313 = vld [vmem:[%s305 + $0x38] sm:$0xff]
        %v314 = vld [vmem:[%s305 + $0x40] sm:$0xff]
        %v315 = vld [vmem:[%s305 + $0x48] sm:$0xff]
        %v316 = vld [vmem:[%s305 + $0x50] sm:$0xff]
        %v317 = vld [vmem:[%s305 + $0x58] sm:$0xff]
        %v318 = vld [vmem:[%s305 + $0x60] sm:$0xff]
        %v319 = vld [vmem:[%s305 + $0x68] sm:$0xff]
        %v320 = vld [vmem:[%s305 + $0x70] sm:$0xff]
        %v321 = vld [vmem:[%s305 + $0x78] sm:$0xff]
        %s322 = scalar_lea.vmem [#allocation2], 48
        %vm323 = vcmask 31744
        %324 = vst.msk [vmem:[%s322 + $0x1] sm:$0xff] %vm323, %v306
        %325 = vst.msk [vmem:[%s322 + $0x9] sm:$0xff] %vm323, %v307
        %326 = vst.msk [vmem:[%s322 + $0x19] sm:$0xff] %vm323, %v308
        %327 = vst.msk [vmem:[%s322 + $0x21] sm:$0xff] %vm323, %v309
        %328 = vst.msk [vmem:[%s322 + $0x31] sm:$0xff] %vm323, %v310
        %329 = vst.msk [vmem:[%s322 + $0x39] sm:$0xff] %vm323, %v311
        %330 = vst.msk [vmem:[%s322 + $0x49] sm:$0xff] %vm323, %v312
        %331 = vst.msk [vmem:[%s322 + $0x51] sm:$0xff] %vm323, %v313
        %332 = vst.msk [vmem:[%s322 + $0x61] sm:$0xff] %vm323, %v314
        %333 = vst.msk [vmem:[%s322 + $0x69] sm:$0xff] %vm323, %v315
        %334 = vst.msk [vmem:[%s322 + $0x79] sm:$0xff] %vm323, %v316
        %335 = vst.msk [vmem:[%s322 + $0x81] sm:$0xff] %vm323, %v317
        %336 = vst.msk [vmem:[%s322 + $0x91] sm:$0xff] %vm323, %v318
        %337 = vst.msk [vmem:[%s322 + $0x99] sm:$0xff] %vm323, %v319
        %338 = vst.msk [vmem:[%s322 + $0xa9] sm:$0xff] %vm323, %v320
        %339 = vst.msk [vmem:[%s322 + $0xb1] sm:$0xff] %vm323, %v321
        %p340 = scmp.gt.s32.totalorder %s25, 0
        // Predicated region
        $region45: #{tpu_custom_call.1} parent=39 // pred_check
          %p341 = pneg %p340
        $region46: #{tpu_custom_call.1} parent=39 // pred_check_branch
          %343 = sbr.rel (%p341) target = $region48
        $region47: #{tpu_custom_call.1} parent=39 // pred_region
          %s344 = ssub.s32 %s254, 2
          %s345 = smul.u32 %s344, 16
          %s346 = scalar_lea.vmem %s251, %s345
          %v347 = vld [vmem:[%s346] sm:$0xff]
          %v348 = vld [vmem:[%s346 + $0x8] sm:$0xff]
          %v349 = vld [vmem:[%s346 + $0x10] sm:$0xff]
          %v350 = vld [vmem:[%s346 + $0x18] sm:$0xff]
          %351 = vst.msk [vmem:[#allocation2 + $0x1] sm:$0xff] %vm323, %v347
          %352 = vst.msk [vmem:[#allocation2 + $0x9] sm:$0xff] %vm323, %v348
          %353 = vst.msk [vmem:[#allocation2 + $0x19] sm:$0xff] %vm323, %v349
          %354 = vst.msk [vmem:[#allocation2 + $0x21] sm:$0xff] %vm323, %v350
        $region48: #{tpu_custom_call.1} parent=39 // pred_fallthru
          _
        %p355 = scmp.eq.s32.totalorder %s25, 0
        // Predicated region
        $region49: #{tpu_custom_call.1} parent=39 // pred_check
          %p356 = pneg %p355
        $region50: #{tpu_custom_call.1} parent=39 // pred_check_branch
          %358 = sbr.rel (%p356) target = $region52
        $region51: #{tpu_custom_call.1} parent=39 // pred_region
          %359 = vst.msk [vmem:[#allocation2 + $0x1] sm:$0xff] %vm323, 0.0
          %360 = vst.msk [vmem:[#allocation2 + $0x9] sm:$0xff] %vm323, 0.0
          %361 = vst.msk [vmem:[#allocation2 + $0x19] sm:$0xff] %vm323, 0.0
          %362 = vst.msk [vmem:[#allocation2 + $0x21] sm:$0xff] %vm323, 0.0
        $region52: #{tpu_custom_call.1} parent=39 // pred_fallthru
          _
        %p363 = scmp.lt.s32.totalorder %s25, 1
        // Predicated region
        $region53: #{tpu_custom_call.1} parent=39 // pred_check
          %p364 = pneg %p363
        $region54: #{tpu_custom_call.1} parent=39 // pred_check_branch
          %366 = sbr.rel (%p364) target = $region56
        $region55: #{tpu_custom_call.1} parent=39 // pred_region
          %s367 = sadd.s32 %s254, 8
          %s368 = smul.u32 %s367, 16
          %s369 = scalar_lea.vmem %s251, %s368
          %v370 = vld [vmem:[%s369] sm:$0xff]
          %v371 = vld [vmem:[%s369 + $0x8] sm:$0xff]
          %v372 = vld [vmem:[%s369 + $0x10] sm:$0xff]
          %v373 = vld [vmem:[%s369 + $0x18] sm:$0xff]
          %s374 = scalar_lea.vmem [#allocation2], 240
          %375 = vst.msk [vmem:[%s374 + $0x1] sm:$0xff] %vm323, %v370
          %376 = vst.msk [vmem:[%s374 + $0x9] sm:$0xff] %vm323, %v371
          %377 = vst.msk [vmem:[%s374 + $0x19] sm:$0xff] %vm323, %v372
          %378 = vst.msk [vmem:[%s374 + $0x21] sm:$0xff] %vm323, %v373
        $region56: #{tpu_custom_call.1} parent=39 // pred_fallthru
          _
        %p379 = scmp.eq.s32.totalorder %s25, 1
        // Predicated region
        $region57: #{tpu_custom_call.1} parent=39 // pred_check
          %p380 = pneg %p379
        $region58: #{tpu_custom_call.1} parent=39 // pred_check_branch
          %382 = sbr.rel (%p380) target = $region60
        $region59: #{tpu_custom_call.1} parent=39 // pred_region
          %s383 = scalar_lea.vmem [#allocation2], 240
          %384 = vst.msk [vmem:[%s383 + $0x1] sm:$0xff] %vm323, 0.0
          %385 = vst.msk [vmem:[%s383 + $0x9] sm:$0xff] %vm323, 0.0
          %386 = vst.msk [vmem:[%s383 + $0x19] sm:$0xff] %vm323, 0.0
          %387 = vst.msk [vmem:[%s383 + $0x21] sm:$0xff] %vm323, 0.0
        $region60: #{tpu_custom_call.1} parent=39 // pred_fallthru
          _
        %v388 = vld [vmem:[#allocation2] sm:$0xff]
        %v389 = vld [vmem:[#allocation2 + $0x8] sm:$0xff]
        %v390 = vld [vmem:[#allocation2 + $0x18] sm:$0xff]
        %v391 = vld [vmem:[#allocation2 + $0x20] sm:$0xff]
        %v392 = vld [vmem:[#allocation2 + $0x30] sm:$0xff]
        %v393 = vld [vmem:[#allocation2 + $0x38] sm:$0xff]
        %v394 = vld [vmem:[#allocation2 + $0x48] sm:$0xff]
        %v395 = vld [vmem:[#allocation2 + $0x50] sm:$0xff]
        %v396 = vld [vmem:[#allocation2 + $0x60] sm:$0xff]
        %v397 = vld [vmem:[#allocation2 + $0x68] sm:$0xff]
        %v398 = vld [vmem:[#allocation2 + $0x78] sm:$0xff]
        %v399 = vld [vmem:[#allocation2 + $0x80] sm:$0xff]
        %v400 = vld [vmem:[#allocation2 + $0x90] sm:$0xff]
        %v401 = vld [vmem:[#allocation2 + $0x98] sm:$0xff]
        %v402 = vld [vmem:[#allocation2 + $0xa8] sm:$0xff]
        %v403 = vld [vmem:[#allocation2 + $0xb0] sm:$0xff]
        %v404 = vld [vmem:[#allocation2 + $0xc0] sm:$0xff]
        %v405 = vld [vmem:[#allocation2 + $0xc8] sm:$0xff]
        %v406 = vld [vmem:[#allocation2 + $0xd8] sm:$0xff]
        %v407 = vld [vmem:[#allocation2 + $0xe0] sm:$0xff]
        %v408 = vpack.c.bf16 %v389, %v388
        %v409 = vpack.c.bf16 %v391, %v390
        %v410 = vpack.c.bf16 %v393, %v392
        %v411 = vpack.c.bf16 %v395, %v394
        %v412 = vpack.c.bf16 %v397, %v396
        %v413 = vpack.c.bf16 %v399, %v398
        %v414 = vpack.c.bf16 %v401, %v400
        %v415 = vpack.c.bf16 %v403, %v402
        %v416 = vpack.c.bf16 %v405, %v404
        %v417 = vpack.c.bf16 %v407, %v406
        %418 = vst [vmem:[#allocation4] sm:$0xff] %v408
        %419 = vst [vmem:[#allocation4 + $0x48] sm:$0xff] %v409
        %420 = vst [vmem:[#allocation4 + $0x90] sm:$0xff] %v410
        %421 = vst [vmem:[#allocation4 + $0xd8] sm:$0xff] %v411
        %422 = vst [vmem:[#allocation4 + $0x120] sm:$0xff] %v412
        %423 = vst [vmem:[#allocation4 + $0x168] sm:$0xff] %v413
        %424 = vst [vmem:[#allocation4 + $0x1b0] sm:$0xff] %v414
        %425 = vst [vmem:[#allocation4 + $0x1f8] sm:$0xff] %v415
        %426 = vst [vmem:[#allocation4 + $0x240] sm:$0xff] %v416
        %427 = vst [vmem:[#allocation4 + $0x288] sm:$0xff] %v417
        %v428 = vld [vmem:[#allocation2 + $0x1] sm:$0xff]
        %v429 = vld [vmem:[#allocation2 + $0x9] sm:$0xff]
        %v430 = vld [vmem:[#allocation2 + $0x19] sm:$0xff]
        %v431 = vld [vmem:[#allocation2 + $0x21] sm:$0xff]
        %v432 = vld [vmem:[#allocation2 + $0x31] sm:$0xff]
        %v433 = vld [vmem:[#allocation2 + $0x39] sm:$0xff]
        %v434 = vld [vmem:[#allocation2 + $0x49] sm:$0xff]
        %v435 = vld [vmem:[#allocation2 + $0x51] sm:$0xff]
        %v436 = vld [vmem:[#allocation2 + $0x61] sm:$0xff]
        %v437 = vld [vmem:[#allocation2 + $0x69] sm:$0xff]
        %v438 = vld [vmem:[#allocation2 + $0x79] sm:$0xff]
        %v439 = vld [vmem:[#allocation2 + $0x81] sm:$0xff]
        %v440 = vld [vmem:[#allocation2 + $0x91] sm:$0xff]
        %v441 = vld [vmem:[#allocation2 + $0x99] sm:$0xff]
        %v442 = vld [vmem:[#allocation2 + $0xa9] sm:$0xff]
        %v443 = vld [vmem:[#allocation2 + $0xb1] sm:$0xff]
        %v444 = vld [vmem:[#allocation2 + $0xc1] sm:$0xff]
        %v445 = vld [vmem:[#allocation2 + $0xc9] sm:$0xff]
        %v446 = vld [vmem:[#allocation2 + $0xd9] sm:$0xff]
        %v447 = vld [vmem:[#allocation2 + $0xe1] sm:$0xff]
        %v448 = vpack.c.bf16 %v429, %v428
        %v449 = vpack.c.bf16 %v431, %v430
        %v450 = vpack.c.bf16 %v433, %v432
        %v451 = vpack.c.bf16 %v435, %v434
        %v452 = vpack.c.bf16 %v437, %v436
        %v453 = vpack.c.bf16 %v439, %v438
        %v454 = vpack.c.bf16 %v441, %v440
        %v455 = vpack.c.bf16 %v443, %v442
        %v456 = vpack.c.bf16 %v445, %v444
        %v457 = vpack.c.bf16 %v447, %v446
        %458 = vst [vmem:[#allocation4 + $0x8] sm:$0xff] %v448
        %459 = vst [vmem:[#allocation4 + $0x50] sm:$0xff] %v449
        %460 = vst [vmem:[#allocation4 + $0x98] sm:$0xff] %v450
        %461 = vst [vmem:[#allocation4 + $0xe0] sm:$0xff] %v451
        %462 = vst [vmem:[#allocation4 + $0x128] sm:$0xff] %v452
        %463 = vst [vmem:[#allocation4 + $0x170] sm:$0xff] %v453
        %464 = vst [vmem:[#allocation4 + $0x1b8] sm:$0xff] %v454
        %465 = vst [vmem:[#allocation4 + $0x200] sm:$0xff] %v455
        %466 = vst [vmem:[#allocation4 + $0x248] sm:$0xff] %v456
        %467 = vst [vmem:[#allocation4 + $0x290] sm:$0xff] %v457
        %v468 = vld [vmem:[#allocation2 + $0x2] sm:$0xff]
        %v469 = vld [vmem:[#allocation2 + $0xa] sm:$0xff]
        %v470 = vld [vmem:[#allocation2 + $0x1a] sm:$0xff]
        %v471 = vld [vmem:[#allocation2 + $0x22] sm:$0xff]
        %v472 = vld [vmem:[#allocation2 + $0x32] sm:$0xff]
        %v473 = vld [vmem:[#allocation2 + $0x3a] sm:$0xff]
        %v474 = vld [vmem:[#allocation2 + $0x4a] sm:$0xff]
        %v475 = vld [vmem:[#allocation2 + $0x52] sm:$0xff]
        %v476 = vld [vmem:[#allocation2 + $0x62] sm:$0xff]
        %v477 = vld [vmem:[#allocation2 + $0x6a] sm:$0xff]
        %v478 = vld [vmem:[#allocation2 + $0x7a] sm:$0xff]
        %v479 = vld [vmem:[#allocation2 + $0x82] sm:$0xff]
        %v480 = vld [vmem:[#allocation2 + $0x92] sm:$0xff]
        %v481 = vld [vmem:[#allocation2 + $0x9a] sm:$0xff]
        %v482 = vld [vmem:[#allocation2 + $0xaa] sm:$0xff]
        %v483 = vld [vmem:[#allocation2 + $0xb2] sm:$0xff]
        %v484 = vld [vmem:[#allocation2 + $0xc2] sm:$0xff]
        %v485 = vld [vmem:[#allocation2 + $0xca] sm:$0xff]
        %v486 = vld [vmem:[#allocation2 + $0xda] sm:$0xff]
        %v487 = vld [vmem:[#allocation2 + $0xe2] sm:$0xff]
        %v488 = vpack.c.bf16 %v469, %v468
        %v489 = vpack.c.bf16 %v471, %v470
        %v490 = vpack.c.bf16 %v473, %v472
        %v491 = vpack.c.bf16 %v475, %v474
        %v492 = vpack.c.bf16 %v477, %v476
        %v493 = vpack.c.bf16 %v479, %v478
        %v494 = vpack.c.bf16 %v481, %v480
        %v495 = vpack.c.bf16 %v483, %v482
        %v496 = vpack.c.bf16 %v485, %v484
        %v497 = vpack.c.bf16 %v487, %v486
        %498 = vst [vmem:[#allocation4 + $0x10] sm:$0xff] %v488
        %499 = vst [vmem:[#allocation4 + $0x58] sm:$0xff] %v489
        %500 = vst [vmem:[#allocation4 + $0xa0] sm:$0xff] %v490
        %501 = vst [vmem:[#allocation4 + $0xe8] sm:$0xff] %v491
        %502 = vst [vmem:[#allocation4 + $0x130] sm:$0xff] %v492
        %503 = vst [vmem:[#allocation4 + $0x178] sm:$0xff] %v493
        %504 = vst [vmem:[#allocation4 + $0x1c0] sm:$0xff] %v494
        %505 = vst [vmem:[#allocation4 + $0x208] sm:$0xff] %v495
        %506 = vst [vmem:[#allocation4 + $0x250] sm:$0xff] %v496
        %507 = vst [vmem:[#allocation4 + $0x298] sm:$0xff] %v497
        %s508 = scalar_lea.vmem [#allocation2], 24
        %v509 = vld [vmem:[%s508] sm:$0xff]
        %v510 = vld [vmem:[%s508 + $0x8] sm:$0xff]
        %v511 = vld [vmem:[%s508 + $0x18] sm:$0xff]
        %v512 = vld [vmem:[%s508 + $0x20] sm:$0xff]
        %v513 = vld [vmem:[%s508 + $0x30] sm:$0xff]
        %v514 = vld [vmem:[%s508 + $0x38] sm:$0xff]
        %v515 = vld [vmem:[%s508 + $0x48] sm:$0xff]
        %v516 = vld [vmem:[%s508 + $0x50] sm:$0xff]
        %v517 = vld [vmem:[%s508 + $0x60] sm:$0xff]
        %v518 = vld [vmem:[%s508 + $0x68] sm:$0xff]
        %v519 = vld [vmem:[%s508 + $0x78] sm:$0xff]
        %v520 = vld [vmem:[%s508 + $0x80] sm:$0xff]
        %v521 = vld [vmem:[%s508 + $0x90] sm:$0xff]
        %v522 = vld [vmem:[%s508 + $0x98] sm:$0xff]
        %v523 = vld [vmem:[%s508 + $0xa8] sm:$0xff]
        %v524 = vld [vmem:[%s508 + $0xb0] sm:$0xff]
        %v525 = vld [vmem:[%s508 + $0xc0] sm:$0xff]
        %v526 = vld [vmem:[%s508 + $0xc8] sm:$0xff]
        %v527 = vld [vmem:[%s508 + $0xd8] sm:$0xff]
        %v528 = vld [vmem:[%s508 + $0xe0] sm:$0xff]
        %v529 = vpack.c.bf16 %v510, %v509
        %v530 = vpack.c.bf16 %v512, %v511
        %v531 = vpack.c.bf16 %v514, %v513
        %v532 = vpack.c.bf16 %v516, %v515
        %v533 = vpack.c.bf16 %v518, %v517
        %v534 = vpack.c.bf16 %v520, %v519
        %v535 = vpack.c.bf16 %v522, %v521
        %v536 = vpack.c.bf16 %v524, %v523
        %v537 = vpack.c.bf16 %v526, %v525
        %v538 = vpack.c.bf16 %v528, %v527
        %539 = vst [vmem:[#allocation4 + $0x18] sm:$0xff] %v529
        %540 = vst [vmem:[#allocation4 + $0x60] sm:$0xff] %v530
        %541 = vst [vmem:[#allocation4 + $0xa8] sm:$0xff] %v531
        %542 = vst [vmem:[#allocation4 + $0xf0] sm:$0xff] %v532
        %543 = vst [vmem:[#allocation4 + $0x138] sm:$0xff] %v533
        %544 = vst [vmem:[#allocation4 + $0x180] sm:$0xff] %v534
        %545 = vst [vmem:[#allocation4 + $0x1c8] sm:$0xff] %v535
        %546 = vst [vmem:[#allocation4 + $0x210] sm:$0xff] %v536
        %547 = vst [vmem:[#allocation4 + $0x258] sm:$0xff] %v537
        %548 = vst [vmem:[#allocation4 + $0x2a0] sm:$0xff] %v538
        %v549 = vld [vmem:[%s508 + $0x1] sm:$0xff]
        %v550 = vld [vmem:[%s508 + $0x9] sm:$0xff]
        %v551 = vld [vmem:[%s508 + $0x19] sm:$0xff]
        %v552 = vld [vmem:[%s508 + $0x21] sm:$0xff]
        %v553 = vld [vmem:[%s508 + $0x31] sm:$0xff]
        %v554 = vld [vmem:[%s508 + $0x39] sm:$0xff]
        %v555 = vld [vmem:[%s508 + $0x49] sm:$0xff]
        %v556 = vld [vmem:[%s508 + $0x51] sm:$0xff]
        %v557 = vld [vmem:[%s508 + $0x61] sm:$0xff]
        %v558 = vld [vmem:[%s508 + $0x69] sm:$0xff]
        %v559 = vld [vmem:[%s508 + $0x79] sm:$0xff]
        %v560 = vld [vmem:[%s508 + $0x81] sm:$0xff]
        %v561 = vld [vmem:[%s508 + $0x91] sm:$0xff]
        %v562 = vld [vmem:[%s508 + $0x99] sm:$0xff]
        %v563 = vld [vmem:[%s508 + $0xa9] sm:$0xff]
        %v564 = vld [vmem:[%s508 + $0xb1] sm:$0xff]
        %v565 = vld [vmem:[%s508 + $0xc1] sm:$0xff]
        %v566 = vld [vmem:[%s508 + $0xc9] sm:$0xff]
        %v567 = vld [vmem:[%s508 + $0xd9] sm:$0xff]
        %v568 = vld [vmem:[%s508 + $0xe1] sm:$0xff]
        %v569 = vpack.c.bf16 %v550, %v549
        %v570 = vpack.c.bf16 %v552, %v551
        %v571 = vpack.c.bf16 %v554, %v553
        %v572 = vpack.c.bf16 %v556, %v555
        %v573 = vpack.c.bf16 %v558, %v557
        %v574 = vpack.c.bf16 %v560, %v559
        %v575 = vpack.c.bf16 %v562, %v561
        %v576 = vpack.c.bf16 %v564, %v563
        %v577 = vpack.c.bf16 %v566, %v565
        %v578 = vpack.c.bf16 %v568, %v567
        %579 = vst [vmem:[#allocation4 + $0x20] sm:$0xff] %v569
        %580 = vst [vmem:[#allocation4 + $0x68] sm:$0xff] %v570
        %581 = vst [vmem:[#allocation4 + $0xb0] sm:$0xff] %v571
        %582 = vst [vmem:[#allocation4 + $0xf8] sm:$0xff] %v572
        %583 = vst [vmem:[#allocation4 + $0x140] sm:$0xff] %v573
        %584 = vst [vmem:[#allocation4 + $0x188] sm:$0xff] %v574
        %585 = vst [vmem:[#allocation4 + $0x1d0] sm:$0xff] %v575
        %586 = vst [vmem:[#allocation4 + $0x218] sm:$0xff] %v576
        %587 = vst [vmem:[#allocation4 + $0x260] sm:$0xff] %v577
        %588 = vst [vmem:[#allocation4 + $0x2a8] sm:$0xff] %v578
        %v589 = vld [vmem:[%s508 + $0x2] sm:$0xff]
        %v590 = vld [vmem:[%s508 + $0xa] sm:$0xff]
        %v591 = vld [vmem:[%s508 + $0x1a] sm:$0xff]
        %v592 = vld [vmem:[%s508 + $0x22] sm:$0xff]
        %v593 = vld [vmem:[%s508 + $0x32] sm:$0xff]
        %v594 = vld [vmem:[%s508 + $0x3a] sm:$0xff]
        %v595 = vld [vmem:[%s508 + $0x4a] sm:$0xff]
        %v596 = vld [vmem:[%s508 + $0x52] sm:$0xff]
        %v597 = vld [vmem:[%s508 + $0x62] sm:$0xff]
        %v598 = vld [vmem:[%s508 + $0x6a] sm:$0xff]
        %v599 = vld [vmem:[%s508 + $0x7a] sm:$0xff]
        %v600 = vld [vmem:[%s508 + $0x82] sm:$0xff]
        %v601 = vld [vmem:[%s508 + $0x92] sm:$0xff]
        %v602 = vld [vmem:[%s508 + $0x9a] sm:$0xff]
        %v603 = vld [vmem:[%s508 + $0xaa] sm:$0xff]
        %v604 = vld [vmem:[%s508 + $0xb2] sm:$0xff]
        %v605 = vld [vmem:[%s508 + $0xc2] sm:$0xff]
        %v606 = vld [vmem:[%s508 + $0xca] sm:$0xff]
        %v607 = vld [vmem:[%s508 + $0xda] sm:$0xff]
        %v608 = vld [vmem:[%s508 + $0xe2] sm:$0xff]
        %v609 = vpack.c.bf16 %v590, %v589
        %v610 = vpack.c.bf16 %v592, %v591
        %v611 = vpack.c.bf16 %v594, %v593
        %v612 = vpack.c.bf16 %v596, %v595
        %v613 = vpack.c.bf16 %v598, %v597
        %v614 = vpack.c.bf16 %v600, %v599
        %v615 = vpack.c.bf16 %v602, %v601
        %v616 = vpack.c.bf16 %v604, %v603
        %v617 = vpack.c.bf16 %v606, %v605
        %v618 = vpack.c.bf16 %v608, %v607
        %619 = vst [vmem:[#allocation4 + $0x28] sm:$0xff] %v609
        %620 = vst [vmem:[#allocation4 + $0x70] sm:$0xff] %v610
        %621 = vst [vmem:[#allocation4 + $0xb8] sm:$0xff] %v611
        %622 = vst [vmem:[#allocation4 + $0x100] sm:$0xff] %v612
        %623 = vst [vmem:[#allocation4 + $0x148] sm:$0xff] %v613
        %624 = vst [vmem:[#allocation4 + $0x190] sm:$0xff] %v614
        %625 = vst [vmem:[#allocation4 + $0x1d8] sm:$0xff] %v615
        %626 = vst [vmem:[#allocation4 + $0x220] sm:$0xff] %v616
        %627 = vst [vmem:[#allocation4 + $0x268] sm:$0xff] %v617
        %628 = vst [vmem:[#allocation4 + $0x2b0] sm:$0xff] %v618
        %v629 = vld [vmem:[%s322] sm:$0xff]
        %v630 = vld [vmem:[%s322 + $0x8] sm:$0xff]
        %v631 = vld [vmem:[%s322 + $0x18] sm:$0xff]
        %v632 = vld [vmem:[%s322 + $0x20] sm:$0xff]
        %v633 = vld [vmem:[%s322 + $0x30] sm:$0xff]
        %v634 = vld [vmem:[%s322 + $0x38] sm:$0xff]
        %v635 = vld [vmem:[%s322 + $0x48] sm:$0xff]
        %v636 = vld [vmem:[%s322 + $0x50] sm:$0xff]
        %v637 = vld [vmem:[%s322 + $0x60] sm:$0xff]
        %v638 = vld [vmem:[%s322 + $0x68] sm:$0xff]
        %v639 = vld [vmem:[%s322 + $0x78] sm:$0xff]
        %v640 = vld [vmem:[%s322 + $0x80] sm:$0xff]
        %v641 = vld [vmem:[%s322 + $0x90] sm:$0xff]
        %v642 = vld [vmem:[%s322 + $0x98] sm:$0xff]
        %v643 = vld [vmem:[%s322 + $0xa8] sm:$0xff]
        %v644 = vld [vmem:[%s322 + $0xb0] sm:$0xff]
        %v645 = vld [vmem:[%s322 + $0xc0] sm:$0xff]
        %v646 = vld [vmem:[%s322 + $0xc8] sm:$0xff]
        %v647 = vld [vmem:[%s322 + $0xd8] sm:$0xff]
        %v648 = vld [vmem:[%s322 + $0xe0] sm:$0xff]
        %v649 = vpack.c.bf16 %v630, %v629
        %v650 = vpack.c.bf16 %v632, %v631
        %v651 = vpack.c.bf16 %v634, %v633
        %v652 = vpack.c.bf16 %v636, %v635
        %v653 = vpack.c.bf16 %v638, %v637
        %v654 = vpack.c.bf16 %v640, %v639
        %v655 = vpack.c.bf16 %v642, %v641
        %v656 = vpack.c.bf16 %v644, %v643
        %v657 = vpack.c.bf16 %v646, %v645
        %v658 = vpack.c.bf16 %v648, %v647
        %659 = vst [vmem:[#allocation4 + $0x30] sm:$0xff] %v649
        %660 = vst [vmem:[#allocation4 + $0x78] sm:$0xff] %v650
        %661 = vst [vmem:[#allocation4 + $0xc0] sm:$0xff] %v651
        %662 = vst [vmem:[#allocation4 + $0x108] sm:$0xff] %v652
        %663 = vst [vmem:[#allocation4 + $0x150] sm:$0xff] %v653
        %664 = vst [vmem:[#allocation4 + $0x198] sm:$0xff] %v654
        %665 = vst [vmem:[#allocation4 + $0x1e0] sm:$0xff] %v655
        %666 = vst [vmem:[#allocation4 + $0x228] sm:$0xff] %v656
        %667 = vst [vmem:[#allocation4 + $0x270] sm:$0xff] %v657
        %668 = vst [vmem:[#allocation4 + $0x2b8] sm:$0xff] %v658
        %v669 = vld [vmem:[%s322 + $0x1] sm:$0xff]
        %v670 = vld [vmem:[%s322 + $0x9] sm:$0xff]
        %v671 = vld [vmem:[%s322 + $0x19] sm:$0xff]
        %v672 = vld [vmem:[%s322 + $0x21] sm:$0xff]
        %v673 = vld [vmem:[%s322 + $0x31] sm:$0xff]
        %v674 = vld [vmem:[%s322 + $0x39] sm:$0xff]
        %v675 = vld [vmem:[%s322 + $0x49] sm:$0xff]
        %v676 = vld [vmem:[%s322 + $0x51] sm:$0xff]
        %v677 = vld [vmem:[%s322 + $0x61] sm:$0xff]
        %v678 = vld [vmem:[%s322 + $0x69] sm:$0xff]
        %v679 = vld [vmem:[%s322 + $0x79] sm:$0xff]
        %v680 = vld [vmem:[%s322 + $0x81] sm:$0xff]
        %v681 = vld [vmem:[%s322 + $0x91] sm:$0xff]
        %v682 = vld [vmem:[%s322 + $0x99] sm:$0xff]
        %v683 = vld [vmem:[%s322 + $0xa9] sm:$0xff]
        %v684 = vld [vmem:[%s322 + $0xb1] sm:$0xff]
        %v685 = vld [vmem:[%s322 + $0xc1] sm:$0xff]
        %v686 = vld [vmem:[%s322 + $0xc9] sm:$0xff]
        %v687 = vld [vmem:[%s322 + $0xd9] sm:$0xff]
        %v688 = vld [vmem:[%s322 + $0xe1] sm:$0xff]
        %v689 = vpack.c.bf16 %v670, %v669
        %v690 = vpack.c.bf16 %v672, %v671
        %v691 = vpack.c.bf16 %v674, %v673
        %v692 = vpack.c.bf16 %v676, %v675
        %v693 = vpack.c.bf16 %v678, %v677
        %v694 = vpack.c.bf16 %v680, %v679
        %v695 = vpack.c.bf16 %v682, %v681
        %v696 = vpack.c.bf16 %v684, %v683
        %v697 = vpack.c.bf16 %v686, %v685
        %v698 = vpack.c.bf16 %v688, %v687
        %699 = vst [vmem:[#allocation4 + $0x38] sm:$0xff] %v689
        %700 = vst [vmem:[#allocation4 + $0x80] sm:$0xff] %v690
        %701 = vst [vmem:[#allocation4 + $0xc8] sm:$0xff] %v691
        %702 = vst [vmem:[#allocation4 + $0x110] sm:$0xff] %v692
        %703 = vst [vmem:[#allocation4 + $0x158] sm:$0xff] %v693
        %704 = vst [vmem:[#allocation4 + $0x1a0] sm:$0xff] %v694
        %705 = vst [vmem:[#allocation4 + $0x1e8] sm:$0xff] %v695
        %706 = vst [vmem:[#allocation4 + $0x230] sm:$0xff] %v696
        %707 = vst [vmem:[#allocation4 + $0x278] sm:$0xff] %v697
        %708 = vst [vmem:[#allocation4 + $0x2c0] sm:$0xff] %v698
        %v709 = vld [vmem:[%s322 + $0x2] sm:$0xff]
        %v710 = vld [vmem:[%s322 + $0xa] sm:$0xff]
        %v711 = vld [vmem:[%s322 + $0x1a] sm:$0xff]
        %v712 = vld [vmem:[%s322 + $0x22] sm:$0xff]
        %v713 = vld [vmem:[%s322 + $0x32] sm:$0xff]
        %v714 = vld [vmem:[%s322 + $0x3a] sm:$0xff]
        %v715 = vld [vmem:[%s322 + $0x4a] sm:$0xff]
        %v716 = vld [vmem:[%s322 + $0x52] sm:$0xff]
        %v717 = vld [vmem:[%s322 + $0x62] sm:$0xff]
        %v718 = vld [vmem:[%s322 + $0x6a] sm:$0xff]
        %v719 = vld [vmem:[%s322 + $0x7a] sm:$0xff]
        %v720 = vld [vmem:[%s322 + $0x82] sm:$0xff]
        %v721 = vld [vmem:[%s322 + $0x92] sm:$0xff]
        %v722 = vld [vmem:[%s322 + $0x9a] sm:$0xff]
        %v723 = vld [vmem:[%s322 + $0xaa] sm:$0xff]
        %v724 = vld [vmem:[%s322 + $0xb2] sm:$0xff]
        %v725 = vld [vmem:[%s322 + $0xc2] sm:$0xff]
        %v726 = vld [vmem:[%s322 + $0xca] sm:$0xff]
        %v727 = vld [vmem:[%s322 + $0xda] sm:$0xff]
        %v728 = vld [vmem:[%s322 + $0xe2] sm:$0xff]
        %v729 = vpack.c.bf16 %v710, %v709
        %v730 = vpack.c.bf16 %v712, %v711
        %v731 = vpack.c.bf16 %v714, %v713
        %v732 = vpack.c.bf16 %v716, %v715
        %v733 = vpack.c.bf16 %v718, %v717
        %v734 = vpack.c.bf16 %v720, %v719
        %v735 = vpack.c.bf16 %v722, %v721
        %v736 = vpack.c.bf16 %v724, %v723
        %v737 = vpack.c.bf16 %v726, %v725
        %v738 = vpack.c.bf16 %v728, %v727
        %739 = vst [vmem:[#allocation4 + $0x40] sm:$0xff] %v729
        %740 = vst [vmem:[#allocation4 + $0x88] sm:$0xff] %v730
        %741 = vst [vmem:[#allocation4 + $0xd0] sm:$0xff] %v731
        %742 = vst [vmem:[#allocation4 + $0x118] sm:$0xff] %v732
        %743 = vst [vmem:[#allocation4 + $0x160] sm:$0xff] %v733
        %744 = vst [vmem:[#allocation4 + $0x1a8] sm:$0xff] %v734
        %745 = vst [vmem:[#allocation4 + $0x1f0] sm:$0xff] %v735
        %746 = vst [vmem:[#allocation4 + $0x238] sm:$0xff] %v736
        %747 = vst [vmem:[#allocation4 + $0x280] sm:$0xff] %v737
        %748 = vst [vmem:[#allocation4 + $0x2c8] sm:$0xff] %v738
        %v749 = vld [vmem:[#allocation4] sm:$0xff]
        %v750 = vld [vmem:[#allocation4 + $0x8] sm:$0xff]
        %v751 = vld [vmem:[#allocation4 + $0x10] sm:$0xff]
        %v752 = vld [vmem:[#allocation4 + $0x18] sm:$0xff]
        %v753 = vld [vmem:[#allocation4 + $0x20] sm:$0xff]
        %v754 = vld [vmem:[#allocation4 + $0x28] sm:$0xff]
        %v755 = vld [vmem:[#allocation4 + $0x30] sm:$0xff]
        %v756 = vld [vmem:[#allocation4 + $0x38] sm:$0xff]
        %v757 = vld [vmem:[#allocation4 + $0x40] sm:$0xff]
        %v758 = vld [vmem:[#allocation4 + $0x48] sm:$0xff]
        %v759 = vld [vmem:[#allocation4 + $0x50] sm:$0xff]
        %v760 = vld [vmem:[#allocation4 + $0x58] sm:$0xff]
        %v761 = vld [vmem:[#allocation4 + $0x60] sm:$0xff]
        %v762 = vld [vmem:[#allocation4 + $0x68] sm:$0xff]
        %v763 = vld [vmem:[#allocation4 + $0x70] sm:$0xff]
        %v764 = vld [vmem:[#allocation4 + $0x78] sm:$0xff]
        %v765 = vld [vmem:[#allocation4 + $0x80] sm:$0xff]
        %v766 = vld [vmem:[#allocation4 + $0x88] sm:$0xff]
        %v767 = vld [vmem:[#allocation4 + $0x90] sm:$0xff]
        %v768 = vld [vmem:[#allocation4 + $0x98] sm:$0xff]
        %v769 = vld [vmem:[#allocation4 + $0xa0] sm:$0xff]
        %v770 = vld [vmem:[#allocation4 + $0xa8] sm:$0xff]
        %v771 = vld [vmem:[#allocation4 + $0xb0] sm:$0xff]
        %v772 = vld [vmem:[#allocation4 + $0xb8] sm:$0xff]
        %v773 = vld [vmem:[#allocation4 + $0xc0] sm:$0xff]
        %v774 = vld [vmem:[#allocation4 + $0xc8] sm:$0xff]
        %v775 = vld [vmem:[#allocation4 + $0xd0] sm:$0xff]
        %v776 = vld [vmem:[#allocation4 + $0xd8] sm:$0xff]
        %v777 = vld [vmem:[#allocation4 + $0xe0] sm:$0xff]
        %v778 = vld [vmem:[#allocation4 + $0xe8] sm:$0xff]
        %v779 = vld [vmem:[#allocation4 + $0xf0] sm:$0xff]
        %v780 = vld [vmem:[#allocation4 + $0xf8] sm:$0xff]
        %v781 = vld [vmem:[#allocation4 + $0x100] sm:$0xff]
        %v782 = vld [vmem:[#allocation4 + $0x108] sm:$0xff]
        %v783 = vld [vmem:[#allocation4 + $0x110] sm:$0xff]
        %v784 = vld [vmem:[#allocation4 + $0x118] sm:$0xff]
        %v785 = vld [vmem:[#allocation4 + $0x120] sm:$0xff]
        %v786 = vld [vmem:[#allocation4 + $0x128] sm:$0xff]
        %v787 = vld [vmem:[#allocation4 + $0x130] sm:$0xff]
        %v788 = vld [vmem:[#allocation4 + $0x138] sm:$0xff]
        %v789 = vld [vmem:[#allocation4 + $0x140] sm:$0xff]
        %v790 = vld [vmem:[#allocation4 + $0x148] sm:$0xff]
        %v791 = vld [vmem:[#allocation4 + $0x150] sm:$0xff]
        %v792 = vld [vmem:[#allocation4 + $0x158] sm:$0xff]
        %v793 = vld [vmem:[#allocation4 + $0x160] sm:$0xff]
        %v794 = vld [vmem:[#allocation4 + $0x168] sm:$0xff]
        %v795 = vld [vmem:[#allocation4 + $0x170] sm:$0xff]
        %v796 = vld [vmem:[#allocation4 + $0x178] sm:$0xff]
        %v797 = vld [vmem:[#allocation4 + $0x180] sm:$0xff]
        %v798 = vld [vmem:[#allocation4 + $0x188] sm:$0xff]
        %v799 = vld [vmem:[#allocation4 + $0x190] sm:$0xff]
        %v800 = vld [vmem:[#allocation4 + $0x198] sm:$0xff]
        %v801 = vld [vmem:[#allocation4 + $0x1a0] sm:$0xff]
        %v802 = vld [vmem:[#allocation4 + $0x1a8] sm:$0xff]
        %v803 = vld [vmem:[#allocation4 + $0x1b0] sm:$0xff]
        %v804 = vld [vmem:[#allocation4 + $0x1b8] sm:$0xff]
        %v805 = vld [vmem:[#allocation4 + $0x1c0] sm:$0xff]
        %v806 = vld [vmem:[#allocation4 + $0x1c8] sm:$0xff]
        %v807 = vld [vmem:[#allocation4 + $0x1d0] sm:$0xff]
        %v808 = vld [vmem:[#allocation4 + $0x1d8] sm:$0xff]
        %v809 = vld [vmem:[#allocation4 + $0x1e0] sm:$0xff]
        %v810 = vld [vmem:[#allocation4 + $0x1e8] sm:$0xff]
        %v811 = vld [vmem:[#allocation4 + $0x1f0] sm:$0xff]
        %v812 = vld [vmem:[#allocation4 + $0x1f8] sm:$0xff]
        %v813 = vld [vmem:[#allocation4 + $0x200] sm:$0xff]
        %v814 = vld [vmem:[#allocation4 + $0x208] sm:$0xff]
        %v815 = vld [vmem:[#allocation4 + $0x210] sm:$0xff]
        %v816 = vld [vmem:[#allocation4 + $0x218] sm:$0xff]
        %v817 = vld [vmem:[#allocation4 + $0x220] sm:$0xff]
        %v818 = vld [vmem:[#allocation4 + $0x228] sm:$0xff]
        %v819 = vld [vmem:[#allocation4 + $0x230] sm:$0xff]
        %v820 = vld [vmem:[#allocation4 + $0x238] sm:$0xff]
        %v821 = vld [vmem:[#allocation4 + $0x240] sm:$0xff]
        %v822 = vld [vmem:[#allocation4 + $0x248] sm:$0xff]
        %v823 = vld [vmem:[#allocation4 + $0x250] sm:$0xff]
        %v824 = vld [vmem:[#allocation4 + $0x258] sm:$0xff]
        %v825 = vld [vmem:[#allocation4 + $0x260] sm:$0xff]
        %v826 = vld [vmem:[#allocation4 + $0x268] sm:$0xff]
        %v827 = vld [vmem:[#allocation4 + $0x270] sm:$0xff]
        %v828 = vld [vmem:[#allocation4 + $0x278] sm:$0xff]
        %v829 = vld [vmem:[#allocation4 + $0x280] sm:$0xff]
        %v830 = vld [vmem:[#allocation4 + $0x288] sm:$0xff]
        %v831 = vld [vmem:[#allocation4 + $0x290] sm:$0xff]
        %v832 = vld [vmem:[#allocation4 + $0x298] sm:$0xff]
        %v833 = vld [vmem:[#allocation4 + $0x2a0] sm:$0xff]
        %v834 = vld [vmem:[#allocation4 + $0x2a8] sm:$0xff]
        %v835 = vld [vmem:[#allocation4 + $0x2b0] sm:$0xff]
        %v836 = vld [vmem:[#allocation4 + $0x2b8] sm:$0xff]
        %v837 = vld [vmem:[#allocation4 + $0x2c0] sm:$0xff]
        %v838 = vld [vmem:[#allocation4 + $0x2c8] sm:$0xff]
        %v839 = vld [vmem:[%s1] sm:$0xf]
        %v840 = vld [vmem:[%s1 + $0x4] sm:$0xf]
        %v841 = vld [vmem:[%s1 + $0x8] sm:$0xf]
        %v842 = vld [vmem:[%s1 + $0xc] sm:$0xf]
        %v843 = vld [vmem:[%s1 + $0x10] sm:$0xf]
        %v844 = vld [vmem:[%s1 + $0x14] sm:$0xf]
        %v845 = vld [vmem:[%s1 + $0x18] sm:$0xf]
        %v846 = vld [vmem:[%s1 + $0x1c] sm:$0xf]
        %v847 = vld [vmem:[%s1 + $0x20] sm:$0xf]
        %v848 = vld [vmem:[%s1 + $0x24] sm:$0xf]
        %v849 = vld [vmem:[%s1 + $0x28] sm:$0xf]
        %v850 = vld [vmem:[%s1 + $0x2c] sm:$0xf]
        %v851 = vld [vmem:[%s1 + $0x30] sm:$0xf]
        %v852 = vld [vmem:[%s1 + $0x34] sm:$0xf]
        %v853 = vld [vmem:[%s1 + $0x38] sm:$0xf]
        %v854 = vld [vmem:[%s1 + $0x3c] sm:$0xf]
        %v855 = vld [vmem:[%s1 + $0x40] sm:$0xf]
        %v856 = vld [vmem:[%s1 + $0x44] sm:$0xf]
        %v857 = vld [vmem:[%s1 + $0x48] sm:$0xf]
        %v858 = vld [vmem:[%s1 + $0x4c] sm:$0xf]
        %v859 = vld [vmem:[%s1 + $0x50] sm:$0xf]
        %v860 = vld [vmem:[%s1 + $0x54] sm:$0xf]
        %v861 = vld [vmem:[%s1 + $0x58] sm:$0xf]
        %v862 = vld [vmem:[%s1 + $0x5c] sm:$0xf]
        %v863 = vld [vmem:[%s1 + $0x60] sm:$0xf]
        %v864 = vld [vmem:[%s1 + $0x64] sm:$0xf]
        %v865 = vld [vmem:[%s1 + $0x68] sm:$0xf]
        %v866 = vld [vmem:[%s1 + $0x6c] sm:$0xf]
        %v867 = vld [vmem:[%s1 + $0x70] sm:$0xf]
        %v868 = vld [vmem:[%s1 + $0x74] sm:$0xf]
        %v869 = vld [vmem:[%s1 + $0x78] sm:$0xf]
        %v870 = vld [vmem:[%s1 + $0x7c] sm:$0xf]
        %v871 = vld [vmem:[%s1 + $0x80] sm:$0xf]
        %v872 = vld [vmem:[%s1 + $0x84] sm:$0xf]
        %v873 = vld [vmem:[%s1 + $0x88] sm:$0xf]
        %v874 = vld [vmem:[%s1 + $0x8c] sm:$0xf]
        %v875 = vld [vmem:[%s1 + $0x90] sm:$0xf]
        %v876 = vld [vmem:[%s1 + $0x94] sm:$0xf]
        %v877 = vld [vmem:[%s1 + $0x98] sm:$0xf]
        %v878 = vld [vmem:[%s1 + $0x9c] sm:$0xf]
        %v879 = vld [vmem:[%s1 + $0xa0] sm:$0xf]
        %v880 = vld [vmem:[%s1 + $0xa4] sm:$0xf]
        %v881 = vld [vmem:[%s1 + $0xa8] sm:$0xf]
        %v882 = vld [vmem:[%s1 + $0xac] sm:$0xf]
        %v883 = vld [vmem:[%s1 + $0xb0] sm:$0xf]
        %v884 = vld [vmem:[%s1 + $0xb4] sm:$0xf]
        %v885 = vld [vmem:[%s1 + $0xb8] sm:$0xf]
        %v886 = vld [vmem:[%s1 + $0xbc] sm:$0xf]
        %v887 = vld [vmem:[%s1 + $0xc0] sm:$0xf]
        %v888 = vld [vmem:[%s1 + $0xc4] sm:$0xf]
        %v889 = vld [vmem:[%s1 + $0xc8] sm:$0xf]
        %v890 = vld [vmem:[%s1 + $0xcc] sm:$0xf]
        %v891 = vld [vmem:[%s1 + $0xd0] sm:$0xf]
        %v892 = vld [vmem:[%s1 + $0xd4] sm:$0xf]
        %v893 = vld [vmem:[%s1 + $0xd8] sm:$0xf]
        %v894 = vld [vmem:[%s1 + $0xdc] sm:$0xf]
        %v895 = vld [vmem:[%s1 + $0xe0] sm:$0xf]
        %v896 = vld [vmem:[%s1 + $0xe4] sm:$0xf]
        %v897 = vld [vmem:[%s1 + $0xe8] sm:$0xf]
        %v898 = vld [vmem:[%s1 + $0xec] sm:$0xf]
        %v899 = vld [vmem:[%s1 + $0xf0] sm:$0xf]
        %v900 = vld [vmem:[%s1 + $0xf4] sm:$0xf]
        %v901 = vld [vmem:[%s1 + $0xf8] sm:$0xf]
        %v902 = vld [vmem:[%s1 + $0xfc] sm:$0xf]
        %v903 = vld [vmem:[%s1 + $0x100] sm:$0xf]
        %v904 = vld [vmem:[%s1 + $0x104] sm:$0xf]
        %v905 = vld [vmem:[%s1 + $0x108] sm:$0xf]
        %v906 = vld [vmem:[%s1 + $0x10c] sm:$0xf]
        %v907 = vld [vmem:[%s1 + $0x110] sm:$0xf]
        %v908 = vld [vmem:[%s1 + $0x114] sm:$0xf]
        %v909 = vld [vmem:[%s1 + $0x118] sm:$0xf]
        %v910 = vld [vmem:[%s1 + $0x11c] sm:$0xf]
        %v911 = vld [vmem:[%s1 + $0x120] sm:$0xf]
        %v912 = vld [vmem:[%s1 + $0x124] sm:$0xf]
        %v913 = vld [vmem:[%s1 + $0x128] sm:$0xf]
        %v914 = vld [vmem:[%s1 + $0x12c] sm:$0xf]
        %v915 = vld [vmem:[%s1 + $0x130] sm:$0xf]
        %v916 = vld [vmem:[%s1 + $0x134] sm:$0xf]
        %v917 = vld [vmem:[%s1 + $0x138] sm:$0xf]
        %v918 = vld [vmem:[%s1 + $0x13c] sm:$0xf]
        %v919 = vld [vmem:[%s1 + $0x140] sm:$0xf]
        %v920 = vld [vmem:[%s1 + $0x144] sm:$0xf]
        %v921 = vld [vmem:[%s1 + $0x148] sm:$0xf]
        %v922 = vld [vmem:[%s1 + $0x14c] sm:$0xf]
        %v923 = vld [vmem:[%s1 + $0x150] sm:$0xf]
        %v924 = vld [vmem:[%s1 + $0x154] sm:$0xf]
        %v925 = vld [vmem:[%s1 + $0x158] sm:$0xf]
        %v926 = vld [vmem:[%s1 + $0x15c] sm:$0xf]
        %v927 = vld [vmem:[%s1 + $0x160] sm:$0xf]
        %v928 = vld [vmem:[%s1 + $0x164] sm:$0xf]
        %v929 = vld [vmem:[%s1 + $0x168] sm:$0xf]
        %v930 = vld [vmem:[%s1 + $0x16c] sm:$0xf]
        %v931 = vld [vmem:[%s1 + $0x170] sm:$0xf]
        %v932 = vld [vmem:[%s1 + $0x174] sm:$0xf]
        %v933 = vld [vmem:[%s1 + $0x178] sm:$0xf]
        %v934 = vld [vmem:[%s1 + $0x17c] sm:$0xf]
        %v935 = vld [vmem:[%s1 + $0x180] sm:$0xf]
        %v936 = vld [vmem:[%s1 + $0x184] sm:$0xf]
        %v937 = vld [vmem:[%s1 + $0x188] sm:$0xf]
        %v938 = vld [vmem:[%s1 + $0x18c] sm:$0xf]
        %v939 = vld [vmem:[%s1 + $0x190] sm:$0xf]
        %v940 = vld [vmem:[%s1 + $0x194] sm:$0xf]
        %v941 = vld [vmem:[%s1 + $0x198] sm:$0xf]
        %v942 = vld [vmem:[%s1 + $0x19c] sm:$0xf]
        %v943 = vld [vmem:[%s1 + $0x1a0] sm:$0xf]
        %v944 = vld [vmem:[%s1 + $0x1a4] sm:$0xf]
        %v945 = vld [vmem:[%s1 + $0x1a8] sm:$0xf]
        %v946 = vld [vmem:[%s1 + $0x1ac] sm:$0xf]
        %v947 = vld [vmem:[%s1 + $0x1b0] sm:$0xf]
        %v948 = vld [vmem:[%s1 + $0x1b4] sm:$0xf]
        %v949 = vld [vmem:[%s1 + $0x1b8] sm:$0xf]
        %v950 = vld [vmem:[%s1 + $0x1bc] sm:$0xf]
        %v951 = vld [vmem:[%s1 + $0x1c0] sm:$0xf]
        %v952 = vld [vmem:[%s1 + $0x1c4] sm:$0xf]
        %v953 = vld [vmem:[%s1 + $0x1c8] sm:$0xf]
        %v954 = vld [vmem:[%s1 + $0x1cc] sm:$0xf]
        %v955 = vld [vmem:[%s1 + $0x1d0] sm:$0xf]
        %v956 = vld [vmem:[%s1 + $0x1d4] sm:$0xf]
        %v957 = vld [vmem:[%s1 + $0x1d8] sm:$0xf]
        %v958 = vld [vmem:[%s1 + $0x1dc] sm:$0xf]
        %v959 = vld [vmem:[%s1 + $0x1e0] sm:$0xf]
        %v960 = vld [vmem:[%s1 + $0x1e4] sm:$0xf]
        %v961 = vld [vmem:[%s1 + $0x1e8] sm:$0xf]
        %v962 = vld [vmem:[%s1 + $0x1ec] sm:$0xf]
        %v963 = vld [vmem:[%s1 + $0x1f0] sm:$0xf]
        %v964 = vld [vmem:[%s1 + $0x1f4] sm:$0xf]
        %v965 = vld [vmem:[%s1 + $0x1f8] sm:$0xf]
        %v966 = vld [vmem:[%s1 + $0x1fc] sm:$0xf]
        %v967 = vld [vmem:[%s1 + $0x200] sm:$0xf]
        %v968 = vld [vmem:[%s1 + $0x204] sm:$0xf]
        %v969 = vld [vmem:[%s1 + $0x208] sm:$0xf]
        %v970 = vld [vmem:[%s1 + $0x20c] sm:$0xf]
        %v971 = vld [vmem:[%s1 + $0x210] sm:$0xf]
        %v972 = vld [vmem:[%s1 + $0x214] sm:$0xf]
        %v973 = vld [vmem:[%s1 + $0x218] sm:$0xf]
        %v974 = vld [vmem:[%s1 + $0x21c] sm:$0xf]
        %v975 = vld [vmem:[%s1 + $0x220] sm:$0xf]
        %v976 = vld [vmem:[%s1 + $0x224] sm:$0xf]
        %v977 = vld [vmem:[%s1 + $0x228] sm:$0xf]
        %v978 = vld [vmem:[%s1 + $0x22c] sm:$0xf]
        %v979 = vld [vmem:[%s1 + $0x230] sm:$0xf]
        %v980 = vld [vmem:[%s1 + $0x234] sm:$0xf]
        %v981 = vld [vmem:[%s1 + $0x238] sm:$0xf]
        %v982 = vld [vmem:[%s1 + $0x23c] sm:$0xf]
        %v983 = vld [vmem:[%s2] sm:$0x1]
        %v985 = vlaneseq
        %v986 = vshrl.u32 %v985, 7
        %v987 = vsub.s32 0, %v986
        %v988 = vrot.slane %v983, %v987
        %v1134 = vunpack.c.l.b16 %v839
        %v1135 = vunpack.c.l.b16 %v840
        %v1136 = vunpack.c.l.b16 %v841
        %v1137 = vunpack.c.l.b16 %v842
        %v1138 = vunpack.c.l.b16 %v843
        %v1139 = vunpack.c.l.b16 %v844
        %v1140 = vunpack.c.l.b16 %v845
        %v1141 = vunpack.c.l.b16 %v846
        %v1142 = vunpack.c.l.b16 %v847
        %v1143 = vunpack.c.l.b16 %v848
        %v1144 = vunpack.c.l.b16 %v849
        %v1145 = vunpack.c.l.b16 %v850
        %v1146 = vunpack.c.l.b16 %v851
        %v1147 = vunpack.c.l.b16 %v852
        %v1148 = vunpack.c.l.b16 %v853
        %v1149 = vunpack.c.l.b16 %v854
        %v1150 = vunpack.c.l.b16 %v855
        %v1151 = vunpack.c.l.b16 %v856
        %v1152 = vunpack.c.l.b16 %v857
        %v1153 = vunpack.c.l.b16 %v858
        %v1154 = vunpack.c.l.b16 %v859
        %v1155 = vunpack.c.l.b16 %v860
        %v1156 = vunpack.c.l.b16 %v861
        %v1157 = vunpack.c.l.b16 %v862
        %v1158 = vunpack.c.l.b16 %v863
        %v1159 = vunpack.c.l.b16 %v864
        %v1160 = vunpack.c.l.b16 %v865
        %v1161 = vunpack.c.l.b16 %v866
        %v1162 = vunpack.c.l.b16 %v867
        %v1163 = vunpack.c.l.b16 %v868
        %v1164 = vunpack.c.l.b16 %v869
        %v1165 = vunpack.c.l.b16 %v870
        %v1166 = vunpack.c.l.b16 %v871
        %v1167 = vunpack.c.l.b16 %v872
        %v1168 = vunpack.c.l.b16 %v873
        %v1169 = vunpack.c.l.b16 %v874
        %v1170 = vunpack.c.l.b16 %v875
        %v1171 = vunpack.c.l.b16 %v876
        %v1172 = vunpack.c.l.b16 %v877
        %v1173 = vunpack.c.l.b16 %v878
        %v1174 = vunpack.c.l.b16 %v879
        %v1175 = vunpack.c.l.b16 %v880
        %v1176 = vunpack.c.l.b16 %v881
        %v1177 = vunpack.c.l.b16 %v882
        %v1178 = vunpack.c.l.b16 %v883
        %v1179 = vunpack.c.l.b16 %v884
        %v1180 = vunpack.c.l.b16 %v885
        %v1181 = vunpack.c.l.b16 %v886
        %v1182 = vunpack.c.l.b16 %v887
        %v1183 = vunpack.c.l.b16 %v888
        %v1184 = vunpack.c.l.b16 %v889
        %v1185 = vunpack.c.l.b16 %v890
        %v1186 = vunpack.c.l.b16 %v891
        %v1187 = vunpack.c.l.b16 %v892
        %v1188 = vunpack.c.l.b16 %v893
        %v1189 = vunpack.c.l.b16 %v894
        %v1190 = vunpack.c.l.b16 %v895
        %v1191 = vunpack.c.l.b16 %v896
        %v1192 = vunpack.c.l.b16 %v897
        %v1193 = vunpack.c.l.b16 %v898
        %v1194 = vunpack.c.l.b16 %v899
        %v1195 = vunpack.c.l.b16 %v900
        %v1196 = vunpack.c.l.b16 %v901
        %v1197 = vunpack.c.l.b16 %v902
        %v1198 = vunpack.c.l.b16 %v903
        %v1199 = vunpack.c.l.b16 %v904
        %v1200 = vunpack.c.l.b16 %v905
        %v1201 = vunpack.c.l.b16 %v906
        %v1202 = vunpack.c.l.b16 %v907
        %v1203 = vunpack.c.l.b16 %v908
        %v1204 = vunpack.c.l.b16 %v909
        %v1205 = vunpack.c.l.b16 %v910
        %v1206 = vunpack.c.l.b16 %v911
        %v1207 = vunpack.c.l.b16 %v912
        %v1208 = vunpack.c.l.b16 %v913
        %v1209 = vunpack.c.l.b16 %v914
        %v1210 = vunpack.c.l.b16 %v915
        %v1211 = vunpack.c.l.b16 %v916
        %v1212 = vunpack.c.l.b16 %v917
        %v1213 = vunpack.c.l.b16 %v918
        %v1214 = vunpack.c.l.b16 %v919
        %v1215 = vunpack.c.l.b16 %v920
        %v1216 = vunpack.c.l.b16 %v921
        %v1217 = vunpack.c.l.b16 %v922
        %v1218 = vunpack.c.l.b16 %v923
        %v1219 = vunpack.c.l.b16 %v924
        %v1220 = vunpack.c.l.b16 %v925
        %v1221 = vunpack.c.l.b16 %v926
        %v1222 = vunpack.c.l.b16 %v927
        %v1223 = vunpack.c.l.b16 %v928
        %v1224 = vunpack.c.l.b16 %v929
        %v1225 = vunpack.c.l.b16 %v930
        %v1226 = vunpack.c.l.b16 %v931
        %v1227 = vunpack.c.l.b16 %v932
        %v1228 = vunpack.c.l.b16 %v933
        %v1229 = vunpack.c.l.b16 %v934
        %v1230 = vunpack.c.l.b16 %v935
        %v1231 = vunpack.c.l.b16 %v936
        %v1232 = vunpack.c.l.b16 %v937
        %v1233 = vunpack.c.l.b16 %v938
        %v1234 = vunpack.c.l.b16 %v939
        %v1235 = vunpack.c.l.b16 %v940
        %v1236 = vunpack.c.l.b16 %v941
        %v1237 = vunpack.c.l.b16 %v942
        %v1238 = vunpack.c.l.b16 %v943
        %v1239 = vunpack.c.l.b16 %v944
        %v1240 = vunpack.c.l.b16 %v945
        %v1241 = vunpack.c.l.b16 %v946
        %v1242 = vunpack.c.l.b16 %v947
        %v1243 = vunpack.c.l.b16 %v948
        %v1244 = vunpack.c.l.b16 %v949
        %v1245 = vunpack.c.l.b16 %v950
        %v1246 = vunpack.c.l.b16 %v951
        %v1247 = vunpack.c.l.b16 %v952
        %v1248 = vunpack.c.l.b16 %v953
        %v1249 = vunpack.c.l.b16 %v954
        %v1250 = vunpack.c.l.b16 %v955
        %v1251 = vunpack.c.l.b16 %v956
        %v1252 = vunpack.c.l.b16 %v957
        %v1253 = vunpack.c.l.b16 %v958
        %v1254 = vunpack.c.l.b16 %v959
        %v1255 = vunpack.c.l.b16 %v960
        %v1256 = vunpack.c.l.b16 %v961
        %v1257 = vunpack.c.l.b16 %v962
        %v1258 = vunpack.c.l.b16 %v963
        %v1259 = vunpack.c.l.b16 %v964
        %v1260 = vunpack.c.l.b16 %v965
        %v1261 = vunpack.c.l.b16 %v966
        %v1262 = vunpack.c.l.b16 %v967
        %v1263 = vunpack.c.l.b16 %v968
        %v1264 = vunpack.c.l.b16 %v969
        %v1265 = vunpack.c.l.b16 %v970
        %v1266 = vunpack.c.l.b16 %v971
        %v1267 = vunpack.c.l.b16 %v972
        %v1268 = vunpack.c.l.b16 %v973
        %v1269 = vunpack.c.l.b16 %v974
        %v1270 = vunpack.c.l.b16 %v975
        %v1271 = vunpack.c.l.b16 %v976
        %v1272 = vunpack.c.l.b16 %v977
        %v1273 = vunpack.c.l.b16 %v978
        %v1274 = vunpack.c.l.b16 %v979
        %v1275 = vunpack.c.l.b16 %v980
        %v1276 = vunpack.c.l.b16 %v981
        %v1277 = vunpack.c.l.b16 %v982
        %v1278 = vpack.c.b16 %v1135, %v1134
        %v1279 = vpack.c.b16 %v1137, %v1136
        %v1280 = vpack.c.b16 %v1139, %v1138
        %v1281 = vpack.c.b16 %v1141, %v1140
        %v1282 = vpack.c.b16 %v1143, %v1142
        %v1283 = vpack.c.b16 %v1145, %v1144
        %v1284 = vpack.c.b16 %v1147, %v1146
        %v1285 = vpack.c.b16 %v1149, %v1148
        %v1286 = vpack.c.b16 %v1151, %v1150
        %v1287 = vpack.c.b16 %v1153, %v1152
        %v1288 = vpack.c.b16 %v1155, %v1154
        %v1289 = vpack.c.b16 %v1157, %v1156
        %v1290 = vpack.c.b16 %v1159, %v1158
        %v1291 = vpack.c.b16 %v1161, %v1160
        %v1292 = vpack.c.b16 %v1163, %v1162
        %v1293 = vpack.c.b16 %v1165, %v1164
        %v1294 = vpack.c.b16 %v1167, %v1166
        %v1295 = vpack.c.b16 %v1169, %v1168
        %v1296 = vpack.c.b16 %v1171, %v1170
        %v1297 = vpack.c.b16 %v1173, %v1172
        %v1298 = vpack.c.b16 %v1175, %v1174
        %v1299 = vpack.c.b16 %v1177, %v1176
        %v1300 = vpack.c.b16 %v1179, %v1178
        %v1301 = vpack.c.b16 %v1181, %v1180
        %v1302 = vpack.c.b16 %v1183, %v1182
        %v1303 = vpack.c.b16 %v1185, %v1184
        %v1304 = vpack.c.b16 %v1187, %v1186
        %v1305 = vpack.c.b16 %v1189, %v1188
        %v1306 = vpack.c.b16 %v1191, %v1190
        %v1307 = vpack.c.b16 %v1193, %v1192
        %v1308 = vpack.c.b16 %v1195, %v1194
        %v1309 = vpack.c.b16 %v1197, %v1196
        %v1310 = vpack.c.b16 %v1199, %v1198
        %v1311 = vpack.c.b16 %v1201, %v1200
        %v1312 = vpack.c.b16 %v1203, %v1202
        %v1313 = vpack.c.b16 %v1205, %v1204
        %v1314 = vpack.c.b16 %v1207, %v1206
        %v1315 = vpack.c.b16 %v1209, %v1208
        %v1316 = vpack.c.b16 %v1211, %v1210
        %v1317 = vpack.c.b16 %v1213, %v1212
        %v1318 = vpack.c.b16 %v1215, %v1214
        %v1319 = vpack.c.b16 %v1217, %v1216
        %v1320 = vpack.c.b16 %v1219, %v1218
        %v1321 = vpack.c.b16 %v1221, %v1220
        %v1322 = vpack.c.b16 %v1223, %v1222
        %v1323 = vpack.c.b16 %v1225, %v1224
        %v1324 = vpack.c.b16 %v1227, %v1226
        %v1325 = vpack.c.b16 %v1229, %v1228
        %v1326 = vpack.c.b16 %v1231, %v1230
        %v1327 = vpack.c.b16 %v1233, %v1232
        %v1328 = vpack.c.b16 %v1235, %v1234
        %v1329 = vpack.c.b16 %v1237, %v1236
        %v1330 = vpack.c.b16 %v1239, %v1238
        %v1331 = vpack.c.b16 %v1241, %v1240
        %v1332 = vpack.c.b16 %v1243, %v1242
        %v1333 = vpack.c.b16 %v1245, %v1244
        %v1334 = vpack.c.b16 %v1247, %v1246
        %v1335 = vpack.c.b16 %v1249, %v1248
        %v1336 = vpack.c.b16 %v1251, %v1250
        %v1337 = vpack.c.b16 %v1253, %v1252
        %v1338 = vpack.c.b16 %v1255, %v1254
        %v1339 = vpack.c.b16 %v1257, %v1256
        %v1340 = vpack.c.b16 %v1259, %v1258
        %v1341 = vpack.c.b16 %v1261, %v1260
        %v1342 = vpack.c.b16 %v1263, %v1262
        %v1343 = vpack.c.b16 %v1265, %v1264
        %v1344 = vpack.c.b16 %v1267, %v1266
        %v1345 = vpack.c.b16 %v1269, %v1268
        %v1346 = vpack.c.b16 %v1271, %v1270
        %v1347 = vpack.c.b16 %v1273, %v1272
        %v1348 = vpack.c.b16 %v1275, %v1274
        %v1349 = vpack.c.b16 %v1277, %v1276
        %1422 = vmatprep.subr.bf16.mxu0 0
        %1423 = vmatpush1.bf16.msra.mxu0 %v1278
        %1424 = vmatprep.subr.bf16.mxu0 0
        %1425 = vmatpush1.bf16.msra.mxu0 %v1279
        %1426 = vmatprep.subr.bf16.mxu0 0
        %1427 = vmatpush1.bf16.msra.mxu0 %v1280
        %1428 = vmatprep.subr.bf16.mxu0 0
        %1429 = vmatpush1.bf16.msra.mxu0 %v1281
        %1430 = vmatprep.subr.bf16.mxu0 0
        %1431 = vmatpush1.bf16.msra.mxu0 %v1282
        %1432 = vmatprep.subr.bf16.mxu0 0
        %1433 = vmatpush1.bf16.msra.mxu0 %v1283
        %1434 = vmatprep.subr.bf16.mxu0 0
        %1435 = vmatpush1.bf16.msra.mxu0 %v1284
        %1436 = vmatprep.subr.bf16.mxu0 0
        %1437 = vmatpush1.bf16.msra.mxu0 %v1285
        %1438 = vmatprep.subr.bf16.mxu0 0
        %1439 = vmatpush1.bf16.msra.mxu0 %v1286
        %1440 = vmatprep.subr.bf16.mxu0 0
        %1441 = vmatpush1.bf16.msra.mxu0 %v1287
        %1442 = vmatprep.subr.bf16.mxu0 0
        %1443 = vmatpush1.bf16.msra.mxu0 %v1288
        %1444 = vmatprep.subr.bf16.mxu0 0
        %1445 = vmatpush1.bf16.msra.mxu0 %v1289
        %1446 = vmatprep.subr.bf16.mxu0 0
        %1447 = vmatpush1.bf16.msra.mxu0 %v1290
        %1448 = vmatprep.subr.bf16.mxu0 0
        %1449 = vmatpush1.bf16.msra.mxu0 %v1291
        %1450 = vmatprep.subr.bf16.mxu0 0
        %1451 = vmatpush1.bf16.msra.mxu0 %v1292
        %1452 = vmatprep.subr.bf16.mxu0 0
        %1453 = vmatpush1.bf16.msra.mxu0 %v1293
        %1454 = vmatprep.mubr.bf16.mxu0 %v750
        %1455 = vmatmul.mubr.bf16.gmra.mrb[0].mxu0 %v749
        %v1456 = vpop.f32.mrb[0].mxu0
        %v1457 = vadd.f32 %v988, %v1456
        %v1458 = vpop.f32.mrb[0].mxu0
        %v1459 = vpop.f32.mrb[0].mxu0
        %v1460 = vadd.f32 %v988, %v1459
        %v1461 = vpop.f32.mrb[0].mxu0
        %1462 = vmatprep.mubr.bf16.mxu0 %v759
        %1463 = vmatmul.mubr.bf16.gmra.mrb[0].mxu0 %v758
        %v1464 = vpop.f32.mrb[0].mxu0
        %v1465 = vadd.f32 %v988, %v1464
        %v1466 = vpop.f32.mrb[0].mxu0
        %v1467 = vpop.f32.mrb[0].mxu0
        %v1468 = vadd.f32 %v988, %v1467
        %v1469 = vpop.f32.mrb[0].mxu0
        %1470 = vmatprep.mubr.bf16.mxu0 %v768
        %1471 = vmatmul.mubr.bf16.gmra.mrb[0].mxu0 %v767
        %v1472 = vpop.f32.mrb[0].mxu0
        %v1473 = vadd.f32 %v988, %v1472
        %v1474 = vpop.f32.mrb[0].mxu0
        %v1475 = vpop.f32.mrb[0].mxu0
        %v1476 = vadd.f32 %v988, %v1475
        %v1477 = vpop.f32.mrb[0].mxu0
        %1478 = vmatprep.mubr.bf16.mxu0 %v777
        %1479 = vmatmul.mubr.bf16.gmra.mrb[0].mxu0 %v776
        %v1480 = vpop.f32.mrb[0].mxu0
        %v1481 = vadd.f32 %v988, %v1480
        %v1482 = vpop.f32.mrb[0].mxu0
        %v1483 = vpop.f32.mrb[0].mxu0
        %v1484 = vadd.f32 %v988, %v1483
        %v1485 = vpop.f32.mrb[0].mxu0
        %1486 = vmatprep.mubr.bf16.mxu0 %v786
        %1487 = vmatmul.mubr.bf16.gmra.mrb[0].mxu0 %v785
        %v1488 = vpop.f32.mrb[0].mxu0
        %v1489 = vadd.f32 %v988, %v1488
        %v1490 = vpop.f32.mrb[0].mxu0
        %v1491 = vpop.f32.mrb[0].mxu0
        %v1492 = vadd.f32 %v988, %v1491
        %v1493 = vpop.f32.mrb[0].mxu0
        %1494 = vmatprep.mubr.bf16.mxu0 %v795
        %1495 = vmatmul.mubr.bf16.gmra.mrb[0].mxu0 %v794
        %v1496 = vpop.f32.mrb[0].mxu0
        %v1497 = vadd.f32 %v988, %v1496
        %v1498 = vpop.f32.mrb[0].mxu0
        %v1499 = vpop.f32.mrb[0].mxu0
        %v1500 = vadd.f32 %v988, %v1499
        %v1501 = vpop.f32.mrb[0].mxu0
        %1502 = vmatprep.mubr.bf16.mxu0 %v804
        %1503 = vmatmul.mubr.bf16.gmra.mrb[0].mxu0 %v803
        %v1504 = vpop.f32.mrb[0].mxu0
        %v1505 = vadd.f32 %v988, %v1504
        %v1506 = vpop.f32.mrb[0].mxu0
        %v1507 = vpop.f32.mrb[0].mxu0
        %v1508 = vadd.f32 %v988, %v1507
        %v1509 = vpop.f32.mrb[0].mxu0
        %1510 = vmatprep.mubr.bf16.mxu0 %v813
        %1511 = vmatmul.mubr.bf16.gmra.mrb[0].mxu0 %v812
        %v1512 = vpop.f32.mrb[0].mxu0
        %v1513 = vadd.f32 %v988, %v1512
        %v1514 = vpop.f32.mrb[0].mxu0
        %v1515 = vpop.f32.mrb[0].mxu0
        %v1516 = vadd.f32 %v988, %v1515
        %v1517 = vpop.f32.mrb[0].mxu0
        %1518 = vmatprep.mubr.bf16.mxu0 %v822
        %1519 = vmatmul.mubr.bf16.gmra.mrb[0].mxu0 %v821
        %v1520 = vpop.f32.mrb[0].mxu0
        %v1521 = vadd.f32 %v988, %v1520
        %v1522 = vpop.f32.mrb[0].mxu0
        %v1523 = vpop.f32.mrb[0].mxu0
        %v1524 = vadd.f32 %v988, %v1523
        %v1525 = vpop.f32.mrb[0].mxu0
        %1526 = vmatprep.mubr.bf16.mxu0 %v831
        %1527 = vmatmul.mubr.bf16.gmra.mrb[0].mxu0 %v830
        %v1528 = vpop.f32.mrb[0].mxu0
        %v1529 = vadd.f32 %v988, %v1528
        %v1530 = vpop.f32.mrb[0].mxu0
        %v1531 = vpop.f32.mrb[0].mxu0
        %v1532 = vadd.f32 %v988, %v1531
        %v1533 = vpop.f32.mrb[0].mxu0
        %1534 = vdwg.mxu0
        %1535 = vmatprep.subr.bf16.mxu0 0
        %1536 = vmatpush1.bf16.msra.mxu0 %v1294
        %1537 = vmatprep.subr.bf16.mxu0 0
        %1538 = vmatpush1.bf16.msra.mxu0 %v1295
        %1539 = vmatprep.subr.bf16.mxu0 0
        %1540 = vmatpush1.bf16.msra.mxu0 %v1296
        %1541 = vmatprep.subr.bf16.mxu0 0
        %1542 = vmatpush1.bf16.msra.mxu0 %v1297
        %1543 = vmatprep.subr.bf16.mxu0 0
        %1544 = vmatpush1.bf16.msra.mxu0 %v1298
        %1545 = vmatprep.subr.bf16.mxu0 0
        %1546 = vmatpush1.bf16.msra.mxu0 %v1299
        %1547 = vmatprep.subr.bf16.mxu0 0
        %1548 = vmatpush1.bf16.msra.mxu0 %v1300
        %1549 = vmatprep.subr.bf16.mxu0 0
        %1550 = vmatpush1.bf16.msra.mxu0 %v1301
        %1551 = vmatprep.subr.bf16.mxu0 0
        %1552 = vmatpush1.bf16.msra.mxu0 %v1302
        %1553 = vmatprep.subr.bf16.mxu0 0
        %1554 = vmatpush1.bf16.msra.mxu0 %v1303
        %1555 = vmatprep.subr.bf16.mxu0 0
        %1556 = vmatpush1.bf16.msra.mxu0 %v1304
        %1557 = vmatprep.subr.bf16.mxu0 0
        %1558 = vmatpush1.bf16.msra.mxu0 %v1305
        %1559 = vmatprep.subr.bf16.mxu0 0
        %1560 = vmatpush1.bf16.msra.mxu0 %v1306
        %1561 = vmatprep.subr.bf16.mxu0 0
        %1562 = vmatpush1.bf16.msra.mxu0 %v1307
        %1563 = vmatprep.subr.bf16.mxu0 0
        %1564 = vmatpush1.bf16.msra.mxu0 %v1308
        %1565 = vmatprep.subr.bf16.mxu0 0
        %1566 = vmatpush1.bf16.msra.mxu0 %v1309
        %1567 = vmatprep.mubr.bf16.mxu0 %v752
        %1568 = vmatmul.mubr.bf16.gmra.mrb[0].mxu0 %v751
        %v1569 = vpop.f32.mrb[0].mxu0
        %v1570 = vadd.f32 %v1457, %v1569
        %v1571 = vpop.f32.mrb[0].mxu0
        %v1572 = vpop.f32.mrb[0].mxu0
        %v1573 = vadd.f32 %v1460, %v1572
        %v1574 = vpop.f32.mrb[0].mxu0
        %1575 = vmatprep.mubr.bf16.mxu0 %v761
        %1576 = vmatmul.mubr.bf16.gmra.mrb[0].mxu0 %v760
        %v1577 = vpop.f32.mrb[0].mxu0
        %v1578 = vadd.f32 %v1465, %v1577
        %v1579 = vpop.f32.mrb[0].mxu0
        %v1580 = vpop.f32.mrb[0].mxu0
        %v1581 = vadd.f32 %v1468, %v1580
        %v1582 = vpop.f32.mrb[0].mxu0
        %1583 = vmatprep.mubr.bf16.mxu0 %v770
        %1584 = vmatmul.mubr.bf16.gmra.mrb[0].mxu0 %v769
        %v1585 = vpop.f32.mrb[0].mxu0
        %v1586 = vadd.f32 %v1473, %v1585
        %v1587 = vpop.f32.mrb[0].mxu0
        %v1588 = vpop.f32.mrb[0].mxu0
        %v1589 = vadd.f32 %v1476, %v1588
        %v1590 = vpop.f32.mrb[0].mxu0
        %1591 = vmatprep.mubr.bf16.mxu0 %v779
        %1592 = vmatmul.mubr.bf16.gmra.mrb[0].mxu0 %v778
        %v1593 = vpop.f32.mrb[0].mxu0
        %v1594 = vadd.f32 %v1481, %v1593
        %v1595 = vpop.f32.mrb[0].mxu0
        %v1596 = vpop.f32.mrb[0].mxu0
        %v1597 = vadd.f32 %v1484, %v1596
        %v1598 = vpop.f32.mrb[0].mxu0
        %1599 = vmatprep.mubr.bf16.mxu0 %v788
        %1600 = vmatmul.mubr.bf16.gmra.mrb[0].mxu0 %v787
        %v1601 = vpop.f32.mrb[0].mxu0
        %v1602 = vadd.f32 %v1489, %v1601
        %v1603 = vpop.f32.mrb[0].mxu0
        %v1604 = vpop.f32.mrb[0].mxu0
        %v1605 = vadd.f32 %v1492, %v1604
        %v1606 = vpop.f32.mrb[0].mxu0
        %1607 = vmatprep.mubr.bf16.mxu0 %v797
        %1608 = vmatmul.mubr.bf16.gmra.mrb[0].mxu0 %v796
        %v1609 = vpop.f32.mrb[0].mxu0
        %v1610 = vadd.f32 %v1497, %v1609
        %v1611 = vpop.f32.mrb[0].mxu0
        %v1612 = vpop.f32.mrb[0].mxu0
        %v1613 = vadd.f32 %v1500, %v1612
        %v1614 = vpop.f32.mrb[0].mxu0
        %1615 = vmatprep.mubr.bf16.mxu0 %v806
        %1616 = vmatmul.mubr.bf16.gmra.mrb[0].mxu0 %v805
        %v1617 = vpop.f32.mrb[0].mxu0
        %v1618 = vadd.f32 %v1505, %v1617
        %v1619 = vpop.f32.mrb[0].mxu0
        %v1620 = vpop.f32.mrb[0].mxu0
        %v1621 = vadd.f32 %v1508, %v1620
        %v1622 = vpop.f32.mrb[0].mxu0
        %1623 = vmatprep.mubr.bf16.mxu0 %v815
        %1624 = vmatmul.mubr.bf16.gmra.mrb[0].mxu0 %v814
        %v1625 = vpop.f32.mrb[0].mxu0
        %v1626 = vadd.f32 %v1513, %v1625
        %v1627 = vpop.f32.mrb[0].mxu0
        %v1628 = vpop.f32.mrb[0].mxu0
        %v1629 = vadd.f32 %v1516, %v1628
        %v1630 = vpop.f32.mrb[0].mxu0
        %1631 = vmatprep.mubr.bf16.mxu0 %v824
        %1632 = vmatmul.mubr.bf16.gmra.mrb[0].mxu0 %v823
        %v1633 = vpop.f32.mrb[0].mxu0
        %v1634 = vadd.f32 %v1521, %v1633
        %v1635 = vpop.f32.mrb[0].mxu0
        %v1636 = vpop.f32.mrb[0].mxu0
        %v1637 = vadd.f32 %v1524, %v1636
        %v1638 = vpop.f32.mrb[0].mxu0
        %1639 = vmatprep.mubr.bf16.mxu0 %v833
        %1640 = vmatmul.mubr.bf16.gmra.mrb[0].mxu0 %v832
        %v1641 = vpop.f32.mrb[0].mxu0
        %v1642 = vadd.f32 %v1529, %v1641
        %v1643 = vpop.f32.mrb[0].mxu0
        %v1644 = vpop.f32.mrb[0].mxu0
        %v1645 = vadd.f32 %v1532, %v1644
        %v1646 = vpop.f32.mrb[0].mxu0
        %1647 = vdwg.mxu0
        %1648 = vmatprep.subr.bf16.mxu0 0
        %1649 = vmatpush1.bf16.msra.mxu0 %v1310
        %1650 = vmatprep.subr.bf16.mxu0 0
        %1651 = vmatpush1.bf16.msra.mxu0 %v1311
        %1652 = vmatprep.subr.bf16.mxu0 0
        %1653 = vmatpush1.bf16.msra.mxu0 %v1312
        %1654 = vmatprep.subr.bf16.mxu0 0
        %1655 = vmatpush1.bf16.msra.mxu0 %v1313
        %1656 = vmatprep.subr.bf16.mxu0 0
        %1657 = vmatpush1.bf16.msra.mxu0 %v1314
        %1658 = vmatprep.subr.bf16.mxu0 0
        %1659 = vmatpush1.bf16.msra.mxu0 %v1315
        %1660 = vmatprep.subr.bf16.mxu0 0
        %1661 = vmatpush1.bf16.msra.mxu0 %v1316
        %1662 = vmatprep.subr.bf16.mxu0 0
        %1663 = vmatpush1.bf16.msra.mxu0 %v1317
        %1664 = vmatprep.subr.bf16.mxu0 0
        %1665 = vmatpush1.bf16.msra.mxu0 %v1318
        %1666 = vmatprep.subr.bf16.mxu0 0
        %1667 = vmatpush1.bf16.msra.mxu0 %v1319
        %1668 = vmatprep.subr.bf16.mxu0 0
        %1669 = vmatpush1.bf16.msra.mxu0 %v1320
        %1670 = vmatprep.subr.bf16.mxu0 0
        %1671 = vmatpush1.bf16.msra.mxu0 %v1321
        %1672 = vmatprep.subr.bf16.mxu0 0
        %1673 = vmatpush1.bf16.msra.mxu0 %v1322
        %1674 = vmatprep.subr.bf16.mxu0 0
        %1675 = vmatpush1.bf16.msra.mxu0 %v1323
        %1676 = vmatprep.subr.bf16.mxu0 0
        %1677 = vmatpush1.bf16.msra.mxu0 %v1324
        %1678 = vmatprep.subr.bf16.mxu0 0
        %1679 = vmatpush1.bf16.msra.mxu0 %v1325
        %1680 = vmatprep.mubr.bf16.mxu0 %v754
        %1681 = vmatmul.mubr.bf16.gmra.mrb[0].mxu0 %v753
        %v1682 = vpop.f32.mrb[0].mxu0
        %v1683 = vadd.f32 %v1570, %v1682
        %v1684 = vpop.f32.mrb[0].mxu0
        %v1685 = vpop.f32.mrb[0].mxu0
        %v1686 = vadd.f32 %v1573, %v1685
        %v1687 = vpop.f32.mrb[0].mxu0
        %1688 = vmatprep.mubr.bf16.mxu0 %v763
        %1689 = vmatmul.mubr.bf16.gmra.mrb[0].mxu0 %v762
        %v1690 = vpop.f32.mrb[0].mxu0
        %v1691 = vadd.f32 %v1578, %v1690
        %v1692 = vpop.f32.mrb[0].mxu0
        %v1693 = vpop.f32.mrb[0].mxu0
        %v1694 = vadd.f32 %v1581, %v1693
        %v1695 = vpop.f32.mrb[0].mxu0
        %1696 = vmatprep.mubr.bf16.mxu0 %v772
        %1697 = vmatmul.mubr.bf16.gmra.mrb[0].mxu0 %v771
        %v1698 = vpop.f32.mrb[0].mxu0
        %v1699 = vadd.f32 %v1586, %v1698
        %v1700 = vpop.f32.mrb[0].mxu0
        %v1701 = vpop.f32.mrb[0].mxu0
        %v1702 = vadd.f32 %v1589, %v1701
        %v1703 = vpop.f32.mrb[0].mxu0
        %1704 = vmatprep.mubr.bf16.mxu0 %v781
        %1705 = vmatmul.mubr.bf16.gmra.mrb[0].mxu0 %v780
        %v1706 = vpop.f32.mrb[0].mxu0
        %v1707 = vadd.f32 %v1594, %v1706
        %v1708 = vpop.f32.mrb[0].mxu0
        %v1709 = vpop.f32.mrb[0].mxu0
        %v1710 = vadd.f32 %v1597, %v1709
        %v1711 = vpop.f32.mrb[0].mxu0
        %1712 = vmatprep.mubr.bf16.mxu0 %v790
        %1713 = vmatmul.mubr.bf16.gmra.mrb[0].mxu0 %v789
        %v1714 = vpop.f32.mrb[0].mxu0
        %v1715 = vadd.f32 %v1602, %v1714
        %v1716 = vpop.f32.mrb[0].mxu0
        %v1717 = vpop.f32.mrb[0].mxu0
        %v1718 = vadd.f32 %v1605, %v1717
        %v1719 = vpop.f32.mrb[0].mxu0
        %1720 = vmatprep.mubr.bf16.mxu0 %v799
        %1721 = vmatmul.mubr.bf16.gmra.mrb[0].mxu0 %v798
        %v1722 = vpop.f32.mrb[0].mxu0
        %v1723 = vadd.f32 %v1610, %v1722
        %v1724 = vpop.f32.mrb[0].mxu0
        %v1725 = vpop.f32.mrb[0].mxu0
        %v1726 = vadd.f32 %v1613, %v1725
        %v1727 = vpop.f32.mrb[0].mxu0
        %1728 = vmatprep.mubr.bf16.mxu0 %v808
        %1729 = vmatmul.mubr.bf16.gmra.mrb[0].mxu0 %v807
        %v1730 = vpop.f32.mrb[0].mxu0
        %v1731 = vadd.f32 %v1618, %v1730
        %v1732 = vpop.f32.mrb[0].mxu0
        %v1733 = vpop.f32.mrb[0].mxu0
        %v1734 = vadd.f32 %v1621, %v1733
        %v1735 = vpop.f32.mrb[0].mxu0
        %1736 = vmatprep.mubr.bf16.mxu0 %v817
        %1737 = vmatmul.mubr.bf16.gmra.mrb[0].mxu0 %v816
        %v1738 = vpop.f32.mrb[0].mxu0
        %v1739 = vadd.f32 %v1626, %v1738
        %v1740 = vpop.f32.mrb[0].mxu0
        %v1741 = vpop.f32.mrb[0].mxu0
        %v1742 = vadd.f32 %v1629, %v1741
        %v1743 = vpop.f32.mrb[0].mxu0
        %1744 = vmatprep.mubr.bf16.mxu0 %v826
        %1745 = vmatmul.mubr.bf16.gmra.mrb[0].mxu0 %v825
        %v1746 = vpop.f32.mrb[0].mxu0
        %v1747 = vadd.f32 %v1634, %v1746
        %v1748 = vpop.f32.mrb[0].mxu0
        %v1749 = vpop.f32.mrb[0].mxu0
        %v1750 = vadd.f32 %v1637, %v1749
        %v1751 = vpop.f32.mrb[0].mxu0
        %1752 = vmatprep.mubr.bf16.mxu0 %v835
        %1753 = vmatmul.mubr.bf16.gmra.mrb[0].mxu0 %v834
        %v1754 = vpop.f32.mrb[0].mxu0
        %v1755 = vadd.f32 %v1642, %v1754
        %v1756 = vpop.f32.mrb[0].mxu0
        %v1757 = vpop.f32.mrb[0].mxu0
        %v1758 = vadd.f32 %v1645, %v1757
        %v1759 = vpop.f32.mrb[0].mxu0
        %1760 = vdwg.mxu0
        %1761 = vmatprep.subr.bf16.mxu0 0
        %1762 = vmatpush1.bf16.msra.mxu0 %v1326
        %1763 = vmatprep.subr.bf16.mxu0 0
        %1764 = vmatpush1.bf16.msra.mxu0 %v1327
        %1765 = vmatprep.subr.bf16.mxu0 0
        %1766 = vmatpush1.bf16.msra.mxu0 %v1328
        %1767 = vmatprep.subr.bf16.mxu0 0
        %1768 = vmatpush1.bf16.msra.mxu0 %v1329
        %1769 = vmatprep.subr.bf16.mxu0 0
        %1770 = vmatpush1.bf16.msra.mxu0 %v1330
        %1771 = vmatprep.subr.bf16.mxu0 0
        %1772 = vmatpush1.bf16.msra.mxu0 %v1331
        %1773 = vmatprep.subr.bf16.mxu0 0
        %1774 = vmatpush1.bf16.msra.mxu0 %v1332
        %1775 = vmatprep.subr.bf16.mxu0 0
        %1776 = vmatpush1.bf16.msra.mxu0 %v1333
        %1777 = vmatprep.subr.bf16.mxu0 0
        %1778 = vmatpush1.bf16.msra.mxu0 %v1334
        %1779 = vmatprep.subr.bf16.mxu0 0
        %1780 = vmatpush1.bf16.msra.mxu0 %v1335
        %1781 = vmatprep.subr.bf16.mxu0 0
        %1782 = vmatpush1.bf16.msra.mxu0 %v1336
        %1783 = vmatprep.subr.bf16.mxu0 0
        %1784 = vmatpush1.bf16.msra.mxu0 %v1337
        %1785 = vmatprep.subr.bf16.mxu0 0
        %1786 = vmatpush1.bf16.msra.mxu0 %v1338
        %1787 = vmatprep.subr.bf16.mxu0 0
        %1788 = vmatpush1.bf16.msra.mxu0 %v1339
        %1789 = vmatprep.subr.bf16.mxu0 0
        %1790 = vmatpush1.bf16.msra.mxu0 %v1340
        %1791 = vmatprep.subr.bf16.mxu0 0
        %1792 = vmatpush1.bf16.msra.mxu0 %v1341
        %1793 = vmatprep.mubr.bf16.mxu0 %v756
        %1794 = vmatmul.mubr.bf16.gmra.mrb[0].mxu0 %v755
        %v1795 = vpop.f32.mrb[0].mxu0
        %v1796 = vadd.f32 %v1683, %v1795
        %v1797 = vpop.f32.mrb[0].mxu0
        %v1798 = vpop.f32.mrb[0].mxu0
        %v1799 = vadd.f32 %v1686, %v1798
        %v1800 = vpop.f32.mrb[0].mxu0
        %1801 = vmatprep.mubr.bf16.mxu0 %v765
        %1802 = vmatmul.mubr.bf16.gmra.mrb[0].mxu0 %v764
        %v1803 = vpop.f32.mrb[0].mxu0
        %v1804 = vadd.f32 %v1691, %v1803
        %v1805 = vpop.f32.mrb[0].mxu0
        %v1806 = vpop.f32.mrb[0].mxu0
        %v1807 = vadd.f32 %v1694, %v1806
        %v1808 = vpop.f32.mrb[0].mxu0
        %1809 = vmatprep.mubr.bf16.mxu0 %v774
        %1810 = vmatmul.mubr.bf16.gmra.mrb[0].mxu0 %v773
        %v1811 = vpop.f32.mrb[0].mxu0
        %v1812 = vadd.f32 %v1699, %v1811
        %v1813 = vpop.f32.mrb[0].mxu0
        %v1814 = vpop.f32.mrb[0].mxu0
        %v1815 = vadd.f32 %v1702, %v1814
        %v1816 = vpop.f32.mrb[0].mxu0
        %1817 = vmatprep.mubr.bf16.mxu0 %v783
        %1818 = vmatmul.mubr.bf16.gmra.mrb[0].mxu0 %v782
        %v1819 = vpop.f32.mrb[0].mxu0
        %v1820 = vadd.f32 %v1707, %v1819
        %v1821 = vpop.f32.mrb[0].mxu0
        %v1822 = vpop.f32.mrb[0].mxu0
        %v1823 = vadd.f32 %v1710, %v1822
        %v1824 = vpop.f32.mrb[0].mxu0
        %1825 = vmatprep.mubr.bf16.mxu0 %v792
        %1826 = vmatmul.mubr.bf16.gmra.mrb[0].mxu0 %v791
        %v1827 = vpop.f32.mrb[0].mxu0
        %v1828 = vadd.f32 %v1715, %v1827
        %v1829 = vpop.f32.mrb[0].mxu0
        %v1830 = vpop.f32.mrb[0].mxu0
        %v1831 = vadd.f32 %v1718, %v1830
        %v1832 = vpop.f32.mrb[0].mxu0
        %1833 = vmatprep.mubr.bf16.mxu0 %v801
        %1834 = vmatmul.mubr.bf16.gmra.mrb[0].mxu0 %v800
        %v1835 = vpop.f32.mrb[0].mxu0
        %v1836 = vadd.f32 %v1723, %v1835
        %v1837 = vpop.f32.mrb[0].mxu0
        %v1838 = vpop.f32.mrb[0].mxu0
        %v1839 = vadd.f32 %v1726, %v1838
        %v1840 = vpop.f32.mrb[0].mxu0
        %1841 = vmatprep.mubr.bf16.mxu0 %v810
        %1842 = vmatmul.mubr.bf16.gmra.mrb[0].mxu0 %v809
        %v1843 = vpop.f32.mrb[0].mxu0
        %v1844 = vadd.f32 %v1731, %v1843
        %v1845 = vpop.f32.mrb[0].mxu0
        %v1846 = vpop.f32.mrb[0].mxu0
        %v1847 = vadd.f32 %v1734, %v1846
        %v1848 = vpop.f32.mrb[0].mxu0
        %1849 = vmatprep.mubr.bf16.mxu0 %v819
        %1850 = vmatmul.mubr.bf16.gmra.mrb[0].mxu0 %v818
        %v1851 = vpop.f32.mrb[0].mxu0
        %v1852 = vadd.f32 %v1739, %v1851
        %v1853 = vpop.f32.mrb[0].mxu0
        %v1854 = vpop.f32.mrb[0].mxu0
        %v1855 = vadd.f32 %v1742, %v1854
        %v1856 = vpop.f32.mrb[0].mxu0
        %1857 = vmatprep.mubr.bf16.mxu0 %v828
        %1858 = vmatmul.mubr.bf16.gmra.mrb[0].mxu0 %v827
        %v1859 = vpop.f32.mrb[0].mxu0
        %v1860 = vadd.f32 %v1747, %v1859
        %v1861 = vpop.f32.mrb[0].mxu0
        %v1862 = vpop.f32.mrb[0].mxu0
        %v1863 = vadd.f32 %v1750, %v1862
        %v1864 = vpop.f32.mrb[0].mxu0
        %1865 = vmatprep.mubr.bf16.mxu0 %v837
        %1866 = vmatmul.mubr.bf16.gmra.mrb[0].mxu0 %v836
        %v1867 = vpop.f32.mrb[0].mxu0
        %v1868 = vadd.f32 %v1755, %v1867
        %v1869 = vpop.f32.mrb[0].mxu0
        %v1870 = vpop.f32.mrb[0].mxu0
        %v1871 = vadd.f32 %v1758, %v1870
        %v1872 = vpop.f32.mrb[0].mxu0
        %1873 = vdwg.mxu0
        %1874 = vmatprep.subr.bf16.mxu0 0
        %1875 = vmatpush1.bf16.msra.mxu0 %v1342
        %1876 = vmatprep.subr.bf16.mxu0 0
        %1877 = vmatpush1.bf16.msra.mxu0 %v1343
        %1878 = vmatprep.subr.bf16.mxu0 0
        %1879 = vmatpush1.bf16.msra.mxu0 %v1344
        %1880 = vmatprep.subr.bf16.mxu0 0
        %1881 = vmatpush1.bf16.msra.mxu0 %v1345
        %1882 = vmatprep.subr.bf16.mxu0 0
        %1883 = vmatpush1.bf16.msra.mxu0 %v1346
        %1884 = vmatprep.subr.bf16.mxu0 0
        %1885 = vmatpush1.bf16.msra.mxu0 %v1347
        %1886 = vmatprep.subr.bf16.mxu0 0
        %1887 = vmatpush1.bf16.msra.mxu0 %v1348
        %1888 = vmatprep.subr.bf16.mxu0 0
        %1889 = vmatpush1.bf16.msra.mxu0 %v1349
        %1890 = vmatprep.subr.bf16.mxu0 0
        %1891 = vmatpush1.bf16.msra.mxu0 0
        %1892 = vmatprep.subr.bf16.mxu0 0
        %1893 = vmatpush1.bf16.msra.mxu0 0
        %1894 = vmatprep.subr.bf16.mxu0 0
        %1895 = vmatpush1.bf16.msra.mxu0 0
        %1896 = vmatprep.subr.bf16.mxu0 0
        %1897 = vmatpush1.bf16.msra.mxu0 0
        %1898 = vmatprep.subr.bf16.mxu0 0
        %1899 = vmatpush1.bf16.msra.mxu0 0
        %1900 = vmatprep.subr.bf16.mxu0 0
        %1901 = vmatpush1.bf16.msra.mxu0 0
        %1902 = vmatprep.subr.bf16.mxu0 0
        %1903 = vmatpush1.bf16.msra.mxu0 0
        %1904 = vmatprep.subr.bf16.mxu0 0
        %1905 = vmatpush1.bf16.msra.mxu0 0
        %1906 = vmatprep.mubr.bf16.mxu0 0
        %1907 = vmatmul.mubr.bf16.gmra.mrb[0].mxu0 %v757
        %v1908 = vpop.f32.mrb[0].mxu0
        %v1909 = vadd.f32 %v1796, %v1908
        %v1910 = vpop.f32.mrb[0].mxu0
        %v1911 = vpop.f32.mrb[0].mxu0
        %v1912 = vadd.f32 %v1799, %v1911
        %v1913 = vpop.f32.mrb[0].mxu0
        %1914 = vmatprep.mubr.bf16.mxu0 0
        %1915 = vmatmul.mubr.bf16.gmra.mrb[0].mxu0 %v766
        %v1916 = vpop.f32.mrb[0].mxu0
        %v1917 = vadd.f32 %v1804, %v1916
        %v1918 = vpop.f32.mrb[0].mxu0
        %v1919 = vpop.f32.mrb[0].mxu0
        %v1920 = vadd.f32 %v1807, %v1919
        %v1921 = vpop.f32.mrb[0].mxu0
        %1922 = vmatprep.mubr.bf16.mxu0 0
        %1923 = vmatmul.mubr.bf16.gmra.mrb[0].mxu0 %v775
        %v1924 = vpop.f32.mrb[0].mxu0
        %v1925 = vadd.f32 %v1812, %v1924
        %v1926 = vpop.f32.mrb[0].mxu0
        %v1927 = vpop.f32.mrb[0].mxu0
        %v1928 = vadd.f32 %v1815, %v1927
        %v1929 = vpop.f32.mrb[0].mxu0
        %1930 = vmatprep.mubr.bf16.mxu0 0
        %1931 = vmatmul.mubr.bf16.gmra.mrb[0].mxu0 %v784
        %v1932 = vpop.f32.mrb[0].mxu0
        %v1933 = vadd.f32 %v1820, %v1932
        %v1934 = vpop.f32.mrb[0].mxu0
        %v1935 = vpop.f32.mrb[0].mxu0
        %v1936 = vadd.f32 %v1823, %v1935
        %v1937 = vpop.f32.mrb[0].mxu0
        %1938 = vmatprep.mubr.bf16.mxu0 0
        %1939 = vmatmul.mubr.bf16.gmra.mrb[0].mxu0 %v793
        %v1940 = vpop.f32.mrb[0].mxu0
        %v1941 = vadd.f32 %v1828, %v1940
        %v1942 = vpop.f32.mrb[0].mxu0
        %v1943 = vpop.f32.mrb[0].mxu0
        %v1944 = vadd.f32 %v1831, %v1943
        %v1945 = vpop.f32.mrb[0].mxu0
        %1946 = vmatprep.mubr.bf16.mxu0 0
        %1947 = vmatmul.mubr.bf16.gmra.mrb[0].mxu0 %v802
        %v1948 = vpop.f32.mrb[0].mxu0
        %v1949 = vadd.f32 %v1836, %v1948
        %v1950 = vpop.f32.mrb[0].mxu0
        %v1951 = vpop.f32.mrb[0].mxu0
        %v1952 = vadd.f32 %v1839, %v1951
        %v1953 = vpop.f32.mrb[0].mxu0
        %1954 = vmatprep.mubr.bf16.mxu0 0
        %1955 = vmatmul.mubr.bf16.gmra.mrb[0].mxu0 %v811
        %v1956 = vpop.f32.mrb[0].mxu0
        %v1957 = vadd.f32 %v1844, %v1956
        %v1958 = vpop.f32.mrb[0].mxu0
        %v1959 = vpop.f32.mrb[0].mxu0
        %v1960 = vadd.f32 %v1847, %v1959
        %v1961 = vpop.f32.mrb[0].mxu0
        %1962 = vmatprep.mubr.bf16.mxu0 0
        %1963 = vmatmul.mubr.bf16.gmra.mrb[0].mxu0 %v820
        %v1964 = vpop.f32.mrb[0].mxu0
        %v1965 = vadd.f32 %v1852, %v1964
        %v1966 = vpop.f32.mrb[0].mxu0
        %v1967 = vpop.f32.mrb[0].mxu0
        %v1968 = vadd.f32 %v1855, %v1967
        %v1969 = vpop.f32.mrb[0].mxu0
        %1970 = vmatprep.mubr.bf16.mxu0 0
        %1971 = vmatmul.mubr.bf16.gmra.mrb[0].mxu0 %v829
        %v1972 = vpop.f32.mrb[0].mxu0
        %v1973 = vadd.f32 %v1860, %v1972
        %v1974 = vpop.f32.mrb[0].mxu0
        %v1975 = vpop.f32.mrb[0].mxu0
        %v1976 = vadd.f32 %v1863, %v1975
        %v1977 = vpop.f32.mrb[0].mxu0
        %1978 = vmatprep.mubr.bf16.mxu0 0
        %1979 = vmatmul.mubr.bf16.gmra.mrb[0].mxu0 %v838
        %v1980 = vpop.f32.mrb[0].mxu0
        %v1981 = vadd.f32 %v1868, %v1980
        %v1982 = vpop.f32.mrb[0].mxu0
        %v1983 = vpop.f32.mrb[0].mxu0
        %v1984 = vadd.f32 %v1871, %v1983
        %v1985 = vpop.f32.mrb[0].mxu0
        %1986 = vdwg.mxu0
        %v1987 = vmax.f32 %v1909, 0.0
        %v1988 = vmax.f32 %v1912, 0.0
        %v1989 = vmax.f32 %v1917, 0.0
        %v1990 = vmax.f32 %v1920, 0.0
        %v1991 = vmax.f32 %v1925, 0.0
        %v1992 = vmax.f32 %v1928, 0.0
        %v1993 = vmax.f32 %v1933, 0.0
        %v1994 = vmax.f32 %v1936, 0.0
        %v1995 = vmax.f32 %v1941, 0.0
        %v1996 = vmax.f32 %v1944, 0.0
        %v1997 = vmax.f32 %v1949, 0.0
        %v1998 = vmax.f32 %v1952, 0.0
        %v1999 = vmax.f32 %v1957, 0.0
        %v2000 = vmax.f32 %v1960, 0.0
        %v2001 = vmax.f32 %v1965, 0.0
        %v2002 = vmax.f32 %v1968, 0.0
        %v2003 = vmax.f32 %v1973, 0.0
        %v2004 = vmax.f32 %v1976, 0.0
        %v2005 = vmax.f32 %v1981, 0.0
        %v2006 = vmax.f32 %v1984, 0.0
        %2007 = vst [vmem:[#allocation3] sm:$0x1] 0.0
        %2008 = vst [vmem:[#allocation3 + $0x18] sm:$0x1] 0.0
        %2009 = vst [vmem:[#allocation3 + $0x30] sm:$0x1] 0.0
        %2010 = vst [vmem:[#allocation3 + $0x48] sm:$0x1] 0.0
        %2011 = vst [vmem:[#allocation3 + $0x60] sm:$0x1] 0.0
        %2012 = vst [vmem:[#allocation3 + $0x78] sm:$0x1] 0.0
        %2013 = vst [vmem:[#allocation3 + $0x90] sm:$0x1] 0.0
        %2014 = vst [vmem:[#allocation3 + $0xa8] sm:$0x1] 0.0
        %2015 = vst [vmem:[#allocation3 + $0xc0] sm:$0x1] 0.0
        %2016 = vst [vmem:[#allocation3 + $0xd8] sm:$0x1] 0.0
        %2017 = vst [vmem:[#allocation3 + $0x11] sm:$0x1] 0.0
        %2018 = vst [vmem:[#allocation3 + $0x29] sm:$0x1] 0.0
        %2019 = vst [vmem:[#allocation3 + $0x41] sm:$0x1] 0.0
        %2020 = vst [vmem:[#allocation3 + $0x59] sm:$0x1] 0.0
        %2021 = vst [vmem:[#allocation3 + $0x71] sm:$0x1] 0.0
        %2022 = vst [vmem:[#allocation3 + $0x89] sm:$0x1] 0.0
        %2023 = vst [vmem:[#allocation3 + $0xa1] sm:$0x1] 0.0
        %2024 = vst [vmem:[#allocation3 + $0xb9] sm:$0x1] 0.0
        %2025 = vst [vmem:[#allocation3 + $0xd1] sm:$0x1] 0.0
        %2026 = vst [vmem:[#allocation3 + $0xe9] sm:$0x1] 0.0
        %2027 = vst [vmem:[#allocation3 + $0x1] sm:$0xff] %v1987
        %2028 = vst [vmem:[#allocation3 + $0x9] sm:$0xff] %v1988
        %2029 = vst [vmem:[#allocation3 + $0x19] sm:$0xff] %v1989
        %2030 = vst [vmem:[#allocation3 + $0x21] sm:$0xff] %v1990
        %2031 = vst [vmem:[#allocation3 + $0x31] sm:$0xff] %v1991
        %2032 = vst [vmem:[#allocation3 + $0x39] sm:$0xff] %v1992
        %2033 = vst [vmem:[#allocation3 + $0x49] sm:$0xff] %v1993
        %2034 = vst [vmem:[#allocation3 + $0x51] sm:$0xff] %v1994
        %2035 = vst [vmem:[#allocation3 + $0x61] sm:$0xff] %v1995
        %2036 = vst [vmem:[#allocation3 + $0x69] sm:$0xff] %v1996
        %2037 = vst [vmem:[#allocation3 + $0x79] sm:$0xff] %v1997
        %2038 = vst [vmem:[#allocation3 + $0x81] sm:$0xff] %v1998
        %2039 = vst [vmem:[#allocation3 + $0x91] sm:$0xff] %v1999
        %2040 = vst [vmem:[#allocation3 + $0x99] sm:$0xff] %v2000
        %2041 = vst [vmem:[#allocation3 + $0xa9] sm:$0xff] %v2001
        %2042 = vst [vmem:[#allocation3 + $0xb1] sm:$0xff] %v2002
        %2043 = vst [vmem:[#allocation3 + $0xc1] sm:$0xff] %v2003
        %2044 = vst [vmem:[#allocation3 + $0xc9] sm:$0xff] %v2004
        %2045 = vst [vmem:[#allocation3 + $0xd9] sm:$0xff] %v2005
        %2046 = vst [vmem:[#allocation3 + $0xe1] sm:$0xff] %v2006
        // Predicated region
        $region61: #{tpu_custom_call.1} parent=39 // pred_check
          %p2047 = pneg %p355
        $region62: #{tpu_custom_call.1} parent=39 // pred_check_branch
          %2049 = sbr.rel (%p2047) target = $region64
        $region63: #{tpu_custom_call.1} parent=39 // pred_region
          %2050 = vst [vmem:[#allocation3 + $0x1] sm:$0xff] 0.0
          %2051 = vst [vmem:[#allocation3 + $0x9] sm:$0xff] 0.0
        $region64: #{tpu_custom_call.1} parent=39 // pred_fallthru
          _
        // Predicated region
        $region65: #{tpu_custom_call.1} parent=39 // pred_check
          %p2052 = pneg %p379
        $region66: #{tpu_custom_call.1} parent=39 // pred_check_branch
          %2054 = sbr.rel (%p2052) target = $region68
        $region67: #{tpu_custom_call.1} parent=39 // pred_region
          %s2055 = scalar_lea.vmem [#allocation3], 216
          %2056 = vst [vmem:[%s2055 + $0x1] sm:$0xff] 0.0
          %2057 = vst [vmem:[%s2055 + $0x9] sm:$0xff] 0.0
        $region68: #{tpu_custom_call.1} parent=39 // pred_fallthru
          _
        %v2058 = vld [vmem:[#allocation3] sm:$0xff]
        %v2059 = vld [vmem:[#allocation3 + $0x8] sm:$0xff]
        %v2060 = vld [vmem:[#allocation3 + $0x18] sm:$0xff]
        %v2061 = vld [vmem:[#allocation3 + $0x20] sm:$0xff]
        %v2062 = vld [vmem:[#allocation3 + $0x30] sm:$0xff]
        %v2063 = vld [vmem:[#allocation3 + $0x38] sm:$0xff]
        %v2064 = vld [vmem:[#allocation3 + $0x48] sm:$0xff]
        %v2065 = vld [vmem:[#allocation3 + $0x50] sm:$0xff]
        %v2066 = vld [vmem:[#allocation3 + $0x60] sm:$0xff]
        %v2067 = vld [vmem:[#allocation3 + $0x68] sm:$0xff]
        %v2068 = vld [vmem:[#allocation3 + $0x78] sm:$0xff]
        %v2069 = vld [vmem:[#allocation3 + $0x80] sm:$0xff]
        %v2070 = vld [vmem:[#allocation3 + $0x90] sm:$0xff]
        %v2071 = vld [vmem:[#allocation3 + $0x98] sm:$0xff]
        %v2072 = vld [vmem:[#allocation3 + $0xa8] sm:$0xff]
        %v2073 = vld [vmem:[#allocation3 + $0xb0] sm:$0xff]
        %v2074 = vpack.c.bf16 %v2059, %v2058
        %v2075 = vpack.c.bf16 %v2061, %v2060
        %v2076 = vpack.c.bf16 %v2063, %v2062
        %v2077 = vpack.c.bf16 %v2065, %v2064
        %v2078 = vpack.c.bf16 %v2067, %v2066
        %v2079 = vpack.c.bf16 %v2069, %v2068
        %v2080 = vpack.c.bf16 %v2071, %v2070
        %v2081 = vpack.c.bf16 %v2073, %v2072
        %2082 = vst [vmem:[#allocation4] sm:$0xff] %v2074
        %2083 = vst [vmem:[#allocation4 + $0x48] sm:$0xff] %v2075
        %2084 = vst [vmem:[#allocation4 + $0x90] sm:$0xff] %v2076
        %2085 = vst [vmem:[#allocation4 + $0xd8] sm:$0xff] %v2077
        %2086 = vst [vmem:[#allocation4 + $0x120] sm:$0xff] %v2078
        %2087 = vst [vmem:[#allocation4 + $0x168] sm:$0xff] %v2079
        %2088 = vst [vmem:[#allocation4 + $0x1b0] sm:$0xff] %v2080
        %2089 = vst [vmem:[#allocation4 + $0x1f8] sm:$0xff] %v2081
        %v2090 = vld [vmem:[#allocation3 + $0x1] sm:$0xff]
        %v2091 = vld [vmem:[#allocation3 + $0x9] sm:$0xff]
        %v2092 = vld [vmem:[#allocation3 + $0x19] sm:$0xff]
        %v2093 = vld [vmem:[#allocation3 + $0x21] sm:$0xff]
        %v2094 = vld [vmem:[#allocation3 + $0x31] sm:$0xff]
        %v2095 = vld [vmem:[#allocation3 + $0x39] sm:$0xff]
        %v2096 = vld [vmem:[#allocation3 + $0x49] sm:$0xff]
        %v2097 = vld [vmem:[#allocation3 + $0x51] sm:$0xff]
        %v2098 = vld [vmem:[#allocation3 + $0x61] sm:$0xff]
        %v2099 = vld [vmem:[#allocation3 + $0x69] sm:$0xff]
        %v2100 = vld [vmem:[#allocation3 + $0x79] sm:$0xff]
        %v2101 = vld [vmem:[#allocation3 + $0x81] sm:$0xff]
        %v2102 = vld [vmem:[#allocation3 + $0x91] sm:$0xff]
        %v2103 = vld [vmem:[#allocation3 + $0x99] sm:$0xff]
        %v2104 = vld [vmem:[#allocation3 + $0xa9] sm:$0xff]
        %v2105 = vld [vmem:[#allocation3 + $0xb1] sm:$0xff]
        %v2106 = vpack.c.bf16 %v2091, %v2090
        %v2107 = vpack.c.bf16 %v2093, %v2092
        %v2108 = vpack.c.bf16 %v2095, %v2094
        %v2109 = vpack.c.bf16 %v2097, %v2096
        %v2110 = vpack.c.bf16 %v2099, %v2098
        %v2111 = vpack.c.bf16 %v2101, %v2100
        %v2112 = vpack.c.bf16 %v2103, %v2102
        %v2113 = vpack.c.bf16 %v2105, %v2104
        %2114 = vst [vmem:[#allocation4 + $0x8] sm:$0xff] %v2106
        %2115 = vst [vmem:[#allocation4 + $0x50] sm:$0xff] %v2107
        %2116 = vst [vmem:[#allocation4 + $0x98] sm:$0xff] %v2108
        %2117 = vst [vmem:[#allocation4 + $0xe0] sm:$0xff] %v2109
        %2118 = vst [vmem:[#allocation4 + $0x128] sm:$0xff] %v2110
        %2119 = vst [vmem:[#allocation4 + $0x170] sm:$0xff] %v2111
        %2120 = vst [vmem:[#allocation4 + $0x1b8] sm:$0xff] %v2112
        %2121 = vst [vmem:[#allocation4 + $0x200] sm:$0xff] %v2113
        %v2122 = vld [vmem:[#allocation3 + $0x2] sm:$0xff]
        %v2123 = vld [vmem:[#allocation3 + $0xa] sm:$0xff]
        %v2124 = vld [vmem:[#allocation3 + $0x1a] sm:$0xff]
        %v2125 = vld [vmem:[#allocation3 + $0x22] sm:$0xff]
        %v2126 = vld [vmem:[#allocation3 + $0x32] sm:$0xff]
        %v2127 = vld [vmem:[#allocation3 + $0x3a] sm:$0xff]
        %v2128 = vld [vmem:[#allocation3 + $0x4a] sm:$0xff]
        %v2129 = vld [vmem:[#allocation3 + $0x52] sm:$0xff]
        %v2130 = vld [vmem:[#allocation3 + $0x62] sm:$0xff]
        %v2131 = vld [vmem:[#allocation3 + $0x6a] sm:$0xff]
        %v2132 = vld [vmem:[#allocation3 + $0x7a] sm:$0xff]
        %v2133 = vld [vmem:[#allocation3 + $0x82] sm:$0xff]
        %v2134 = vld [vmem:[#allocation3 + $0x92] sm:$0xff]
        %v2135 = vld [vmem:[#allocation3 + $0x9a] sm:$0xff]
        %v2136 = vld [vmem:[#allocation3 + $0xaa] sm:$0xff]
        %v2137 = vld [vmem:[#allocation3 + $0xb2] sm:$0xff]
        %v2138 = vpack.c.bf16 %v2123, %v2122
        %v2139 = vpack.c.bf16 %v2125, %v2124
        %v2140 = vpack.c.bf16 %v2127, %v2126
        %v2141 = vpack.c.bf16 %v2129, %v2128
        %v2142 = vpack.c.bf16 %v2131, %v2130
        %v2143 = vpack.c.bf16 %v2133, %v2132
        %v2144 = vpack.c.bf16 %v2135, %v2134
        %v2145 = vpack.c.bf16 %v2137, %v2136
        %2146 = vst [vmem:[#allocation4 + $0x10] sm:$0xff] %v2138
        %2147 = vst [vmem:[#allocation4 + $0x58] sm:$0xff] %v2139
        %2148 = vst [vmem:[#allocation4 + $0xa0] sm:$0xff] %v2140
        %2149 = vst [vmem:[#allocation4 + $0xe8] sm:$0xff] %v2141
        %2150 = vst [vmem:[#allocation4 + $0x130] sm:$0xff] %v2142
        %2151 = vst [vmem:[#allocation4 + $0x178] sm:$0xff] %v2143
        %2152 = vst [vmem:[#allocation4 + $0x1c0] sm:$0xff] %v2144
        %2153 = vst [vmem:[#allocation4 + $0x208] sm:$0xff] %v2145
        %s2154 = scalar_lea.vmem [#allocation3], 24
        %v2155 = vld [vmem:[%s2154] sm:$0xff]
        %v2156 = vld [vmem:[%s2154 + $0x8] sm:$0xff]
        %v2157 = vld [vmem:[%s2154 + $0x18] sm:$0xff]
        %v2158 = vld [vmem:[%s2154 + $0x20] sm:$0xff]
        %v2159 = vld [vmem:[%s2154 + $0x30] sm:$0xff]
        %v2160 = vld [vmem:[%s2154 + $0x38] sm:$0xff]
        %v2161 = vld [vmem:[%s2154 + $0x48] sm:$0xff]
        %v2162 = vld [vmem:[%s2154 + $0x50] sm:$0xff]
        %v2163 = vld [vmem:[%s2154 + $0x60] sm:$0xff]
        %v2164 = vld [vmem:[%s2154 + $0x68] sm:$0xff]
        %v2165 = vld [vmem:[%s2154 + $0x78] sm:$0xff]
        %v2166 = vld [vmem:[%s2154 + $0x80] sm:$0xff]
        %v2167 = vld [vmem:[%s2154 + $0x90] sm:$0xff]
        %v2168 = vld [vmem:[%s2154 + $0x98] sm:$0xff]
        %v2169 = vld [vmem:[%s2154 + $0xa8] sm:$0xff]
        %v2170 = vld [vmem:[%s2154 + $0xb0] sm:$0xff]
        %v2171 = vpack.c.bf16 %v2156, %v2155
        %v2172 = vpack.c.bf16 %v2158, %v2157
        %v2173 = vpack.c.bf16 %v2160, %v2159
        %v2174 = vpack.c.bf16 %v2162, %v2161
        %v2175 = vpack.c.bf16 %v2164, %v2163
        %v2176 = vpack.c.bf16 %v2166, %v2165
        %v2177 = vpack.c.bf16 %v2168, %v2167
        %v2178 = vpack.c.bf16 %v2170, %v2169
        %2179 = vst [vmem:[#allocation4 + $0x18] sm:$0xff] %v2171
        %2180 = vst [vmem:[#allocation4 + $0x60] sm:$0xff] %v2172
        %2181 = vst [vmem:[#allocation4 + $0xa8] sm:$0xff] %v2173
        %2182 = vst [vmem:[#allocation4 + $0xf0] sm:$0xff] %v2174
        %2183 = vst [vmem:[#allocation4 + $0x138] sm:$0xff] %v2175
        %2184 = vst [vmem:[#allocation4 + $0x180] sm:$0xff] %v2176
        %2185 = vst [vmem:[#allocation4 + $0x1c8] sm:$0xff] %v2177
        %2186 = vst [vmem:[#allocation4 + $0x210] sm:$0xff] %v2178
        %v2187 = vld [vmem:[%s2154 + $0x1] sm:$0xff]
        %v2188 = vld [vmem:[%s2154 + $0x9] sm:$0xff]
        %v2189 = vld [vmem:[%s2154 + $0x19] sm:$0xff]
        %v2190 = vld [vmem:[%s2154 + $0x21] sm:$0xff]
        %v2191 = vld [vmem:[%s2154 + $0x31] sm:$0xff]
        %v2192 = vld [vmem:[%s2154 + $0x39] sm:$0xff]
        %v2193 = vld [vmem:[%s2154 + $0x49] sm:$0xff]
        %v2194 = vld [vmem:[%s2154 + $0x51] sm:$0xff]
        %v2195 = vld [vmem:[%s2154 + $0x61] sm:$0xff]
        %v2196 = vld [vmem:[%s2154 + $0x69] sm:$0xff]
        %v2197 = vld [vmem:[%s2154 + $0x79] sm:$0xff]
        %v2198 = vld [vmem:[%s2154 + $0x81] sm:$0xff]
        %v2199 = vld [vmem:[%s2154 + $0x91] sm:$0xff]
        %v2200 = vld [vmem:[%s2154 + $0x99] sm:$0xff]
        %v2201 = vld [vmem:[%s2154 + $0xa9] sm:$0xff]
        %v2202 = vld [vmem:[%s2154 + $0xb1] sm:$0xff]
        %v2203 = vpack.c.bf16 %v2188, %v2187
        %v2204 = vpack.c.bf16 %v2190, %v2189
        %v2205 = vpack.c.bf16 %v2192, %v2191
        %v2206 = vpack.c.bf16 %v2194, %v2193
        %v2207 = vpack.c.bf16 %v2196, %v2195
        %v2208 = vpack.c.bf16 %v2198, %v2197
        %v2209 = vpack.c.bf16 %v2200, %v2199
        %v2210 = vpack.c.bf16 %v2202, %v2201
        %2211 = vst [vmem:[#allocation4 + $0x20] sm:$0xff] %v2203
        %2212 = vst [vmem:[#allocation4 + $0x68] sm:$0xff] %v2204
        %2213 = vst [vmem:[#allocation4 + $0xb0] sm:$0xff] %v2205
        %2214 = vst [vmem:[#allocation4 + $0xf8] sm:$0xff] %v2206
        %2215 = vst [vmem:[#allocation4 + $0x140] sm:$0xff] %v2207
        %2216 = vst [vmem:[#allocation4 + $0x188] sm:$0xff] %v2208
        %2217 = vst [vmem:[#allocation4 + $0x1d0] sm:$0xff] %v2209
        %2218 = vst [vmem:[#allocation4 + $0x218] sm:$0xff] %v2210
        %v2219 = vld [vmem:[%s2154 + $0x2] sm:$0xff]
        %v2220 = vld [vmem:[%s2154 + $0xa] sm:$0xff]
        %v2221 = vld [vmem:[%s2154 + $0x1a] sm:$0xff]
        %v2222 = vld [vmem:[%s2154 + $0x22] sm:$0xff]
        %v2223 = vld [vmem:[%s2154 + $0x32] sm:$0xff]
        %v2224 = vld [vmem:[%s2154 + $0x3a] sm:$0xff]
        %v2225 = vld [vmem:[%s2154 + $0x4a] sm:$0xff]
        %v2226 = vld [vmem:[%s2154 + $0x52] sm:$0xff]
        %v2227 = vld [vmem:[%s2154 + $0x62] sm:$0xff]
        %v2228 = vld [vmem:[%s2154 + $0x6a] sm:$0xff]
        %v2229 = vld [vmem:[%s2154 + $0x7a] sm:$0xff]
        %v2230 = vld [vmem:[%s2154 + $0x82] sm:$0xff]
        %v2231 = vld [vmem:[%s2154 + $0x92] sm:$0xff]
        %v2232 = vld [vmem:[%s2154 + $0x9a] sm:$0xff]
        %v2233 = vld [vmem:[%s2154 + $0xaa] sm:$0xff]
        %v2234 = vld [vmem:[%s2154 + $0xb2] sm:$0xff]
        %v2235 = vpack.c.bf16 %v2220, %v2219
        %v2236 = vpack.c.bf16 %v2222, %v2221
        %v2237 = vpack.c.bf16 %v2224, %v2223
        %v2238 = vpack.c.bf16 %v2226, %v2225
        %v2239 = vpack.c.bf16 %v2228, %v2227
        %v2240 = vpack.c.bf16 %v2230, %v2229
        %v2241 = vpack.c.bf16 %v2232, %v2231
        %v2242 = vpack.c.bf16 %v2234, %v2233
        %2243 = vst [vmem:[#allocation4 + $0x28] sm:$0xff] %v2235
        %2244 = vst [vmem:[#allocation4 + $0x70] sm:$0xff] %v2236
        %2245 = vst [vmem:[#allocation4 + $0xb8] sm:$0xff] %v2237
        %2246 = vst [vmem:[#allocation4 + $0x100] sm:$0xff] %v2238
        %2247 = vst [vmem:[#allocation4 + $0x148] sm:$0xff] %v2239
        %2248 = vst [vmem:[#allocation4 + $0x190] sm:$0xff] %v2240
        %2249 = vst [vmem:[#allocation4 + $0x1d8] sm:$0xff] %v2241
        %2250 = vst [vmem:[#allocation4 + $0x220] sm:$0xff] %v2242
        %s2251 = scalar_lea.vmem [#allocation3], 48
        %v2252 = vld [vmem:[%s2251] sm:$0xff]
        %v2253 = vld [vmem:[%s2251 + $0x8] sm:$0xff]
        %v2254 = vld [vmem:[%s2251 + $0x18] sm:$0xff]
        %v2255 = vld [vmem:[%s2251 + $0x20] sm:$0xff]
        %v2256 = vld [vmem:[%s2251 + $0x30] sm:$0xff]
        %v2257 = vld [vmem:[%s2251 + $0x38] sm:$0xff]
        %v2258 = vld [vmem:[%s2251 + $0x48] sm:$0xff]
        %v2259 = vld [vmem:[%s2251 + $0x50] sm:$0xff]
        %v2260 = vld [vmem:[%s2251 + $0x60] sm:$0xff]
        %v2261 = vld [vmem:[%s2251 + $0x68] sm:$0xff]
        %v2262 = vld [vmem:[%s2251 + $0x78] sm:$0xff]
        %v2263 = vld [vmem:[%s2251 + $0x80] sm:$0xff]
        %v2264 = vld [vmem:[%s2251 + $0x90] sm:$0xff]
        %v2265 = vld [vmem:[%s2251 + $0x98] sm:$0xff]
        %v2266 = vld [vmem:[%s2251 + $0xa8] sm:$0xff]
        %v2267 = vld [vmem:[%s2251 + $0xb0] sm:$0xff]
        %v2268 = vpack.c.bf16 %v2253, %v2252
        %v2269 = vpack.c.bf16 %v2255, %v2254
        %v2270 = vpack.c.bf16 %v2257, %v2256
        %v2271 = vpack.c.bf16 %v2259, %v2258
        %v2272 = vpack.c.bf16 %v2261, %v2260
        %v2273 = vpack.c.bf16 %v2263, %v2262
        %v2274 = vpack.c.bf16 %v2265, %v2264
        %v2275 = vpack.c.bf16 %v2267, %v2266
        %2276 = vst [vmem:[#allocation4 + $0x30] sm:$0xff] %v2268
        %2277 = vst [vmem:[#allocation4 + $0x78] sm:$0xff] %v2269
        %2278 = vst [vmem:[#allocation4 + $0xc0] sm:$0xff] %v2270
        %2279 = vst [vmem:[#allocation4 + $0x108] sm:$0xff] %v2271
        %2280 = vst [vmem:[#allocation4 + $0x150] sm:$0xff] %v2272
        %2281 = vst [vmem:[#allocation4 + $0x198] sm:$0xff] %v2273
        %2282 = vst [vmem:[#allocation4 + $0x1e0] sm:$0xff] %v2274
        %2283 = vst [vmem:[#allocation4 + $0x228] sm:$0xff] %v2275
        %v2284 = vld [vmem:[%s2251 + $0x1] sm:$0xff]
        %v2285 = vld [vmem:[%s2251 + $0x9] sm:$0xff]
        %v2286 = vld [vmem:[%s2251 + $0x19] sm:$0xff]
        %v2287 = vld [vmem:[%s2251 + $0x21] sm:$0xff]
        %v2288 = vld [vmem:[%s2251 + $0x31] sm:$0xff]
        %v2289 = vld [vmem:[%s2251 + $0x39] sm:$0xff]
        %v2290 = vld [vmem:[%s2251 + $0x49] sm:$0xff]
        %v2291 = vld [vmem:[%s2251 + $0x51] sm:$0xff]
        %v2292 = vld [vmem:[%s2251 + $0x61] sm:$0xff]
        %v2293 = vld [vmem:[%s2251 + $0x69] sm:$0xff]
        %v2294 = vld [vmem:[%s2251 + $0x79] sm:$0xff]
        %v2295 = vld [vmem:[%s2251 + $0x81] sm:$0xff]
        %v2296 = vld [vmem:[%s2251 + $0x91] sm:$0xff]
        %v2297 = vld [vmem:[%s2251 + $0x99] sm:$0xff]
        %v2298 = vld [vmem:[%s2251 + $0xa9] sm:$0xff]
        %v2299 = vld [vmem:[%s2251 + $0xb1] sm:$0xff]
        %v2300 = vpack.c.bf16 %v2285, %v2284
        %v2301 = vpack.c.bf16 %v2287, %v2286
        %v2302 = vpack.c.bf16 %v2289, %v2288
        %v2303 = vpack.c.bf16 %v2291, %v2290
        %v2304 = vpack.c.bf16 %v2293, %v2292
        %v2305 = vpack.c.bf16 %v2295, %v2294
        %v2306 = vpack.c.bf16 %v2297, %v2296
        %v2307 = vpack.c.bf16 %v2299, %v2298
        %2308 = vst [vmem:[#allocation4 + $0x38] sm:$0xff] %v2300
        %2309 = vst [vmem:[#allocation4 + $0x80] sm:$0xff] %v2301
        %2310 = vst [vmem:[#allocation4 + $0xc8] sm:$0xff] %v2302
        %2311 = vst [vmem:[#allocation4 + $0x110] sm:$0xff] %v2303
        %2312 = vst [vmem:[#allocation4 + $0x158] sm:$0xff] %v2304
        %2313 = vst [vmem:[#allocation4 + $0x1a0] sm:$0xff] %v2305
        %2314 = vst [vmem:[#allocation4 + $0x1e8] sm:$0xff] %v2306
        %2315 = vst [vmem:[#allocation4 + $0x230] sm:$0xff] %v2307
        %v2316 = vld [vmem:[%s2251 + $0x2] sm:$0xff]
        %v2317 = vld [vmem:[%s2251 + $0xa] sm:$0xff]
        %v2318 = vld [vmem:[%s2251 + $0x1a] sm:$0xff]
        %v2319 = vld [vmem:[%s2251 + $0x22] sm:$0xff]
        %v2320 = vld [vmem:[%s2251 + $0x32] sm:$0xff]
        %v2321 = vld [vmem:[%s2251 + $0x3a] sm:$0xff]
        %v2322 = vld [vmem:[%s2251 + $0x4a] sm:$0xff]
        %v2323 = vld [vmem:[%s2251 + $0x52] sm:$0xff]
        %v2324 = vld [vmem:[%s2251 + $0x62] sm:$0xff]
        %v2325 = vld [vmem:[%s2251 + $0x6a] sm:$0xff]
        %v2326 = vld [vmem:[%s2251 + $0x7a] sm:$0xff]
        %v2327 = vld [vmem:[%s2251 + $0x82] sm:$0xff]
        %v2328 = vld [vmem:[%s2251 + $0x92] sm:$0xff]
        %v2329 = vld [vmem:[%s2251 + $0x9a] sm:$0xff]
        %v2330 = vld [vmem:[%s2251 + $0xaa] sm:$0xff]
        %v2331 = vld [vmem:[%s2251 + $0xb2] sm:$0xff]
        %v2332 = vpack.c.bf16 %v2317, %v2316
        %v2333 = vpack.c.bf16 %v2319, %v2318
        %v2334 = vpack.c.bf16 %v2321, %v2320
        %v2335 = vpack.c.bf16 %v2323, %v2322
        %v2336 = vpack.c.bf16 %v2325, %v2324
        %v2337 = vpack.c.bf16 %v2327, %v2326
        %v2338 = vpack.c.bf16 %v2329, %v2328
        %v2339 = vpack.c.bf16 %v2331, %v2330
        %2340 = vst [vmem:[#allocation4 + $0x40] sm:$0xff] %v2332
        %2341 = vst [vmem:[#allocation4 + $0x88] sm:$0xff] %v2333
        %2342 = vst [vmem:[#allocation4 + $0xd0] sm:$0xff] %v2334
        %2343 = vst [vmem:[#allocation4 + $0x118] sm:$0xff] %v2335
        %2344 = vst [vmem:[#allocation4 + $0x160] sm:$0xff] %v2336
        %2345 = vst [vmem:[#allocation4 + $0x1a8] sm:$0xff] %v2337
        %2346 = vst [vmem:[#allocation4 + $0x1f0] sm:$0xff] %v2338
        %2347 = vst [vmem:[#allocation4 + $0x238] sm:$0xff] %v2339
        %v2348 = vld [vmem:[#allocation4] sm:$0xff]
        %v2349 = vld [vmem:[#allocation4 + $0x8] sm:$0xff]
        %v2350 = vld [vmem:[#allocation4 + $0x10] sm:$0xff]
        %v2351 = vld [vmem:[#allocation4 + $0x18] sm:$0xff]
        %v2352 = vld [vmem:[#allocation4 + $0x20] sm:$0xff]
        %v2353 = vld [vmem:[#allocation4 + $0x28] sm:$0xff]
        %v2354 = vld [vmem:[#allocation4 + $0x30] sm:$0xff]
        %v2355 = vld [vmem:[#allocation4 + $0x38] sm:$0xff]
        %v2356 = vld [vmem:[#allocation4 + $0x40] sm:$0xff]
        %v2357 = vld [vmem:[#allocation4 + $0x48] sm:$0xff]
        %v2358 = vld [vmem:[#allocation4 + $0x50] sm:$0xff]
        %v2359 = vld [vmem:[#allocation4 + $0x58] sm:$0xff]
        %v2360 = vld [vmem:[#allocation4 + $0x60] sm:$0xff]
        %v2361 = vld [vmem:[#allocation4 + $0x68] sm:$0xff]
        %v2362 = vld [vmem:[#allocation4 + $0x70] sm:$0xff]
        %v2363 = vld [vmem:[#allocation4 + $0x78] sm:$0xff]
        %v2364 = vld [vmem:[#allocation4 + $0x80] sm:$0xff]
        %v2365 = vld [vmem:[#allocation4 + $0x88] sm:$0xff]
        %v2366 = vld [vmem:[#allocation4 + $0x90] sm:$0xff]
        %v2367 = vld [vmem:[#allocation4 + $0x98] sm:$0xff]
        %v2368 = vld [vmem:[#allocation4 + $0xa0] sm:$0xff]
        %v2369 = vld [vmem:[#allocation4 + $0xa8] sm:$0xff]
        %v2370 = vld [vmem:[#allocation4 + $0xb0] sm:$0xff]
        %v2371 = vld [vmem:[#allocation4 + $0xb8] sm:$0xff]
        %v2372 = vld [vmem:[#allocation4 + $0xc0] sm:$0xff]
        %v2373 = vld [vmem:[#allocation4 + $0xc8] sm:$0xff]
        %v2374 = vld [vmem:[#allocation4 + $0xd0] sm:$0xff]
        %v2375 = vld [vmem:[#allocation4 + $0xd8] sm:$0xff]
        %v2376 = vld [vmem:[#allocation4 + $0xe0] sm:$0xff]
        %v2377 = vld [vmem:[#allocation4 + $0xe8] sm:$0xff]
        %v2378 = vld [vmem:[#allocation4 + $0xf0] sm:$0xff]
        %v2379 = vld [vmem:[#allocation4 + $0xf8] sm:$0xff]
        %v2380 = vld [vmem:[#allocation4 + $0x100] sm:$0xff]
        %v2381 = vld [vmem:[#allocation4 + $0x108] sm:$0xff]
        %v2382 = vld [vmem:[#allocation4 + $0x110] sm:$0xff]
        %v2383 = vld [vmem:[#allocation4 + $0x118] sm:$0xff]
        %v2384 = vld [vmem:[#allocation4 + $0x120] sm:$0xff]
        %v2385 = vld [vmem:[#allocation4 + $0x128] sm:$0xff]
        %v2386 = vld [vmem:[#allocation4 + $0x130] sm:$0xff]
        %v2387 = vld [vmem:[#allocation4 + $0x138] sm:$0xff]
        %v2388 = vld [vmem:[#allocation4 + $0x140] sm:$0xff]
        %v2389 = vld [vmem:[#allocation4 + $0x148] sm:$0xff]
        %v2390 = vld [vmem:[#allocation4 + $0x150] sm:$0xff]
        %v2391 = vld [vmem:[#allocation4 + $0x158] sm:$0xff]
        %v2392 = vld [vmem:[#allocation4 + $0x160] sm:$0xff]
        %v2393 = vld [vmem:[#allocation4 + $0x168] sm:$0xff]
        %v2394 = vld [vmem:[#allocation4 + $0x170] sm:$0xff]
        %v2395 = vld [vmem:[#allocation4 + $0x178] sm:$0xff]
        %v2396 = vld [vmem:[#allocation4 + $0x180] sm:$0xff]
        %v2397 = vld [vmem:[#allocation4 + $0x188] sm:$0xff]
        %v2398 = vld [vmem:[#allocation4 + $0x190] sm:$0xff]
        %v2399 = vld [vmem:[#allocation4 + $0x198] sm:$0xff]
        %v2400 = vld [vmem:[#allocation4 + $0x1a0] sm:$0xff]
        %v2401 = vld [vmem:[#allocation4 + $0x1a8] sm:$0xff]
        %v2402 = vld [vmem:[#allocation4 + $0x1b0] sm:$0xff]
        %v2403 = vld [vmem:[#allocation4 + $0x1b8] sm:$0xff]
        %v2404 = vld [vmem:[#allocation4 + $0x1c0] sm:$0xff]
        %v2405 = vld [vmem:[#allocation4 + $0x1c8] sm:$0xff]
        %v2406 = vld [vmem:[#allocation4 + $0x1d0] sm:$0xff]
        %v2407 = vld [vmem:[#allocation4 + $0x1d8] sm:$0xff]
        %v2408 = vld [vmem:[#allocation4 + $0x1e0] sm:$0xff]
        %v2409 = vld [vmem:[#allocation4 + $0x1e8] sm:$0xff]
        %v2410 = vld [vmem:[#allocation4 + $0x1f0] sm:$0xff]
        %v2411 = vld [vmem:[#allocation4 + $0x1f8] sm:$0xff]
        %v2412 = vld [vmem:[#allocation4 + $0x200] sm:$0xff]
        %v2413 = vld [vmem:[#allocation4 + $0x208] sm:$0xff]
        %v2414 = vld [vmem:[#allocation4 + $0x210] sm:$0xff]
        %v2415 = vld [vmem:[#allocation4 + $0x218] sm:$0xff]
        %v2416 = vld [vmem:[#allocation4 + $0x220] sm:$0xff]
        %v2417 = vld [vmem:[#allocation4 + $0x228] sm:$0xff]
        %v2418 = vld [vmem:[#allocation4 + $0x230] sm:$0xff]
        %v2419 = vld [vmem:[#allocation4 + $0x238] sm:$0xff]
        %v2420 = vld [vmem:[#allocation5] sm:$0xf]
        %v2421 = vld [vmem:[#allocation5 + $0x4] sm:$0xf]
        %v2422 = vld [vmem:[#allocation5 + $0x8] sm:$0xf]
        %v2423 = vld [vmem:[#allocation5 + $0xc] sm:$0xf]
        %v2424 = vld [vmem:[#allocation5 + $0x10] sm:$0xf]
        %v2425 = vld [vmem:[#allocation5 + $0x14] sm:$0xf]
        %v2426 = vld [vmem:[#allocation5 + $0x18] sm:$0xf]
        %v2427 = vld [vmem:[#allocation5 + $0x1c] sm:$0xf]
        %v2428 = vld [vmem:[#allocation5 + $0x20] sm:$0xf]
        %v2429 = vld [vmem:[#allocation5 + $0x24] sm:$0xf]
        %v2430 = vld [vmem:[#allocation5 + $0x28] sm:$0xf]
        %v2431 = vld [vmem:[#allocation5 + $0x2c] sm:$0xf]
        %v2432 = vld [vmem:[#allocation5 + $0x30] sm:$0xf]
        %v2433 = vld [vmem:[#allocation5 + $0x34] sm:$0xf]
        %v2434 = vld [vmem:[#allocation5 + $0x38] sm:$0xf]
        %v2435 = vld [vmem:[#allocation5 + $0x3c] sm:$0xf]
        %v2436 = vld [vmem:[#allocation5 + $0x40] sm:$0xf]
        %v2437 = vld [vmem:[#allocation5 + $0x44] sm:$0xf]
        %v2438 = vld [vmem:[#allocation5 + $0x48] sm:$0xf]
        %v2439 = vld [vmem:[#allocation5 + $0x4c] sm:$0xf]
        %v2440 = vld [vmem:[#allocation5 + $0x50] sm:$0xf]
        %v2441 = vld [vmem:[#allocation5 + $0x54] sm:$0xf]
        %v2442 = vld [vmem:[#allocation5 + $0x58] sm:$0xf]
        %v2443 = vld [vmem:[#allocation5 + $0x5c] sm:$0xf]
        %v2444 = vld [vmem:[#allocation5 + $0x60] sm:$0xf]
        %v2445 = vld [vmem:[#allocation5 + $0x64] sm:$0xf]
        %v2446 = vld [vmem:[#allocation5 + $0x68] sm:$0xf]
        %v2447 = vld [vmem:[#allocation5 + $0x6c] sm:$0xf]
        %v2448 = vld [vmem:[#allocation5 + $0x70] sm:$0xf]
        %v2449 = vld [vmem:[#allocation5 + $0x74] sm:$0xf]
        %v2450 = vld [vmem:[#allocation5 + $0x78] sm:$0xf]
        %v2451 = vld [vmem:[#allocation5 + $0x7c] sm:$0xf]
        %v2452 = vld [vmem:[#allocation5 + $0x80] sm:$0xf]
        %v2453 = vld [vmem:[#allocation5 + $0x84] sm:$0xf]
        %v2454 = vld [vmem:[#allocation5 + $0x88] sm:$0xf]
        %v2455 = vld [vmem:[#allocation5 + $0x8c] sm:$0xf]
        %v2456 = vld [vmem:[#allocation5 + $0x90] sm:$0xf]
        %v2457 = vld [vmem:[#allocation5 + $0x94] sm:$0xf]
        %v2458 = vld [vmem:[#allocation5 + $0x98] sm:$0xf]
        %v2459 = vld [vmem:[#allocation5 + $0x9c] sm:$0xf]
        %v2460 = vld [vmem:[#allocation5 + $0xa0] sm:$0xf]
        %v2461 = vld [vmem:[#allocation5 + $0xa4] sm:$0xf]
        %v2462 = vld [vmem:[#allocation5 + $0xa8] sm:$0xf]
        %v2463 = vld [vmem:[#allocation5 + $0xac] sm:$0xf]
        %v2464 = vld [vmem:[#allocation5 + $0xb0] sm:$0xf]
        %v2465 = vld [vmem:[#allocation5 + $0xb4] sm:$0xf]
        %v2466 = vld [vmem:[#allocation5 + $0xb8] sm:$0xf]
        %v2467 = vld [vmem:[#allocation5 + $0xbc] sm:$0xf]
        %v2468 = vld [vmem:[#allocation5 + $0xc0] sm:$0xf]
        %v2469 = vld [vmem:[#allocation5 + $0xc4] sm:$0xf]
        %v2470 = vld [vmem:[#allocation5 + $0xc8] sm:$0xf]
        %v2471 = vld [vmem:[#allocation5 + $0xcc] sm:$0xf]
        %v2472 = vld [vmem:[#allocation5 + $0xd0] sm:$0xf]
        %v2473 = vld [vmem:[#allocation5 + $0xd4] sm:$0xf]
        %v2474 = vld [vmem:[#allocation5 + $0xd8] sm:$0xf]
        %v2475 = vld [vmem:[#allocation5 + $0xdc] sm:$0xf]
        %v2476 = vld [vmem:[#allocation5 + $0xe0] sm:$0xf]
        %v2477 = vld [vmem:[#allocation5 + $0xe4] sm:$0xf]
        %v2478 = vld [vmem:[#allocation5 + $0xe8] sm:$0xf]
        %v2479 = vld [vmem:[#allocation5 + $0xec] sm:$0xf]
        %v2480 = vld [vmem:[#allocation5 + $0xf0] sm:$0xf]
        %v2481 = vld [vmem:[#allocation5 + $0xf4] sm:$0xf]
        %v2482 = vld [vmem:[#allocation5 + $0xf8] sm:$0xf]
        %v2483 = vld [vmem:[#allocation5 + $0xfc] sm:$0xf]
        %v2484 = vld [vmem:[#allocation5 + $0x100] sm:$0xf]
        %v2485 = vld [vmem:[#allocation5 + $0x104] sm:$0xf]
        %v2486 = vld [vmem:[#allocation5 + $0x108] sm:$0xf]
        %v2487 = vld [vmem:[#allocation5 + $0x10c] sm:$0xf]
        %v2488 = vld [vmem:[#allocation5 + $0x110] sm:$0xf]
        %v2489 = vld [vmem:[#allocation5 + $0x114] sm:$0xf]
        %v2490 = vld [vmem:[#allocation5 + $0x118] sm:$0xf]
        %v2491 = vld [vmem:[#allocation5 + $0x11c] sm:$0xf]
        %v2492 = vld [vmem:[#allocation5 + $0x120] sm:$0xf]
        %v2493 = vld [vmem:[#allocation5 + $0x124] sm:$0xf]
        %v2494 = vld [vmem:[#allocation5 + $0x128] sm:$0xf]
        %v2495 = vld [vmem:[#allocation5 + $0x12c] sm:$0xf]
        %v2496 = vld [vmem:[#allocation5 + $0x130] sm:$0xf]
        %v2497 = vld [vmem:[#allocation5 + $0x134] sm:$0xf]
        %v2498 = vld [vmem:[#allocation5 + $0x138] sm:$0xf]
        %v2499 = vld [vmem:[#allocation5 + $0x13c] sm:$0xf]
        %v2500 = vld [vmem:[#allocation5 + $0x140] sm:$0xf]
        %v2501 = vld [vmem:[#allocation5 + $0x144] sm:$0xf]
        %v2502 = vld [vmem:[#allocation5 + $0x148] sm:$0xf]
        %v2503 = vld [vmem:[#allocation5 + $0x14c] sm:$0xf]
        %v2504 = vld [vmem:[#allocation5 + $0x150] sm:$0xf]
        %v2505 = vld [vmem:[#allocation5 + $0x154] sm:$0xf]
        %v2506 = vld [vmem:[#allocation5 + $0x158] sm:$0xf]
        %v2507 = vld [vmem:[#allocation5 + $0x15c] sm:$0xf]
        %v2508 = vld [vmem:[#allocation5 + $0x160] sm:$0xf]
        %v2509 = vld [vmem:[#allocation5 + $0x164] sm:$0xf]
        %v2510 = vld [vmem:[#allocation5 + $0x168] sm:$0xf]
        %v2511 = vld [vmem:[#allocation5 + $0x16c] sm:$0xf]
        %v2512 = vld [vmem:[#allocation5 + $0x170] sm:$0xf]
        %v2513 = vld [vmem:[#allocation5 + $0x174] sm:$0xf]
        %v2514 = vld [vmem:[#allocation5 + $0x178] sm:$0xf]
        %v2515 = vld [vmem:[#allocation5 + $0x17c] sm:$0xf]
        %v2516 = vld [vmem:[#allocation5 + $0x180] sm:$0xf]
        %v2517 = vld [vmem:[#allocation5 + $0x184] sm:$0xf]
        %v2518 = vld [vmem:[#allocation5 + $0x188] sm:$0xf]
        %v2519 = vld [vmem:[#allocation5 + $0x18c] sm:$0xf]
        %v2520 = vld [vmem:[#allocation5 + $0x190] sm:$0xf]
        %v2521 = vld [vmem:[#allocation5 + $0x194] sm:$0xf]
        %v2522 = vld [vmem:[#allocation5 + $0x198] sm:$0xf]
        %v2523 = vld [vmem:[#allocation5 + $0x19c] sm:$0xf]
        %v2524 = vld [vmem:[#allocation5 + $0x1a0] sm:$0xf]
        %v2525 = vld [vmem:[#allocation5 + $0x1a4] sm:$0xf]
        %v2526 = vld [vmem:[#allocation5 + $0x1a8] sm:$0xf]
        %v2527 = vld [vmem:[#allocation5 + $0x1ac] sm:$0xf]
        %v2528 = vld [vmem:[#allocation5 + $0x1b0] sm:$0xf]
        %v2529 = vld [vmem:[#allocation5 + $0x1b4] sm:$0xf]
        %v2530 = vld [vmem:[#allocation5 + $0x1b8] sm:$0xf]
        %v2531 = vld [vmem:[#allocation5 + $0x1bc] sm:$0xf]
        %v2532 = vld [vmem:[#allocation5 + $0x1c0] sm:$0xf]
        %v2533 = vld [vmem:[#allocation5 + $0x1c4] sm:$0xf]
        %v2534 = vld [vmem:[#allocation5 + $0x1c8] sm:$0xf]
        %v2535 = vld [vmem:[#allocation5 + $0x1cc] sm:$0xf]
        %v2536 = vld [vmem:[#allocation5 + $0x1d0] sm:$0xf]
        %v2537 = vld [vmem:[#allocation5 + $0x1d4] sm:$0xf]
        %v2538 = vld [vmem:[#allocation5 + $0x1d8] sm:$0xf]
        %v2539 = vld [vmem:[#allocation5 + $0x1dc] sm:$0xf]
        %v2540 = vld [vmem:[#allocation5 + $0x1e0] sm:$0xf]
        %v2541 = vld [vmem:[#allocation5 + $0x1e4] sm:$0xf]
        %v2542 = vld [vmem:[#allocation5 + $0x1e8] sm:$0xf]
        %v2543 = vld [vmem:[#allocation5 + $0x1ec] sm:$0xf]
        %v2544 = vld [vmem:[#allocation5 + $0x1f0] sm:$0xf]
        %v2545 = vld [vmem:[#allocation5 + $0x1f4] sm:$0xf]
        %v2546 = vld [vmem:[#allocation5 + $0x1f8] sm:$0xf]
        %v2547 = vld [vmem:[#allocation5 + $0x1fc] sm:$0xf]
        %v2548 = vld [vmem:[#allocation5 + $0x200] sm:$0xf]
        %v2549 = vld [vmem:[#allocation5 + $0x204] sm:$0xf]
        %v2550 = vld [vmem:[#allocation5 + $0x208] sm:$0xf]
        %v2551 = vld [vmem:[#allocation5 + $0x20c] sm:$0xf]
        %v2552 = vld [vmem:[#allocation5 + $0x210] sm:$0xf]
        %v2553 = vld [vmem:[#allocation5 + $0x214] sm:$0xf]
        %v2554 = vld [vmem:[#allocation5 + $0x218] sm:$0xf]
        %v2555 = vld [vmem:[#allocation5 + $0x21c] sm:$0xf]
        %v2556 = vld [vmem:[#allocation5 + $0x220] sm:$0xf]
        %v2557 = vld [vmem:[#allocation5 + $0x224] sm:$0xf]
        %v2558 = vld [vmem:[#allocation5 + $0x228] sm:$0xf]
        %v2559 = vld [vmem:[#allocation5 + $0x22c] sm:$0xf]
        %v2560 = vld [vmem:[#allocation5 + $0x230] sm:$0xf]
        %v2561 = vld [vmem:[#allocation5 + $0x234] sm:$0xf]
        %v2562 = vld [vmem:[#allocation5 + $0x238] sm:$0xf]
        %v2563 = vld [vmem:[#allocation5 + $0x23c] sm:$0xf]
        %v2564 = vld [vmem:[%s4] sm:$0x1]
        %v2566 = vlaneseq
        %v2567 = vshrl.u32 %v2566, 7
        %v2568 = vsub.s32 0, %v2567
        %v2569 = vrot.slane %v2564, %v2568
        %v2715 = vunpack.c.l.b16 %v2420
        %v2716 = vunpack.c.l.b16 %v2421
        %v2717 = vunpack.c.l.b16 %v2422
        %v2718 = vunpack.c.l.b16 %v2423
        %v2719 = vunpack.c.l.b16 %v2424
        %v2720 = vunpack.c.l.b16 %v2425
        %v2721 = vunpack.c.l.b16 %v2426
        %v2722 = vunpack.c.l.b16 %v2427
        %v2723 = vunpack.c.l.b16 %v2428
        %v2724 = vunpack.c.l.b16 %v2429
        %v2725 = vunpack.c.l.b16 %v2430
        %v2726 = vunpack.c.l.b16 %v2431
        %v2727 = vunpack.c.l.b16 %v2432
        %v2728 = vunpack.c.l.b16 %v2433
        %v2729 = vunpack.c.l.b16 %v2434
        %v2730 = vunpack.c.l.b16 %v2435
        %v2731 = vunpack.c.l.b16 %v2436
        %v2732 = vunpack.c.l.b16 %v2437
        %v2733 = vunpack.c.l.b16 %v2438
        %v2734 = vunpack.c.l.b16 %v2439
        %v2735 = vunpack.c.l.b16 %v2440
        %v2736 = vunpack.c.l.b16 %v2441
        %v2737 = vunpack.c.l.b16 %v2442
        %v2738 = vunpack.c.l.b16 %v2443
        %v2739 = vunpack.c.l.b16 %v2444
        %v2740 = vunpack.c.l.b16 %v2445
        %v2741 = vunpack.c.l.b16 %v2446
        %v2742 = vunpack.c.l.b16 %v2447
        %v2743 = vunpack.c.l.b16 %v2448
        %v2744 = vunpack.c.l.b16 %v2449
        %v2745 = vunpack.c.l.b16 %v2450
        %v2746 = vunpack.c.l.b16 %v2451
        %v2747 = vunpack.c.l.b16 %v2452
        %v2748 = vunpack.c.l.b16 %v2453
        %v2749 = vunpack.c.l.b16 %v2454
        %v2750 = vunpack.c.l.b16 %v2455
        %v2751 = vunpack.c.l.b16 %v2456
        %v2752 = vunpack.c.l.b16 %v2457
        %v2753 = vunpack.c.l.b16 %v2458
        %v2754 = vunpack.c.l.b16 %v2459
        %v2755 = vunpack.c.l.b16 %v2460
        %v2756 = vunpack.c.l.b16 %v2461
        %v2757 = vunpack.c.l.b16 %v2462
        %v2758 = vunpack.c.l.b16 %v2463
        %v2759 = vunpack.c.l.b16 %v2464
        %v2760 = vunpack.c.l.b16 %v2465
        %v2761 = vunpack.c.l.b16 %v2466
        %v2762 = vunpack.c.l.b16 %v2467
        %v2763 = vunpack.c.l.b16 %v2468
        %v2764 = vunpack.c.l.b16 %v2469
        %v2765 = vunpack.c.l.b16 %v2470
        %v2766 = vunpack.c.l.b16 %v2471
        %v2767 = vunpack.c.l.b16 %v2472
        %v2768 = vunpack.c.l.b16 %v2473
        %v2769 = vunpack.c.l.b16 %v2474
        %v2770 = vunpack.c.l.b16 %v2475
        %v2771 = vunpack.c.l.b16 %v2476
        %v2772 = vunpack.c.l.b16 %v2477
        %v2773 = vunpack.c.l.b16 %v2478
        %v2774 = vunpack.c.l.b16 %v2479
        %v2775 = vunpack.c.l.b16 %v2480
        %v2776 = vunpack.c.l.b16 %v2481
        %v2777 = vunpack.c.l.b16 %v2482
        %v2778 = vunpack.c.l.b16 %v2483
        %v2779 = vunpack.c.l.b16 %v2484
        %v2780 = vunpack.c.l.b16 %v2485
        %v2781 = vunpack.c.l.b16 %v2486
        %v2782 = vunpack.c.l.b16 %v2487
        %v2783 = vunpack.c.l.b16 %v2488
        %v2784 = vunpack.c.l.b16 %v2489
        %v2785 = vunpack.c.l.b16 %v2490
        %v2786 = vunpack.c.l.b16 %v2491
        %v2787 = vunpack.c.l.b16 %v2492
        %v2788 = vunpack.c.l.b16 %v2493
        %v2789 = vunpack.c.l.b16 %v2494
        %v2790 = vunpack.c.l.b16 %v2495
        %v2791 = vunpack.c.l.b16 %v2496
        %v2792 = vunpack.c.l.b16 %v2497
        %v2793 = vunpack.c.l.b16 %v2498
        %v2794 = vunpack.c.l.b16 %v2499
        %v2795 = vunpack.c.l.b16 %v2500
        %v2796 = vunpack.c.l.b16 %v2501
        %v2797 = vunpack.c.l.b16 %v2502
        %v2798 = vunpack.c.l.b16 %v2503
        %v2799 = vunpack.c.l.b16 %v2504
        %v2800 = vunpack.c.l.b16 %v2505
        %v2801 = vunpack.c.l.b16 %v2506
        %v2802 = vunpack.c.l.b16 %v2507
        %v2803 = vunpack.c.l.b16 %v2508
        %v2804 = vunpack.c.l.b16 %v2509
        %v2805 = vunpack.c.l.b16 %v2510
        %v2806 = vunpack.c.l.b16 %v2511
        %v2807 = vunpack.c.l.b16 %v2512
        %v2808 = vunpack.c.l.b16 %v2513
        %v2809 = vunpack.c.l.b16 %v2514
        %v2810 = vunpack.c.l.b16 %v2515
        %v2811 = vunpack.c.l.b16 %v2516
        %v2812 = vunpack.c.l.b16 %v2517
        %v2813 = vunpack.c.l.b16 %v2518
        %v2814 = vunpack.c.l.b16 %v2519
        %v2815 = vunpack.c.l.b16 %v2520
        %v2816 = vunpack.c.l.b16 %v2521
        %v2817 = vunpack.c.l.b16 %v2522
        %v2818 = vunpack.c.l.b16 %v2523
        %v2819 = vunpack.c.l.b16 %v2524
        %v2820 = vunpack.c.l.b16 %v2525
        %v2821 = vunpack.c.l.b16 %v2526
        %v2822 = vunpack.c.l.b16 %v2527
        %v2823 = vunpack.c.l.b16 %v2528
        %v2824 = vunpack.c.l.b16 %v2529
        %v2825 = vunpack.c.l.b16 %v2530
        %v2826 = vunpack.c.l.b16 %v2531
        %v2827 = vunpack.c.l.b16 %v2532
        %v2828 = vunpack.c.l.b16 %v2533
        %v2829 = vunpack.c.l.b16 %v2534
        %v2830 = vunpack.c.l.b16 %v2535
        %v2831 = vunpack.c.l.b16 %v2536
        %v2832 = vunpack.c.l.b16 %v2537
        %v2833 = vunpack.c.l.b16 %v2538
        %v2834 = vunpack.c.l.b16 %v2539
        %v2835 = vunpack.c.l.b16 %v2540
        %v2836 = vunpack.c.l.b16 %v2541
        %v2837 = vunpack.c.l.b16 %v2542
        %v2838 = vunpack.c.l.b16 %v2543
        %v2839 = vunpack.c.l.b16 %v2544
        %v2840 = vunpack.c.l.b16 %v2545
        %v2841 = vunpack.c.l.b16 %v2546
        %v2842 = vunpack.c.l.b16 %v2547
        %v2843 = vunpack.c.l.b16 %v2548
        %v2844 = vunpack.c.l.b16 %v2549
        %v2845 = vunpack.c.l.b16 %v2550
        %v2846 = vunpack.c.l.b16 %v2551
        %v2847 = vunpack.c.l.b16 %v2552
        %v2848 = vunpack.c.l.b16 %v2553
        %v2849 = vunpack.c.l.b16 %v2554
        %v2850 = vunpack.c.l.b16 %v2555
        %v2851 = vunpack.c.l.b16 %v2556
        %v2852 = vunpack.c.l.b16 %v2557
        %v2853 = vunpack.c.l.b16 %v2558
        %v2854 = vunpack.c.l.b16 %v2559
        %v2855 = vunpack.c.l.b16 %v2560
        %v2856 = vunpack.c.l.b16 %v2561
        %v2857 = vunpack.c.l.b16 %v2562
        %v2858 = vunpack.c.l.b16 %v2563
        %v2859 = vpack.c.b16 %v2716, %v2715
        %v2860 = vpack.c.b16 %v2718, %v2717
        %v2861 = vpack.c.b16 %v2720, %v2719
        %v2862 = vpack.c.b16 %v2722, %v2721
        %v2863 = vpack.c.b16 %v2724, %v2723
        %v2864 = vpack.c.b16 %v2726, %v2725
        %v2865 = vpack.c.b16 %v2728, %v2727
        %v2866 = vpack.c.b16 %v2730, %v2729
        %v2867 = vpack.c.b16 %v2732, %v2731
        %v2868 = vpack.c.b16 %v2734, %v2733
        %v2869 = vpack.c.b16 %v2736, %v2735
        %v2870 = vpack.c.b16 %v2738, %v2737
        %v2871 = vpack.c.b16 %v2740, %v2739
        %v2872 = vpack.c.b16 %v2742, %v2741
        %v2873 = vpack.c.b16 %v2744, %v2743
        %v2874 = vpack.c.b16 %v2746, %v2745
        %v2875 = vpack.c.b16 %v2748, %v2747
        %v2876 = vpack.c.b16 %v2750, %v2749
        %v2877 = vpack.c.b16 %v2752, %v2751
        %v2878 = vpack.c.b16 %v2754, %v2753
        %v2879 = vpack.c.b16 %v2756, %v2755
        %v2880 = vpack.c.b16 %v2758, %v2757
        %v2881 = vpack.c.b16 %v2760, %v2759
        %v2882 = vpack.c.b16 %v2762, %v2761
        %v2883 = vpack.c.b16 %v2764, %v2763
        %v2884 = vpack.c.b16 %v2766, %v2765
        %v2885 = vpack.c.b16 %v2768, %v2767
        %v2886 = vpack.c.b16 %v2770, %v2769
        %v2887 = vpack.c.b16 %v2772, %v2771
        %v2888 = vpack.c.b16 %v2774, %v2773
        %v2889 = vpack.c.b16 %v2776, %v2775
        %v2890 = vpack.c.b16 %v2778, %v2777
        %v2891 = vpack.c.b16 %v2780, %v2779
        %v2892 = vpack.c.b16 %v2782, %v2781
        %v2893 = vpack.c.b16 %v2784, %v2783
        %v2894 = vpack.c.b16 %v2786, %v2785
        %v2895 = vpack.c.b16 %v2788, %v2787
        %v2896 = vpack.c.b16 %v2790, %v2789
        %v2897 = vpack.c.b16 %v2792, %v2791
        %v2898 = vpack.c.b16 %v2794, %v2793
        %v2899 = vpack.c.b16 %v2796, %v2795
        %v2900 = vpack.c.b16 %v2798, %v2797
        %v2901 = vpack.c.b16 %v2800, %v2799
        %v2902 = vpack.c.b16 %v2802, %v2801
        %v2903 = vpack.c.b16 %v2804, %v2803
        %v2904 = vpack.c.b16 %v2806, %v2805
        %v2905 = vpack.c.b16 %v2808, %v2807
        %v2906 = vpack.c.b16 %v2810, %v2809
        %v2907 = vpack.c.b16 %v2812, %v2811
        %v2908 = vpack.c.b16 %v2814, %v2813
        %v2909 = vpack.c.b16 %v2816, %v2815
        %v2910 = vpack.c.b16 %v2818, %v2817
        %v2911 = vpack.c.b16 %v2820, %v2819
        %v2912 = vpack.c.b16 %v2822, %v2821
        %v2913 = vpack.c.b16 %v2824, %v2823
        %v2914 = vpack.c.b16 %v2826, %v2825
        %v2915 = vpack.c.b16 %v2828, %v2827
        %v2916 = vpack.c.b16 %v2830, %v2829
        %v2917 = vpack.c.b16 %v2832, %v2831
        %v2918 = vpack.c.b16 %v2834, %v2833
        %v2919 = vpack.c.b16 %v2836, %v2835
        %v2920 = vpack.c.b16 %v2838, %v2837
        %v2921 = vpack.c.b16 %v2840, %v2839
        %v2922 = vpack.c.b16 %v2842, %v2841
        %v2923 = vpack.c.b16 %v2844, %v2843
        %v2924 = vpack.c.b16 %v2846, %v2845
        %v2925 = vpack.c.b16 %v2848, %v2847
        %v2926 = vpack.c.b16 %v2850, %v2849
        %v2927 = vpack.c.b16 %v2852, %v2851
        %v2928 = vpack.c.b16 %v2854, %v2853
        %v2929 = vpack.c.b16 %v2856, %v2855
        %v2930 = vpack.c.b16 %v2858, %v2857
        %3003 = vmatprep.subr.bf16.mxu0 0
        %3004 = vmatpush1.bf16.msra.mxu0 %v2859
        %3005 = vmatprep.subr.bf16.mxu0 0
        %3006 = vmatpush1.bf16.msra.mxu0 %v2860
        %3007 = vmatprep.subr.bf16.mxu0 0
        %3008 = vmatpush1.bf16.msra.mxu0 %v2861
        %3009 = vmatprep.subr.bf16.mxu0 0
        %3010 = vmatpush1.bf16.msra.mxu0 %v2862
        %3011 = vmatprep.subr.bf16.mxu0 0
        %3012 = vmatpush1.bf16.msra.mxu0 %v2863
        %3013 = vmatprep.subr.bf16.mxu0 0
        %3014 = vmatpush1.bf16.msra.mxu0 %v2864
        %3015 = vmatprep.subr.bf16.mxu0 0
        %3016 = vmatpush1.bf16.msra.mxu0 %v2865
        %3017 = vmatprep.subr.bf16.mxu0 0
        %3018 = vmatpush1.bf16.msra.mxu0 %v2866
        %3019 = vmatprep.subr.bf16.mxu0 0
        %3020 = vmatpush1.bf16.msra.mxu0 %v2867
        %3021 = vmatprep.subr.bf16.mxu0 0
        %3022 = vmatpush1.bf16.msra.mxu0 %v2868
        %3023 = vmatprep.subr.bf16.mxu0 0
        %3024 = vmatpush1.bf16.msra.mxu0 %v2869
        %3025 = vmatprep.subr.bf16.mxu0 0
        %3026 = vmatpush1.bf16.msra.mxu0 %v2870
        %3027 = vmatprep.subr.bf16.mxu0 0
        %3028 = vmatpush1.bf16.msra.mxu0 %v2871
        %3029 = vmatprep.subr.bf16.mxu0 0
        %3030 = vmatpush1.bf16.msra.mxu0 %v2872
        %3031 = vmatprep.subr.bf16.mxu0 0
        %3032 = vmatpush1.bf16.msra.mxu0 %v2873
        %3033 = vmatprep.subr.bf16.mxu0 0
        %3034 = vmatpush1.bf16.msra.mxu0 %v2874
        %3035 = vmatprep.mubr.bf16.mxu0 %v2349
        %3036 = vmatmul.mubr.bf16.gmra.mrb[0].mxu0 %v2348
        %v3037 = vpop.f32.mrb[0].mxu0
        %v3038 = vadd.f32 %v2569, %v3037
        %v3039 = vpop.f32.mrb[0].mxu0
        %v3040 = vpop.f32.mrb[0].mxu0
        %v3041 = vadd.f32 %v2569, %v3040
        %v3042 = vpop.f32.mrb[0].mxu0
        %3043 = vmatprep.mubr.bf16.mxu0 %v2358
        %3044 = vmatmul.mubr.bf16.gmra.mrb[0].mxu0 %v2357
        %v3045 = vpop.f32.mrb[0].mxu0
        %v3046 = vadd.f32 %v2569, %v3045
        %v3047 = vpop.f32.mrb[0].mxu0
        %v3048 = vpop.f32.mrb[0].mxu0
        %v3049 = vadd.f32 %v2569, %v3048
        %v3050 = vpop.f32.mrb[0].mxu0
        %3051 = vmatprep.mubr.bf16.mxu0 %v2367
        %3052 = vmatmul.mubr.bf16.gmra.mrb[0].mxu0 %v2366
        %v3053 = vpop.f32.mrb[0].mxu0
        %v3054 = vadd.f32 %v2569, %v3053
        %v3055 = vpop.f32.mrb[0].mxu0
        %v3056 = vpop.f32.mrb[0].mxu0
        %v3057 = vadd.f32 %v2569, %v3056
        %v3058 = vpop.f32.mrb[0].mxu0
        %3059 = vmatprep.mubr.bf16.mxu0 %v2376
        %3060 = vmatmul.mubr.bf16.gmra.mrb[0].mxu0 %v2375
        %v3061 = vpop.f32.mrb[0].mxu0
        %v3062 = vadd.f32 %v2569, %v3061
        %v3063 = vpop.f32.mrb[0].mxu0
        %v3064 = vpop.f32.mrb[0].mxu0
        %v3065 = vadd.f32 %v2569, %v3064
        %v3066 = vpop.f32.mrb[0].mxu0
        %3067 = vmatprep.mubr.bf16.mxu0 %v2385
        %3068 = vmatmul.mubr.bf16.gmra.mrb[0].mxu0 %v2384
        %v3069 = vpop.f32.mrb[0].mxu0
        %v3070 = vadd.f32 %v2569, %v3069
        %v3071 = vpop.f32.mrb[0].mxu0
        %v3072 = vpop.f32.mrb[0].mxu0
        %v3073 = vadd.f32 %v2569, %v3072
        %v3074 = vpop.f32.mrb[0].mxu0
        %3075 = vmatprep.mubr.bf16.mxu0 %v2394
        %3076 = vmatmul.mubr.bf16.gmra.mrb[0].mxu0 %v2393
        %v3077 = vpop.f32.mrb[0].mxu0
        %v3078 = vadd.f32 %v2569, %v3077
        %v3079 = vpop.f32.mrb[0].mxu0
        %v3080 = vpop.f32.mrb[0].mxu0
        %v3081 = vadd.f32 %v2569, %v3080
        %v3082 = vpop.f32.mrb[0].mxu0
        %3083 = vmatprep.mubr.bf16.mxu0 %v2403
        %3084 = vmatmul.mubr.bf16.gmra.mrb[0].mxu0 %v2402
        %v3085 = vpop.f32.mrb[0].mxu0
        %v3086 = vadd.f32 %v2569, %v3085
        %v3087 = vpop.f32.mrb[0].mxu0
        %v3088 = vpop.f32.mrb[0].mxu0
        %v3089 = vadd.f32 %v2569, %v3088
        %v3090 = vpop.f32.mrb[0].mxu0
        %3091 = vmatprep.mubr.bf16.mxu0 %v2412
        %3092 = vmatmul.mubr.bf16.gmra.mrb[0].mxu0 %v2411
        %v3093 = vpop.f32.mrb[0].mxu0
        %v3094 = vadd.f32 %v2569, %v3093
        %v3095 = vpop.f32.mrb[0].mxu0
        %v3096 = vpop.f32.mrb[0].mxu0
        %v3097 = vadd.f32 %v2569, %v3096
        %v3098 = vpop.f32.mrb[0].mxu0
        %3099 = vdwg.mxu0
        %3100 = vmatprep.subr.bf16.mxu0 0
        %3101 = vmatpush1.bf16.msra.mxu0 %v2875
        %3102 = vmatprep.subr.bf16.mxu0 0
        %3103 = vmatpush1.bf16.msra.mxu0 %v2876
        %3104 = vmatprep.subr.bf16.mxu0 0
        %3105 = vmatpush1.bf16.msra.mxu0 %v2877
        %3106 = vmatprep.subr.bf16.mxu0 0
        %3107 = vmatpush1.bf16.msra.mxu0 %v2878
        %3108 = vmatprep.subr.bf16.mxu0 0
        %3109 = vmatpush1.bf16.msra.mxu0 %v2879
        %3110 = vmatprep.subr.bf16.mxu0 0
        %3111 = vmatpush1.bf16.msra.mxu0 %v2880
        %3112 = vmatprep.subr.bf16.mxu0 0
        %3113 = vmatpush1.bf16.msra.mxu0 %v2881
        %3114 = vmatprep.subr.bf16.mxu0 0
        %3115 = vmatpush1.bf16.msra.mxu0 %v2882
        %3116 = vmatprep.subr.bf16.mxu0 0
        %3117 = vmatpush1.bf16.msra.mxu0 %v2883
        %3118 = vmatprep.subr.bf16.mxu0 0
        %3119 = vmatpush1.bf16.msra.mxu0 %v2884
        %3120 = vmatprep.subr.bf16.mxu0 0
        %3121 = vmatpush1.bf16.msra.mxu0 %v2885
        %3122 = vmatprep.subr.bf16.mxu0 0
        %3123 = vmatpush1.bf16.msra.mxu0 %v2886
        %3124 = vmatprep.subr.bf16.mxu0 0
        %3125 = vmatpush1.bf16.msra.mxu0 %v2887
        %3126 = vmatprep.subr.bf16.mxu0 0
        %3127 = vmatpush1.bf16.msra.mxu0 %v2888
        %3128 = vmatprep.subr.bf16.mxu0 0
        %3129 = vmatpush1.bf16.msra.mxu0 %v2889
        %3130 = vmatprep.subr.bf16.mxu0 0
        %3131 = vmatpush1.bf16.msra.mxu0 %v2890
        %3132 = vmatprep.mubr.bf16.mxu0 %v2351
        %3133 = vmatmul.mubr.bf16.gmra.mrb[0].mxu0 %v2350
        %v3134 = vpop.f32.mrb[0].mxu0
        %v3135 = vadd.f32 %v3038, %v3134
        %v3136 = vpop.f32.mrb[0].mxu0
        %v3137 = vpop.f32.mrb[0].mxu0
        %v3138 = vadd.f32 %v3041, %v3137
        %v3139 = vpop.f32.mrb[0].mxu0
        %3140 = vmatprep.mubr.bf16.mxu0 %v2360
        %3141 = vmatmul.mubr.bf16.gmra.mrb[0].mxu0 %v2359
        %v3142 = vpop.f32.mrb[0].mxu0
        %v3143 = vadd.f32 %v3046, %v3142
        %v3144 = vpop.f32.mrb[0].mxu0
        %v3145 = vpop.f32.mrb[0].mxu0
        %v3146 = vadd.f32 %v3049, %v3145
        %v3147 = vpop.f32.mrb[0].mxu0
        %3148 = vmatprep.mubr.bf16.mxu0 %v2369
        %3149 = vmatmul.mubr.bf16.gmra.mrb[0].mxu0 %v2368
        %v3150 = vpop.f32.mrb[0].mxu0
        %v3151 = vadd.f32 %v3054, %v3150
        %v3152 = vpop.f32.mrb[0].mxu0
        %v3153 = vpop.f32.mrb[0].mxu0
        %v3154 = vadd.f32 %v3057, %v3153
        %v3155 = vpop.f32.mrb[0].mxu0
        %3156 = vmatprep.mubr.bf16.mxu0 %v2378
        %3157 = vmatmul.mubr.bf16.gmra.mrb[0].mxu0 %v2377
        %v3158 = vpop.f32.mrb[0].mxu0
        %v3159 = vadd.f32 %v3062, %v3158
        %v3160 = vpop.f32.mrb[0].mxu0
        %v3161 = vpop.f32.mrb[0].mxu0
        %v3162 = vadd.f32 %v3065, %v3161
        %v3163 = vpop.f32.mrb[0].mxu0
        %3164 = vmatprep.mubr.bf16.mxu0 %v2387
        %3165 = vmatmul.mubr.bf16.gmra.mrb[0].mxu0 %v2386
        %v3166 = vpop.f32.mrb[0].mxu0
        %v3167 = vadd.f32 %v3070, %v3166
        %v3168 = vpop.f32.mrb[0].mxu0
        %v3169 = vpop.f32.mrb[0].mxu0
        %v3170 = vadd.f32 %v3073, %v3169
        %v3171 = vpop.f32.mrb[0].mxu0
        %3172 = vmatprep.mubr.bf16.mxu0 %v2396
        %3173 = vmatmul.mubr.bf16.gmra.mrb[0].mxu0 %v2395
        %v3174 = vpop.f32.mrb[0].mxu0
        %v3175 = vadd.f32 %v3078, %v3174
        %v3176 = vpop.f32.mrb[0].mxu0
        %v3177 = vpop.f32.mrb[0].mxu0
        %v3178 = vadd.f32 %v3081, %v3177
        %v3179 = vpop.f32.mrb[0].mxu0
        %3180 = vmatprep.mubr.bf16.mxu0 %v2405
        %3181 = vmatmul.mubr.bf16.gmra.mrb[0].mxu0 %v2404
        %v3182 = vpop.f32.mrb[0].mxu0
        %v3183 = vadd.f32 %v3086, %v3182
        %v3184 = vpop.f32.mrb[0].mxu0
        %v3185 = vpop.f32.mrb[0].mxu0
        %v3186 = vadd.f32 %v3089, %v3185
        %v3187 = vpop.f32.mrb[0].mxu0
        %3188 = vmatprep.mubr.bf16.mxu0 %v2414
        %3189 = vmatmul.mubr.bf16.gmra.mrb[0].mxu0 %v2413
        %v3190 = vpop.f32.mrb[0].mxu0
        %v3191 = vadd.f32 %v3094, %v3190
        %v3192 = vpop.f32.mrb[0].mxu0
        %v3193 = vpop.f32.mrb[0].mxu0
        %v3194 = vadd.f32 %v3097, %v3193
        %v3195 = vpop.f32.mrb[0].mxu0
        %3196 = vdwg.mxu0
        %3197 = vmatprep.subr.bf16.mxu0 0
        %3198 = vmatpush1.bf16.msra.mxu0 %v2891
        %3199 = vmatprep.subr.bf16.mxu0 0
        %3200 = vmatpush1.bf16.msra.mxu0 %v2892
        %3201 = vmatprep.subr.bf16.mxu0 0
        %3202 = vmatpush1.bf16.msra.mxu0 %v2893
        %3203 = vmatprep.subr.bf16.mxu0 0
        %3204 = vmatpush1.bf16.msra.mxu0 %v2894
        %3205 = vmatprep.subr.bf16.mxu0 0
        %3206 = vmatpush1.bf16.msra.mxu0 %v2895
        %3207 = vmatprep.subr.bf16.mxu0 0
        %3208 = vmatpush1.bf16.msra.mxu0 %v2896
        %3209 = vmatprep.subr.bf16.mxu0 0
        %3210 = vmatpush1.bf16.msra.mxu0 %v2897
        %3211 = vmatprep.subr.bf16.mxu0 0
        %3212 = vmatpush1.bf16.msra.mxu0 %v2898
        %3213 = vmatprep.subr.bf16.mxu0 0
        %3214 = vmatpush1.bf16.msra.mxu0 %v2899
        %3215 = vmatprep.subr.bf16.mxu0 0
        %3216 = vmatpush1.bf16.msra.mxu0 %v2900
        %3217 = vmatprep.subr.bf16.mxu0 0
        %3218 = vmatpush1.bf16.msra.mxu0 %v2901
        %3219 = vmatprep.subr.bf16.mxu0 0
        %3220 = vmatpush1.bf16.msra.mxu0 %v2902
        %3221 = vmatprep.subr.bf16.mxu0 0
        %3222 = vmatpush1.bf16.msra.mxu0 %v2903
        %3223 = vmatprep.subr.bf16.mxu0 0
        %3224 = vmatpush1.bf16.msra.mxu0 %v2904
        %3225 = vmatprep.subr.bf16.mxu0 0
        %3226 = vmatpush1.bf16.msra.mxu0 %v2905
        %3227 = vmatprep.subr.bf16.mxu0 0
        %3228 = vmatpush1.bf16.msra.mxu0 %v2906
        %3229 = vmatprep.mubr.bf16.mxu0 %v2353
        %3230 = vmatmul.mubr.bf16.gmra.mrb[0].mxu0 %v2352
        %v3231 = vpop.f32.mrb[0].mxu0
        %v3232 = vadd.f32 %v3135, %v3231
        %v3233 = vpop.f32.mrb[0].mxu0
        %v3234 = vpop.f32.mrb[0].mxu0
        %v3235 = vadd.f32 %v3138, %v3234
        %v3236 = vpop.f32.mrb[0].mxu0
        %3237 = vmatprep.mubr.bf16.mxu0 %v2362
        %3238 = vmatmul.mubr.bf16.gmra.mrb[0].mxu0 %v2361
        %v3239 = vpop.f32.mrb[0].mxu0
        %v3240 = vadd.f32 %v3143, %v3239
        %v3241 = vpop.f32.mrb[0].mxu0
        %v3242 = vpop.f32.mrb[0].mxu0
        %v3243 = vadd.f32 %v3146, %v3242
        %v3244 = vpop.f32.mrb[0].mxu0
        %3245 = vmatprep.mubr.bf16.mxu0 %v2371
        %3246 = vmatmul.mubr.bf16.gmra.mrb[0].mxu0 %v2370
        %v3247 = vpop.f32.mrb[0].mxu0
        %v3248 = vadd.f32 %v3151, %v3247
        %v3249 = vpop.f32.mrb[0].mxu0
        %v3250 = vpop.f32.mrb[0].mxu0
        %v3251 = vadd.f32 %v3154, %v3250
        %v3252 = vpop.f32.mrb[0].mxu0
        %3253 = vmatprep.mubr.bf16.mxu0 %v2380
        %3254 = vmatmul.mubr.bf16.gmra.mrb[0].mxu0 %v2379
        %v3255 = vpop.f32.mrb[0].mxu0
        %v3256 = vadd.f32 %v3159, %v3255
        %v3257 = vpop.f32.mrb[0].mxu0
        %v3258 = vpop.f32.mrb[0].mxu0
        %v3259 = vadd.f32 %v3162, %v3258
        %v3260 = vpop.f32.mrb[0].mxu0
        %3261 = vmatprep.mubr.bf16.mxu0 %v2389
        %3262 = vmatmul.mubr.bf16.gmra.mrb[0].mxu0 %v2388
        %v3263 = vpop.f32.mrb[0].mxu0
        %v3264 = vadd.f32 %v3167, %v3263
        %v3265 = vpop.f32.mrb[0].mxu0
        %v3266 = vpop.f32.mrb[0].mxu0
        %v3267 = vadd.f32 %v3170, %v3266
        %v3268 = vpop.f32.mrb[0].mxu0
        %3269 = vmatprep.mubr.bf16.mxu0 %v2398
        %3270 = vmatmul.mubr.bf16.gmra.mrb[0].mxu0 %v2397
        %v3271 = vpop.f32.mrb[0].mxu0
        %v3272 = vadd.f32 %v3175, %v3271
        %v3273 = vpop.f32.mrb[0].mxu0
        %v3274 = vpop.f32.mrb[0].mxu0
        %v3275 = vadd.f32 %v3178, %v3274
        %v3276 = vpop.f32.mrb[0].mxu0
        %3277 = vmatprep.mubr.bf16.mxu0 %v2407
        %3278 = vmatmul.mubr.bf16.gmra.mrb[0].mxu0 %v2406
        %v3279 = vpop.f32.mrb[0].mxu0
        %v3280 = vadd.f32 %v3183, %v3279
        %v3281 = vpop.f32.mrb[0].mxu0
        %v3282 = vpop.f32.mrb[0].mxu0
        %v3283 = vadd.f32 %v3186, %v3282
        %v3284 = vpop.f32.mrb[0].mxu0
        %3285 = vmatprep.mubr.bf16.mxu0 %v2416
        %3286 = vmatmul.mubr.bf16.gmra.mrb[0].mxu0 %v2415
        %v3287 = vpop.f32.mrb[0].mxu0
        %v3288 = vadd.f32 %v3191, %v3287
        %v3289 = vpop.f32.mrb[0].mxu0
        %v3290 = vpop.f32.mrb[0].mxu0
        %v3291 = vadd.f32 %v3194, %v3290
        %v3292 = vpop.f32.mrb[0].mxu0
        %3293 = vdwg.mxu0
        %3294 = vmatprep.subr.bf16.mxu0 0
        %3295 = vmatpush1.bf16.msra.mxu0 %v2907
        %3296 = vmatprep.subr.bf16.mxu0 0
        %3297 = vmatpush1.bf16.msra.mxu0 %v2908
        %3298 = vmatprep.subr.bf16.mxu0 0
        %3299 = vmatpush1.bf16.msra.mxu0 %v2909
        %3300 = vmatprep.subr.bf16.mxu0 0
        %3301 = vmatpush1.bf16.msra.mxu0 %v2910
        %3302 = vmatprep.subr.bf16.mxu0 0
        %3303 = vmatpush1.bf16.msra.mxu0 %v2911
        %3304 = vmatprep.subr.bf16.mxu0 0
        %3305 = vmatpush1.bf16.msra.mxu0 %v2912
        %3306 = vmatprep.subr.bf16.mxu0 0
        %3307 = vmatpush1.bf16.msra.mxu0 %v2913
        %3308 = vmatprep.subr.bf16.mxu0 0
        %3309 = vmatpush1.bf16.msra.mxu0 %v2914
        %3310 = vmatprep.subr.bf16.mxu0 0
        %3311 = vmatpush1.bf16.msra.mxu0 %v2915
        %3312 = vmatprep.subr.bf16.mxu0 0
        %3313 = vmatpush1.bf16.msra.mxu0 %v2916
        %3314 = vmatprep.subr.bf16.mxu0 0
        %3315 = vmatpush1.bf16.msra.mxu0 %v2917
        %3316 = vmatprep.subr.bf16.mxu0 0
        %3317 = vmatpush1.bf16.msra.mxu0 %v2918
        %3318 = vmatprep.subr.bf16.mxu0 0
        %3319 = vmatpush1.bf16.msra.mxu0 %v2919
        %3320 = vmatprep.subr.bf16.mxu0 0
        %3321 = vmatpush1.bf16.msra.mxu0 %v2920
        %3322 = vmatprep.subr.bf16.mxu0 0
        %3323 = vmatpush1.bf16.msra.mxu0 %v2921
        %3324 = vmatprep.subr.bf16.mxu0 0
        %3325 = vmatpush1.bf16.msra.mxu0 %v2922
        %3326 = vmatprep.mubr.bf16.mxu0 %v2355
        %3327 = vmatmul.mubr.bf16.gmra.mrb[0].mxu0 %v2354
        %v3328 = vpop.f32.mrb[0].mxu0
        %v3329 = vadd.f32 %v3232, %v3328
        %v3330 = vpop.f32.mrb[0].mxu0
        %v3331 = vpop.f32.mrb[0].mxu0
        %v3332 = vadd.f32 %v3235, %v3331
        %v3333 = vpop.f32.mrb[0].mxu0
        %3334 = vmatprep.mubr.bf16.mxu0 %v2364
        %3335 = vmatmul.mubr.bf16.gmra.mrb[0].mxu0 %v2363
        %v3336 = vpop.f32.mrb[0].mxu0
        %v3337 = vadd.f32 %v3240, %v3336
        %v3338 = vpop.f32.mrb[0].mxu0
        %v3339 = vpop.f32.mrb[0].mxu0
        %v3340 = vadd.f32 %v3243, %v3339
        %v3341 = vpop.f32.mrb[0].mxu0
        %3342 = vmatprep.mubr.bf16.mxu0 %v2373
        %3343 = vmatmul.mubr.bf16.gmra.mrb[0].mxu0 %v2372
        %v3344 = vpop.f32.mrb[0].mxu0
        %v3345 = vadd.f32 %v3248, %v3344
        %v3346 = vpop.f32.mrb[0].mxu0
        %v3347 = vpop.f32.mrb[0].mxu0
        %v3348 = vadd.f32 %v3251, %v3347
        %v3349 = vpop.f32.mrb[0].mxu0
        %3350 = vmatprep.mubr.bf16.mxu0 %v2382
        %3351 = vmatmul.mubr.bf16.gmra.mrb[0].mxu0 %v2381
        %v3352 = vpop.f32.mrb[0].mxu0
        %v3353 = vadd.f32 %v3256, %v3352
        %v3354 = vpop.f32.mrb[0].mxu0
        %v3355 = vpop.f32.mrb[0].mxu0
        %v3356 = vadd.f32 %v3259, %v3355
        %v3357 = vpop.f32.mrb[0].mxu0
        %3358 = vmatprep.mubr.bf16.mxu0 %v2391
        %3359 = vmatmul.mubr.bf16.gmra.mrb[0].mxu0 %v2390
        %v3360 = vpop.f32.mrb[0].mxu0
        %v3361 = vadd.f32 %v3264, %v3360
        %v3362 = vpop.f32.mrb[0].mxu0
        %v3363 = vpop.f32.mrb[0].mxu0
        %v3364 = vadd.f32 %v3267, %v3363
        %v3365 = vpop.f32.mrb[0].mxu0
        %3366 = vmatprep.mubr.bf16.mxu0 %v2400
        %3367 = vmatmul.mubr.bf16.gmra.mrb[0].mxu0 %v2399
        %v3368 = vpop.f32.mrb[0].mxu0
        %v3369 = vadd.f32 %v3272, %v3368
        %v3370 = vpop.f32.mrb[0].mxu0
        %v3371 = vpop.f32.mrb[0].mxu0
        %v3372 = vadd.f32 %v3275, %v3371
        %v3373 = vpop.f32.mrb[0].mxu0
        %3374 = vmatprep.mubr.bf16.mxu0 %v2409
        %3375 = vmatmul.mubr.bf16.gmra.mrb[0].mxu0 %v2408
        %v3376 = vpop.f32.mrb[0].mxu0
        %v3377 = vadd.f32 %v3280, %v3376
        %v3378 = vpop.f32.mrb[0].mxu0
        %v3379 = vpop.f32.mrb[0].mxu0
        %v3380 = vadd.f32 %v3283, %v3379
        %v3381 = vpop.f32.mrb[0].mxu0
        %3382 = vmatprep.mubr.bf16.mxu0 %v2418
        %3383 = vmatmul.mubr.bf16.gmra.mrb[0].mxu0 %v2417
        %v3384 = vpop.f32.mrb[0].mxu0
        %v3385 = vadd.f32 %v3288, %v3384
        %v3386 = vpop.f32.mrb[0].mxu0
        %v3387 = vpop.f32.mrb[0].mxu0
        %v3388 = vadd.f32 %v3291, %v3387
        %v3389 = vpop.f32.mrb[0].mxu0
        %3390 = vdwg.mxu0
        %3391 = vmatprep.subr.bf16.mxu0 0
        %3392 = vmatpush1.bf16.msra.mxu0 %v2923
        %3393 = vmatprep.subr.bf16.mxu0 0
        %3394 = vmatpush1.bf16.msra.mxu0 %v2924
        %3395 = vmatprep.subr.bf16.mxu0 0
        %3396 = vmatpush1.bf16.msra.mxu0 %v2925
        %3397 = vmatprep.subr.bf16.mxu0 0
        %3398 = vmatpush1.bf16.msra.mxu0 %v2926
        %3399 = vmatprep.subr.bf16.mxu0 0
        %3400 = vmatpush1.bf16.msra.mxu0 %v2927
        %3401 = vmatprep.subr.bf16.mxu0 0
        %3402 = vmatpush1.bf16.msra.mxu0 %v2928
        %3403 = vmatprep.subr.bf16.mxu0 0
        %3404 = vmatpush1.bf16.msra.mxu0 %v2929
        %3405 = vmatprep.subr.bf16.mxu0 0
        %3406 = vmatpush1.bf16.msra.mxu0 %v2930
        %3407 = vmatprep.subr.bf16.mxu0 0
        %3408 = vmatpush1.bf16.msra.mxu0 0
        %3409 = vmatprep.subr.bf16.mxu0 0
        %3410 = vmatpush1.bf16.msra.mxu0 0
        %3411 = vmatprep.subr.bf16.mxu0 0
        %3412 = vmatpush1.bf16.msra.mxu0 0
        %3413 = vmatprep.subr.bf16.mxu0 0
        %3414 = vmatpush1.bf16.msra.mxu0 0
        %3415 = vmatprep.subr.bf16.mxu0 0
        %3416 = vmatpush1.bf16.msra.mxu0 0
        %3417 = vmatprep.subr.bf16.mxu0 0
        %3418 = vmatpush1.bf16.msra.mxu0 0
        %3419 = vmatprep.subr.bf16.mxu0 0
        %3420 = vmatpush1.bf16.msra.mxu0 0
        %3421 = vmatprep.subr.bf16.mxu0 0
        %3422 = vmatpush1.bf16.msra.mxu0 0
        %3423 = vmatprep.mubr.bf16.mxu0 0
        %3424 = vmatmul.mubr.bf16.gmra.mrb[0].mxu0 %v2356
        %v3425 = vpop.f32.mrb[0].mxu0
        %v3426 = vadd.f32 %v3329, %v3425
        %v3427 = vpop.f32.mrb[0].mxu0
        %v3428 = vpop.f32.mrb[0].mxu0
        %v3429 = vadd.f32 %v3332, %v3428
        %v3430 = vpop.f32.mrb[0].mxu0
        %3431 = vmatprep.mubr.bf16.mxu0 0
        %3432 = vmatmul.mubr.bf16.gmra.mrb[0].mxu0 %v2365
        %v3433 = vpop.f32.mrb[0].mxu0
        %v3434 = vadd.f32 %v3337, %v3433
        %v3435 = vpop.f32.mrb[0].mxu0
        %v3436 = vpop.f32.mrb[0].mxu0
        %v3437 = vadd.f32 %v3340, %v3436
        %v3438 = vpop.f32.mrb[0].mxu0
        %3439 = vmatprep.mubr.bf16.mxu0 0
        %3440 = vmatmul.mubr.bf16.gmra.mrb[0].mxu0 %v2374
        %v3441 = vpop.f32.mrb[0].mxu0
        %v3442 = vadd.f32 %v3345, %v3441
        %v3443 = vpop.f32.mrb[0].mxu0
        %v3444 = vpop.f32.mrb[0].mxu0
        %v3445 = vadd.f32 %v3348, %v3444
        %v3446 = vpop.f32.mrb[0].mxu0
        %3447 = vmatprep.mubr.bf16.mxu0 0
        %3448 = vmatmul.mubr.bf16.gmra.mrb[0].mxu0 %v2383
        %v3449 = vpop.f32.mrb[0].mxu0
        %v3450 = vadd.f32 %v3353, %v3449
        %v3451 = vpop.f32.mrb[0].mxu0
        %v3452 = vpop.f32.mrb[0].mxu0
        %v3453 = vadd.f32 %v3356, %v3452
        %v3454 = vpop.f32.mrb[0].mxu0
        %3455 = vmatprep.mubr.bf16.mxu0 0
        %3456 = vmatmul.mubr.bf16.gmra.mrb[0].mxu0 %v2392
        %v3457 = vpop.f32.mrb[0].mxu0
        %v3458 = vadd.f32 %v3361, %v3457
        %v3459 = vpop.f32.mrb[0].mxu0
        %v3460 = vpop.f32.mrb[0].mxu0
        %v3461 = vadd.f32 %v3364, %v3460
        %v3462 = vpop.f32.mrb[0].mxu0
        %3463 = vmatprep.mubr.bf16.mxu0 0
        %3464 = vmatmul.mubr.bf16.gmra.mrb[0].mxu0 %v2401
        %v3465 = vpop.f32.mrb[0].mxu0
        %v3466 = vadd.f32 %v3369, %v3465
        %v3467 = vpop.f32.mrb[0].mxu0
        %v3468 = vpop.f32.mrb[0].mxu0
        %v3469 = vadd.f32 %v3372, %v3468
        %v3470 = vpop.f32.mrb[0].mxu0
        %3471 = vmatprep.mubr.bf16.mxu0 0
        %3472 = vmatmul.mubr.bf16.gmra.mrb[0].mxu0 %v2410
        %v3473 = vpop.f32.mrb[0].mxu0
        %v3474 = vadd.f32 %v3377, %v3473
        %v3475 = vpop.f32.mrb[0].mxu0
        %v3476 = vpop.f32.mrb[0].mxu0
        %v3477 = vadd.f32 %v3380, %v3476
        %v3478 = vpop.f32.mrb[0].mxu0
        %3479 = vmatprep.mubr.bf16.mxu0 0
        %3480 = vmatmul.mubr.bf16.gmra.mrb[0].mxu0 %v2419
        %v3481 = vpop.f32.mrb[0].mxu0
        %v3482 = vadd.f32 %v3385, %v3481
        %v3483 = vpop.f32.mrb[0].mxu0
        %v3484 = vpop.f32.mrb[0].mxu0
        %v3485 = vadd.f32 %v3388, %v3484
        %v3486 = vpop.f32.mrb[0].mxu0
        %3487 = vdwg.mxu0
        %v3488 = vmax.f32 %v3426, 0.0
        %v3489 = vmax.f32 %v3429, 0.0
        %v3490 = vmax.f32 %v3434, 0.0
        %v3491 = vmax.f32 %v3437, 0.0
        %v3492 = vmax.f32 %v3442, 0.0
        %v3493 = vmax.f32 %v3445, 0.0
        %v3494 = vmax.f32 %v3450, 0.0
        %v3495 = vmax.f32 %v3453, 0.0
        %v3496 = vmax.f32 %v3458, 0.0
        %v3497 = vmax.f32 %v3461, 0.0
        %v3498 = vmax.f32 %v3466, 0.0
        %v3499 = vmax.f32 %v3469, 0.0
        %v3500 = vmax.f32 %v3474, 0.0
        %v3501 = vmax.f32 %v3477, 0.0
        %v3502 = vmax.f32 %v3482, 0.0
        %v3503 = vmax.f32 %v3485, 0.0
        %3504 = vst [vmem:[%s246] sm:$0xff] %v3488
        %3505 = vst [vmem:[%s246 + $0x8] sm:$0xff] %v3489
        %3506 = vst [vmem:[%s246 + $0x10] sm:$0xff] %v3490
        %3507 = vst [vmem:[%s246 + $0x18] sm:$0xff] %v3491
        %3508 = vst [vmem:[%s246 + $0x20] sm:$0xff] %v3492
        %3509 = vst [vmem:[%s246 + $0x28] sm:$0xff] %v3493
        %3510 = vst [vmem:[%s246 + $0x30] sm:$0xff] %v3494
        %3511 = vst [vmem:[%s246 + $0x38] sm:$0xff] %v3495
        %3512 = vst [vmem:[%s246 + $0x40] sm:$0xff] %v3496
        %3513 = vst [vmem:[%s246 + $0x48] sm:$0xff] %v3497
        %3514 = vst [vmem:[%s246 + $0x50] sm:$0xff] %v3498
        %3515 = vst [vmem:[%s246 + $0x58] sm:$0xff] %v3499
        %3516 = vst [vmem:[%s246 + $0x60] sm:$0xff] %v3500
        %3517 = vst [vmem:[%s246 + $0x68] sm:$0xff] %v3501
        %3518 = vst [vmem:[%s246 + $0x70] sm:$0xff] %v3502
        %3519 = vst [vmem:[%s246 + $0x78] sm:$0xff] %v3503
        %s3520 = sand.u32 %s152, 1
        %s3521 = scalar_lea.sflag [#allocation7], %s3520
        %s3522 = sand.u32 %s152, 1
        %s3523 = smul.addr %s3522, 128
        %s3524 = scalar_lea.vmem [#allocation8], %s3523
        // Predicated region
        $region69: #{tpu_custom_call.1} parent=39 // pred_check
          %p3525 = pneg %p162
        $region70: #{tpu_custom_call.1} parent=39 // pred_check_branch
          %3527 = sbr.rel (%p3525) target = $region72
        $region71: #{tpu_custom_call.1} parent=39 // pred_region
          %s3528 = smul.u32 16, %s25
          %s3530 = ssub.s32 2048, 2048
          %3531 = vsyncadd %s3521, %s3530
          %s3532 = smul.addr %s24, 32
          %s3533 = sadd.s32 %s3528, %s3532
          %s3534 = smul.addr %s3533, 128
          %s3535 = scalar_lea.hbm %s5, %s3534
          %s3536 = sshll.u32 %s3524, 4
          %s3537 = int_to_ptr.vmem [resolvable:$true] %s3536
          %3542 = dma.vmem_to_hbm [thread:$0]  %s3537, 2048, %s3535, %s3521, 128, 128, 8
        $region72: #{tpu_custom_call.1} parent=39 // pred_fallthru
          _
      $region40: #{tpu_custom_call.1} parent=5 // pred_fallthru
        _
      %p3543 = scmp.le.s32.totalorder 2, %s15
      // Predicated region
      $region73: #{tpu_custom_call.1} parent=5 // pred_check
        %p3544 = pneg %p3543
      $region74: #{tpu_custom_call.1} parent=5 // pred_check_branch
        %3546 = sbr.rel (%p3544) target = $region76
      $region75: #{tpu_custom_call.1} parent=5 // pred_region
        %s3547 = ssub.s32 %s15, 2
        // Predicated region
        $region77: #{tpu_custom_call.1} parent=75 // pred_check
          %p3548 = pneg %p168
        $region78: #{tpu_custom_call.1} parent=75 // pred_check_branch
          %3550 = sbr.rel (%p3548) target = $region80
        $region79: #{tpu_custom_call.1} parent=75 // pred_region
          %s3551 = sand.u32 %s153, 1
          %s3552 = scalar_lea.sflag [#allocation7], %s3551
          %s3553 = sand.u32 %s153, 1
          %s3554 = smul.addr %s3553, 128
          %s3555 = scalar_lea.vmem [#allocation8], %s3554
          %3556 = dma.done %s3552, 2048
        $region80: #{tpu_custom_call.1} parent=75 // pred_fallthru
          _
      $region76: #{tpu_custom_call.1} parent=5 // pred_fallthru
        _
    $region6: #{tpu_custom_call.1} parent=1 // loop_footer
      %s19 = sadd.s32 1, %s15
    $region7: #{tpu_custom_call.1} parent=1 // loop_footer_branch
      %14 = sbr.rel target = $region3
    $region8: #{tpu_custom_call.1} parent=1 // loop_exit
      _
    %3557 = vsyncpa [#allocation6], 1
    %s3558 = scalar_lea.sflag [#allocation6], 1
    %3559 = vsyncpa %s3558, 1
    %3560 = vsyncpa [#allocation7], 1
    %s3561 = scalar_lea.sflag [#allocation7], 1
    %3562 = vsyncpa %s3561, 1

</llo_original>
